<compile_context>
chip_gen: v5e
topology: v5e:2x2
jax: 0.10.0
libtpu: 0.0.40
codegen_flags: <defaults>
</compile_context>

<pallas_src>
import functools
import math

import jax
import jax.numpy as jnp
from jax.experimental import pallas as pl
from jax.experimental.pallas import tpu as pltpu

LN_EPS = 1e-5
SOFTPLUS_THRESHOLD = 20.0  # matches torch.nn.Softplus default threshold
LOG_SQRT_2PI = math.log(math.sqrt(2.0 * math.pi))


def _layernorm(h, gamma, beta):
    mu = jnp.mean(h, axis=-1, keepdims=True)
    var = jnp.mean((h - mu) ** 2, axis=-1, keepdims=True)
    return (h - mu) * jax.lax.rsqrt(var + LN_EPS) * gamma + beta


def _softplus(x):
    # torch softplus: x for x > threshold, else log1p(exp(x))
    safe = jnp.minimum(x, SOFTPLUS_THRESHOLD)
    return jnp.where(x > SOFTPLUS_THRESHOLD, x, jnp.log1p(jnp.exp(safe)))


def cond_pdf_gauss_kernel(
    x_ref, y_ref,
    w1_ref, b1_ref, g1_ref, be1_ref,
    w2_ref, b2_ref, g2_ref, be2_ref,
    w3a_ref, w3b_ref, b3_ref,
    o_ref,
    *, true_batch, block_rows,
):
    pid = pl.program_id(0)

    x = x_ref[...]          # (TB, 1)
    y = y_ref[...]          # (TB, 1)

    # --- FF block 1: Linear(1 -> H) as a VPU broadcast outer product (K=1) ---
    h = y * w1_ref[...] + b1_ref[...]                       # (TB, H)
    h = jnp.tanh(_layernorm(h, g1_ref[...], be1_ref[...]))

    # --- FF block 2: Linear(H -> H) on the MXU + LayerNorm + tanh ---
    h = jnp.dot(h, w2_ref[...], preferred_element_type=jnp.float32) + b2_ref[...]
    h = jnp.tanh(_layernorm(h, g2_ref[...], be2_ref[...]))

    # --- output head: two lane-dense row reductions (split W3 columns) ---
    p1_lin = jnp.sum(h * w3a_ref[...], axis=-1, keepdims=True) + b3_ref[0]
    p2_lin = jnp.sum(h * w3b_ref[...], axis=-1, keepdims=True) + b3_ref[1]
    param1 = _softplus(p1_lin)                               # (TB, 1)
    param2 = jnp.maximum(_softplus(p2_lin), 1e-4)            # custom_clamp(min=1e-4)

    # gauss negative log-likelihood; reciprocal computed once (exact) and reused
    r = pl.reciprocal(param2)
    z = (x - param1) * r
    nll = jnp.log(param2) + jnp.float32(LOG_SQRT_2PI) + 0.5 * z * z

    # mask padded rows of the final (possibly partial) batch tile
    rows = pid * block_rows + jax.lax.broadcasted_iota(jnp.int32, nll.shape, 0)
    nll = jnp.where(rows < true_batch, nll, 0.0)
    block_sum = jnp.sum(nll)

    # --- cross-grid-step mean accumulator in SMEM ---
    @pl.when(pid == 0)
    def _():
        o_ref[0, 0] = jnp.float32(0.0)

    o_ref[0, 0] += block_sum

    @pl.when(pid == pl.num_programs(0) - 1)
    def _():
        o_ref[0, 0] = o_ref[0, 0] / jnp.float32(true_batch)


def conditional_pdf_gauss(X, Y, params, *, block_rows=256):
    (w1, b1, g1, be1, w2, b2, g2, be2, w3, b3) = params
    B = X.shape[0]
    H = w1.shape[1]

    nb = pl.cdiv(B, block_rows)
    Bp = nb * block_rows
    if Bp != B:
        X = jnp.pad(X, ((0, Bp - B), (0, 0)))
        Y = jnp.pad(Y, ((0, Bp - B), (0, 0)))

    # split the output head into two lane-dense (1, H) rows + SMEM biases
    w3a = w3[:, 0].reshape(1, H)
    w3b = w3[:, 1].reshape(1, H)
    b3v = b3.reshape(2)

    row_spec = lambda: pl.BlockSpec((block_rows, 1), lambda i: (i, 0))
    vec_spec = lambda: pl.BlockSpec((1, H), lambda i: (0, 0))       # VMEM-resident
    mat_spec = pl.BlockSpec((H, H), lambda i: (0, 0))               # VMEM-resident
    smem_spec = pl.BlockSpec(memory_space=pltpu.MemorySpace.SMEM)

    # advisory cost estimate so XLA can schedule around this call
    flops = int(2 * Bp * H * (H + 4))
    transcendentals = int(Bp * (2 * H + 8))
    bytes_accessed = int(4 * (2 * Bp + H * H + 10 * H + 2 + 1))

    kernel = functools.partial(
        cond_pdf_gauss_kernel, true_batch=B, block_rows=block_rows)

    fn = pl.pallas_call(
        kernel,
        grid=(nb,),
        out_shape=jax.ShapeDtypeStruct((1, 1), jnp.float32),
        in_specs=[
            row_spec(), row_spec(),                          # X, Y (pipelined)
            vec_spec(), vec_spec(), vec_spec(), vec_spec(),  # w1, b1, g1, be1
            mat_spec, vec_spec(), vec_spec(), vec_spec(),    # w2, b2, g2, be2
            vec_spec(), vec_spec(),                          # w3 columns a, b
            smem_spec,                                       # b3 (2,) scalars
        ],
        out_specs=pl.BlockSpec(memory_space=pltpu.MemorySpace.SMEM),
        compiler_params=pltpu.CompilerParams(
            dimension_semantics=("arbitrary",)),             # accumulator axis
        cost_estimate=pl.CostEstimate(
            flops=flops,
            transcendentals=transcendentals,
            bytes_accessed=bytes_accessed),
    )
    out = fn(X, Y, w1, b1, g1, be1, w2, b2, g2, be2, w3a, w3b, b3v)
    return out[0, 0]


def init_params(key, dim_hidden):
    """Deterministic PyTorch-style init: Linear ~ U(-1/sqrt(fan_in), 1/sqrt(fan_in)),
    LayerNorm gamma=1 beta=0. Weights stored as (in, out)."""
    keys = jax.random.split(key, 6)

    def lin(kw, kb, fan_in, fan_out):
        bound = 1.0 / math.sqrt(fan_in)
        w = jax.random.uniform(kw, (fan_in, fan_out), jnp.float32, -bound, bound)
        b = jax.random.uniform(kb, (1, fan_out), jnp.float32, -bound, bound)
        return w, b

    w1, b1 = lin(keys[0], keys[1], 1, dim_hidden)
    g1 = jnp.ones((1, dim_hidden), jnp.float32)
    be1 = jnp.zeros((1, dim_hidden), jnp.float32)

    w2, b2 = lin(keys[2], keys[3], dim_hidden, dim_hidden)
    g2 = jnp.ones((1, dim_hidden), jnp.float32)
    be2 = jnp.zeros((1, dim_hidden), jnp.float32)

    w3, b3 = lin(keys[4], keys[5], dim_hidden, 2)

    return (w1, b1, g1, be1, w2, b2, g2, be2, w3, b3)


def reference_jax(X, Y, params):
    (w1, b1, g1, be1, w2, b2, g2, be2, w3, b3) = params
    h = jnp.tanh(_layernorm(Y @ w1 + b1, g1, be1))
    h = jnp.tanh(_layernorm(h @ w2 + b2, g2, be2))
    out = _softplus(h @ w3 + b3)
    p1, p2 = out[:, 0:1], jnp.maximum(out[:, 1:2], 1e-4)
    nll = jnp.log(p2) + math.log(math.sqrt(2 * math.pi)) + 0.5 * ((X - p1) / p2) ** 2
    return jnp.mean(nll)


if __name__ == "__main__":
    batch = 1024        # 4 grid steps of 256-row batch tiles
    dim_hidden = 128    # lane-dense hidden width (full 128-lane vregs / MXU tiles)

    key = jax.random.PRNGKey(0)
    k_param, k_x, k_y = jax.random.split(key, 3)

    params = init_params(k_param, dim_hidden)
    X = jax.random.normal(k_x, (batch, 1), jnp.float32)
    Y = jax.random.normal(k_y, (batch, 1), jnp.float32)

    out = jax.block_until_ready(conditional_pdf_gauss(X, Y, params))
    ref = reference_jax(X, Y, params)
    assert jnp.allclose(out, ref, rtol=3e-5, atol=3e-5), (out, ref)

    # exercise the padding / masked partial-tile path (batch not a tile multiple)
    Xs, Ys = X[:100], Y[:100]
    out2 = jax.block_until_ready(conditional_pdf_gauss(Xs, Ys, params))
    ref2 = reference_jax(Xs, Ys, params)
    assert jnp.allclose(out2, ref2, rtol=3e-5, atol=3e-5), (out2, ref2)

    print("KERNEL_OK")
</pallas_src>

<mosaic_0001>
module attributes {stable_mosaic.version = 11 : i64} {
  func.func @cond_pdf_gauss_kernel(%arg0: i32, %arg1: memref<256x1xf32, #tpu.memory_space<vmem>>, %arg2: memref<256x1xf32, #tpu.memory_space<vmem>>, %arg3: memref<1x128xf32, #tpu.memory_space<vmem>>, %arg4: memref<1x128xf32, #tpu.memory_space<vmem>>, %arg5: memref<1x128xf32, #tpu.memory_space<vmem>>, %arg6: memref<1x128xf32, #tpu.memory_space<vmem>>, %arg7: memref<128x128xf32, #tpu.memory_space<vmem>>, %arg8: memref<1x128xf32, #tpu.memory_space<vmem>>, %arg9: memref<1x128xf32, #tpu.memory_space<vmem>>, %arg10: memref<1x128xf32, #tpu.memory_space<vmem>>, %arg11: memref<1x128xf32, #tpu.memory_space<vmem>>, %arg12: memref<1x128xf32, #tpu.memory_space<vmem>>, %arg13: memref<2xf32, #tpu.memory_space<smem>>, %arg14: memref<1x1xf32, #tpu.memory_space<smem>>) attributes {dimension_semantics = [#tpu.dimension_semantics<arbitrary>], iteration_bounds = array<i64: 4>, scalar_prefetch = 0 : i64, scratch_operands = 0 : i64, tpu.core_type = #tpu.core_type<tc>, window_params = [{transform_indices = @transform_0, window_bounds = array<i64: 256, 1>}, {transform_indices = @transform_1, window_bounds = array<i64: 256, 1>}, {pipeline_mode = #tpu.pipeline_mode<synchronous>, transform_indices = @transform_2, window_bounds = array<i64: 1, 128>}, {pipeline_mode = #tpu.pipeline_mode<synchronous>, transform_indices = @transform_3, window_bounds = array<i64: 1, 128>}, {pipeline_mode = #tpu.pipeline_mode<synchronous>, transform_indices = @transform_4, window_bounds = array<i64: 1, 128>}, {pipeline_mode = #tpu.pipeline_mode<synchronous>, transform_indices = @transform_5, window_bounds = array<i64: 1, 128>}, {pipeline_mode = #tpu.pipeline_mode<synchronous>, transform_indices = @transform_6, window_bounds = array<i64: 128, 128>}, {pipeline_mode = #tpu.pipeline_mode<synchronous>, transform_indices = @transform_7, window_bounds = array<i64: 1, 128>}, {pipeline_mode = #tpu.pipeline_mode<synchronous>, transform_indices = @transform_8, window_bounds = array<i64: 1, 128>}, {pipeline_mode = #tpu.pipeline_mode<synchronous>, transform_indices = @transform_9, window_bounds = array<i64: 1, 128>}, {pipeline_mode = #tpu.pipeline_mode<synchronous>, transform_indices = @transform_10, window_bounds = array<i64: 1, 128>}, {pipeline_mode = #tpu.pipeline_mode<synchronous>, transform_indices = @transform_11, window_bounds = array<i64: 1, 128>}, {transform_indices = @transform_12, window_bounds = array<i64: 2>}, {transform_indices = @transform_13, window_bounds = array<i64: 1, 1>}]} {
    %c0 = arith.constant 0 : index
    %c0_0 = arith.constant 0 : index
    %0 = vector.load %arg1[%c0, %c0_0] : memref<256x1xf32, #tpu.memory_space<vmem>>, vector<256x1xf32>
    %c0_1 = arith.constant 0 : index
    %c0_2 = arith.constant 0 : index
    %1 = vector.load %arg2[%c0_1, %c0_2] : memref<256x1xf32, #tpu.memory_space<vmem>>, vector<256x1xf32>
    %c0_3 = arith.constant 0 : index
    %c0_4 = arith.constant 0 : index
    %2 = vector.load %arg3[%c0_3, %c0_4] : memref<1x128xf32, #tpu.memory_space<vmem>>, vector<1x128xf32>
    %3 = vector.broadcast %1 : vector<256x1xf32> to vector<256x128xf32>
    %4 = vector.broadcast %2 : vector<1x128xf32> to vector<256x128xf32>
    %5 = arith.mulf %3, %4 : vector<256x128xf32>
    %c0_5 = arith.constant 0 : index
    %c0_6 = arith.constant 0 : index
    %6 = vector.load %arg4[%c0_5, %c0_6] : memref<1x128xf32, #tpu.memory_space<vmem>>, vector<1x128xf32>
    %7 = vector.broadcast %6 : vector<1x128xf32> to vector<256x128xf32>
    %8 = arith.addf %5, %7 : vector<256x128xf32>
    %c0_7 = arith.constant 0 : index
    %c0_8 = arith.constant 0 : index
    %9 = vector.load %arg5[%c0_7, %c0_8] : memref<1x128xf32, #tpu.memory_space<vmem>>, vector<1x128xf32>
    %c0_9 = arith.constant 0 : index
    %c0_10 = arith.constant 0 : index
    %10 = vector.load %arg6[%c0_9, %c0_10] : memref<1x128xf32, #tpu.memory_space<vmem>>, vector<1x128xf32>
    %cst = arith.constant dense<0.000000e+00> : vector<256xf32>
    %11 = vector.multi_reduction <add>, %8, %cst [1] : vector<256x128xf32> to vector<256xf32>
    %12 = vector.shape_cast %11 : vector<256xf32> to vector<256x1xf32>
    %cst_11 = arith.constant 1.280000e+02 : f32
    %13 = vector.broadcast %cst_11 : f32 to vector<256x1xf32>
    %14 = arith.divf %12, %13 : vector<256x1xf32>
    %15 = vector.broadcast %14 : vector<256x1xf32> to vector<256x128xf32>
    %16 = arith.subf %8, %15 : vector<256x128xf32>
    %17 = arith.mulf %16, %16 : vector<256x128xf32>
    %cst_12 = arith.constant dense<0.000000e+00> : vector<256xf32>
    %18 = vector.multi_reduction <add>, %17, %cst_12 [1] : vector<256x128xf32> to vector<256xf32>
    %19 = vector.shape_cast %18 : vector<256xf32> to vector<256x1xf32>
    %cst_13 = arith.constant 1.280000e+02 : f32
    %20 = vector.broadcast %cst_13 : f32 to vector<256x1xf32>
    %21 = arith.divf %19, %20 : vector<256x1xf32>
    %22 = vector.broadcast %14 : vector<256x1xf32> to vector<256x128xf32>
    %23 = arith.subf %8, %22 : vector<256x128xf32>
    %cst_14 = arith.constant 9.99999974E-6 : f32
    %24 = vector.broadcast %cst_14 : f32 to vector<256x1xf32>
    %25 = arith.addf %21, %24 : vector<256x1xf32>
    %26 = math.rsqrt %25 : vector<256x1xf32>
    %27 = vector.broadcast %26 : vector<256x1xf32> to vector<256x128xf32>
    %28 = arith.mulf %23, %27 : vector<256x128xf32>
    %29 = vector.broadcast %9 : vector<1x128xf32> to vector<256x128xf32>
    %30 = arith.mulf %28, %29 : vector<256x128xf32>
    %31 = vector.broadcast %10 : vector<1x128xf32> to vector<256x128xf32>
    %32 = arith.addf %30, %31 : vector<256x128xf32>
    %33 = math.tanh %32 : vector<256x128xf32>
    %c0_15 = arith.constant 0 : index
    %c0_16 = arith.constant 0 : index
    %34 = vector.load %arg7[%c0_15, %c0_16] : memref<128x128xf32, #tpu.memory_space<vmem>>, vector<128x128xf32>
    %cst_17 = arith.constant dense<0.000000e+00> : vector<256x128xf32>
    %35 = tpu.matmul %33, %34, %cst_17 {dimension_numbers = #tpu.dot_dimension_numbers<[1], [0], [0], [1], [0, 0, 1, 1], [], []>} : vector<256x128xf32>, vector<128x128xf32>, vector<256x128xf32> -> vector<256x128xf32>
    %c0_18 = arith.constant 0 : index
    %c0_19 = arith.constant 0 : index
    %36 = vector.load %arg8[%c0_18, %c0_19] : memref<1x128xf32, #tpu.memory_space<vmem>>, vector<1x128xf32>
    %37 = vector.broadcast %36 : vector<1x128xf32> to vector<256x128xf32>
    %38 = arith.addf %35, %37 : vector<256x128xf32>
    %c0_20 = arith.constant 0 : index
    %c0_21 = arith.constant 0 : index
    %39 = vector.load %arg9[%c0_20, %c0_21] : memref<1x128xf32, #tpu.memory_space<vmem>>, vector<1x128xf32>
    %c0_22 = arith.constant 0 : index
    %c0_23 = arith.constant 0 : index
    %40 = vector.load %arg10[%c0_22, %c0_23] : memref<1x128xf32, #tpu.memory_space<vmem>>, vector<1x128xf32>
    %cst_24 = arith.constant dense<0.000000e+00> : vector<256xf32>
    %41 = vector.multi_reduction <add>, %38, %cst_24 [1] : vector<256x128xf32> to vector<256xf32>
    %42 = vector.shape_cast %41 : vector<256xf32> to vector<256x1xf32>
    %cst_25 = arith.constant 1.280000e+02 : f32
    %43 = vector.broadcast %cst_25 : f32 to vector<256x1xf32>
    %44 = arith.divf %42, %43 : vector<256x1xf32>
    %45 = vector.broadcast %44 : vector<256x1xf32> to vector<256x128xf32>
    %46 = arith.subf %38, %45 : vector<256x128xf32>
    %47 = arith.mulf %46, %46 : vector<256x128xf32>
    %cst_26 = arith.constant dense<0.000000e+00> : vector<256xf32>
    %48 = vector.multi_reduction <add>, %47, %cst_26 [1] : vector<256x128xf32> to vector<256xf32>
    %49 = vector.shape_cast %48 : vector<256xf32> to vector<256x1xf32>
    %cst_27 = arith.constant 1.280000e+02 : f32
    %50 = vector.broadcast %cst_27 : f32 to vector<256x1xf32>
    %51 = arith.divf %49, %50 : vector<256x1xf32>
    %52 = vector.broadcast %44 : vector<256x1xf32> to vector<256x128xf32>
    %53 = arith.subf %38, %52 : vector<256x128xf32>
    %cst_28 = arith.constant 9.99999974E-6 : f32
    %54 = vector.broadcast %cst_28 : f32 to vector<256x1xf32>
    %55 = arith.addf %51, %54 : vector<256x1xf32>
    %56 = math.rsqrt %55 : vector<256x1xf32>
    %57 = vector.broadcast %56 : vector<256x1xf32> to vector<256x128xf32>
    %58 = arith.mulf %53, %57 : vector<256x128xf32>
    %59 = vector.broadcast %39 : vector<1x128xf32> to vector<256x128xf32>
    %60 = arith.mulf %58, %59 : vector<256x128xf32>
    %61 = vector.broadcast %40 : vector<1x128xf32> to vector<256x128xf32>
    %62 = arith.addf %60, %61 : vector<256x128xf32>
    %63 = math.tanh %62 : vector<256x128xf32>
    %c0_29 = arith.constant 0 : index
    %c0_30 = arith.constant 0 : index
    %64 = vector.load %arg11[%c0_29, %c0_30] : memref<1x128xf32, #tpu.memory_space<vmem>>, vector<1x128xf32>
    %65 = vector.broadcast %64 : vector<1x128xf32> to vector<256x128xf32>
    %66 = arith.mulf %63, %65 : vector<256x128xf32>
    %cst_31 = arith.constant dense<0.000000e+00> : vector<256xf32>
    %67 = vector.multi_reduction <add>, %66, %cst_31 [1] : vector<256x128xf32> to vector<256xf32>
    %68 = vector.shape_cast %67 : vector<256xf32> to vector<256x1xf32>
    %c0_32 = arith.constant 0 : index
    %69 = memref.load %arg13[%c0_32] : memref<2xf32, #tpu.memory_space<smem>>
    %70 = vector.broadcast %69 : f32 to vector<256x1xf32>
    %71 = arith.addf %68, %70 : vector<256x1xf32>
    %c0_33 = arith.constant 0 : index
    %c0_34 = arith.constant 0 : index
    %72 = vector.load %arg12[%c0_33, %c0_34] : memref<1x128xf32, #tpu.memory_space<vmem>>, vector<1x128xf32>
    %73 = vector.broadcast %72 : vector<1x128xf32> to vector<256x128xf32>
    %74 = arith.mulf %63, %73 : vector<256x128xf32>
    %cst_35 = arith.constant dense<0.000000e+00> : vector<256xf32>
    %75 = vector.multi_reduction <add>, %74, %cst_35 [1] : vector<256x128xf32> to vector<256xf32>
    %76 = vector.shape_cast %75 : vector<256xf32> to vector<256x1xf32>
    %c1 = arith.constant 1 : index
    %77 = memref.load %arg13[%c1] : memref<2xf32, #tpu.memory_space<smem>>
    %78 = vector.broadcast %77 : f32 to vector<256x1xf32>
    %79 = arith.addf %76, %78 : vector<256x1xf32>
    %cst_36 = arith.constant 2.000000e+01 : f32
    %80 = vector.broadcast %cst_36 : f32 to vector<256x1xf32>
    %81 = arith.minimumf %71, %80 : vector<256x1xf32>
    %cst_37 = arith.constant 2.000000e+01 : f32
    %82 = vector.broadcast %cst_37 : f32 to vector<256x1xf32>
    %83 = arith.cmpf ogt, %71, %82 : vector<256x1xf32>
    %84 = math.exp %81 : vector<256x1xf32>
    %85 = math.log1p %84 : vector<256x1xf32>
    %86 = arith.select %83, %71, %85 : vector<256x1xi1>, vector<256x1xf32>
    %cst_38 = arith.constant 2.000000e+01 : f32
    %87 = vector.broadcast %cst_38 : f32 to vector<256x1xf32>
    %88 = arith.minimumf %79, %87 : vector<256x1xf32>
    %cst_39 = arith.constant 2.000000e+01 : f32
    %89 = vector.broadcast %cst_39 : f32 to vector<256x1xf32>
    %90 = arith.cmpf ogt, %79, %89 : vector<256x1xf32>
    %91 = math.exp %88 : vector<256x1xf32>
    %92 = math.log1p %91 : vector<256x1xf32>
    %93 = arith.select %90, %79, %92 : vector<256x1xi1>, vector<256x1xf32>
    %cst_40 = arith.constant 9.99999974E-5 : f32
    %94 = vector.broadcast %cst_40 : f32 to vector<256x1xf32>
    %95 = arith.maximumf %93, %94 : vector<256x1xf32>
    %96 = tpu.reciprocal %95 : vector<256x1xf32> -> vector<256x1xf32>
    %97 = arith.subf %0, %86 : vector<256x1xf32>
    %98 = arith.mulf %97, %96 : vector<256x1xf32>
    %99 = math.log %95 : vector<256x1xf32>
    %cst_41 = arith.constant 0.918938517 : f32
    %100 = vector.broadcast %cst_41 : f32 to vector<256x1xf32>
    %101 = arith.addf %99, %100 : vector<256x1xf32>
    %cst_42 = arith.constant 5.000000e-01 : f32
    %102 = vector.broadcast %cst_42 : f32 to vector<256x1xf32>
    %103 = arith.mulf %102, %98 : vector<256x1xf32>
    %104 = arith.mulf %103, %98 : vector<256x1xf32>
    %105 = arith.addf %101, %104 : vector<256x1xf32>
    %c256_i32 = arith.constant 256 : i32
    %106 = arith.muli %arg0, %c256_i32 : i32
    %107 = tpu.iota {dimensions = array<i32: 0>} : vector<256x1xi32>
    %108 = vector.broadcast %106 : i32 to vector<256x1xi32>
    %109 = arith.addi %108, %107 : vector<256x1xi32>
    %c1024_i32 = arith.constant 1024 : i32
    %110 = vector.broadcast %c1024_i32 : i32 to vector<256x1xi32>
    %111 = arith.cmpi slt, %109, %110 : vector<256x1xi32>
    %cst_43 = arith.constant 0.000000e+00 : f32
    %112 = vector.broadcast %cst_43 : f32 to vector<256x1xf32>
    %113 = arith.select %111, %105, %112 : vector<256x1xi1>, vector<256x1xf32>
    %114 = vector.shape_cast %113 : vector<256x1xf32> to vector<1x256x1xf32>
    %cst_44 = arith.constant dense<0.000000e+00> : vector<1xf32>
    %115 = vector.multi_reduction <add>, %114, %cst_44 [1, 2] : vector<1x256x1xf32> to vector<1xf32>
    %116 = vector.shape_cast %115 : vector<1xf32> to vector<1x1x1xf32>
    %117 = vector.extract %116[0, 0, 0] : f32 from vector<1x1x1xf32>
    %c0_i32 = arith.constant 0 : i32
    %118 = arith.cmpi eq, %arg0, %c0_i32 : i32
    %119 = arith.extui %118 : i1 to i32
    %c0_i32_45 = arith.constant 0 : i32
    %120 = arith.cmpi ne, %119, %c0_i32_45 : i32
    scf.if %120 {
      %cst_51 = arith.constant 0.000000e+00 : f32
      %c0_52 = arith.constant 0 : index
      %c0_53 = arith.constant 0 : index
      %127 = memref.load %arg14[%c0_52, %c0_53] : memref<1x1xf32, #tpu.memory_space<smem>>
      memref.store %cst_51, %arg14[%c0_52, %c0_53] : memref<1x1xf32, #tpu.memory_space<smem>>
    } else {
    }
    %c0_46 = arith.constant 0 : index
    %c0_47 = arith.constant 0 : index
    %121 = memref.load %arg14[%c0_46, %c0_47] : memref<1x1xf32, #tpu.memory_space<smem>>
    %122 = arith.addf %121, %117 : f32
    %c0_48 = arith.constant 0 : index
    %c0_49 = arith.constant 0 : index
    %123 = memref.load %arg14[%c0_48, %c0_49] : memref<1x1xf32, #tpu.memory_space<smem>>
    memref.store %122, %arg14[%c0_48, %c0_49] : memref<1x1xf32, #tpu.memory_space<smem>>
    %c3_i32 = arith.constant 3 : i32
    %124 = arith.cmpi eq, %arg0, %c3_i32 : i32
    %125 = arith.extui %124 : i1 to i32
    %c0_i32_50 = arith.constant 0 : i32
    %126 = arith.cmpi ne, %125, %c0_i32_50 : i32
    scf.if %126 {
      %c0_51 = arith.constant 0 : index
      %c0_52 = arith.constant 0 : index
      %127 = memref.load %arg14[%c0_51, %c0_52] : memref<1x1xf32, #tpu.memory_space<smem>>
      %cst_53 = arith.constant 1.024000e+03 : f32
      %128 = arith.divf %127, %cst_53 : f32
      %c0_54 = arith.constant 0 : index
      %c0_55 = arith.constant 0 : index
      %129 = memref.load %arg14[%c0_54, %c0_55] : memref<1x1xf32, #tpu.memory_space<smem>>
      memref.store %128, %arg14[%c0_54, %c0_55] : memref<1x1xf32, #tpu.memory_space<smem>>
    } else {
    }
    return
  }
  func.func @transform_0(%arg0: i32) -> (i32, i32) {
    %c0_i32 = arith.constant 0 : i32
    %c0_i32_0 = arith.constant 0 : i32
    return %arg0, %c0_i32 : i32, i32
  }
  func.func @transform_1(%arg0: i32) -> (i32, i32) {
    %c0_i32 = arith.constant 0 : i32
    %c0_i32_0 = arith.constant 0 : i32
    return %arg0, %c0_i32 : i32, i32
  }
  func.func @transform_2(%arg0: i32) -> (i32, i32) {
    %c0_i32 = arith.constant 0 : i32
    %c0_i32_0 = arith.constant 0 : i32
    %c0_i32_1 = arith.constant 0 : i32
    return %c0_i32, %c0_i32_0 : i32, i32
  }
  func.func @transform_3(%arg0: i32) -> (i32, i32) {
    %c0_i32 = arith.constant 0 : i32
    %c0_i32_0 = arith.constant 0 : i32
    %c0_i32_1 = arith.constant 0 : i32
    return %c0_i32, %c0_i32_0 : i32, i32
  }
  func.func @transform_4(%arg0: i32) -> (i32, i32) {
    %c0_i32 = arith.constant 0 : i32
    %c0_i32_0 = arith.constant 0 : i32
    %c0_i32_1 = arith.constant 0 : i32
    return %c0_i32, %c0_i32_0 : i32, i32
  }
  func.func @transform_5(%arg0: i32) -> (i32, i32) {
    %c0_i32 = arith.constant 0 : i32
    %c0_i32_0 = arith.constant 0 : i32
    %c0_i32_1 = arith.constant 0 : i32
    return %c0_i32, %c0_i32_0 : i32, i32
  }
  func.func @transform_6(%arg0: i32) -> (i32, i32) {
    %c0_i32 = arith.constant 0 : i32
    %c0_i32_0 = arith.constant 0 : i32
    %c0_i32_1 = arith.constant 0 : i32
    return %c0_i32, %c0_i32_0 : i32, i32
  }
  func.func @transform_7(%arg0: i32) -> (i32, i32) {
    %c0_i32 = arith.constant 0 : i32
    %c0_i32_0 = arith.constant 0 : i32
    %c0_i32_1 = arith.constant 0 : i32
    return %c0_i32, %c0_i32_0 : i32, i32
  }
  func.func @transform_8(%arg0: i32) -> (i32, i32) {
    %c0_i32 = arith.constant 0 : i32
    %c0_i32_0 = arith.constant 0 : i32
    %c0_i32_1 = arith.constant 0 : i32
    return %c0_i32, %c0_i32_0 : i32, i32
  }
  func.func @transform_9(%arg0: i32) -> (i32, i32) {
    %c0_i32 = arith.constant 0 : i32
    %c0_i32_0 = arith.constant 0 : i32
    %c0_i32_1 = arith.constant 0 : i32
    return %c0_i32, %c0_i32_0 : i32, i32
  }
  func.func @transform_10(%arg0: i32) -> (i32, i32) {
    %c0_i32 = arith.constant 0 : i32
    %c0_i32_0 = arith.constant 0 : i32
    %c0_i32_1 = arith.constant 0 : i32
    return %c0_i32, %c0_i32_0 : i32, i32
  }
  func.func @transform_11(%arg0: i32) -> (i32, i32) {
    %c0_i32 = arith.constant 0 : i32
    %c0_i32_0 = arith.constant 0 : i32
    %c0_i32_1 = arith.constant 0 : i32
    return %c0_i32, %c0_i32_0 : i32, i32
  }
  func.func @transform_12(%arg0: i32) -> i32 {
    %c0_i32 = arith.constant 0 : i32
    %c0_i32_0 = arith.constant 0 : i32
    return %c0_i32 : i32
  }
  func.func @transform_13(%arg0: i32) -> (i32, i32) {
    %c0_i32 = arith.constant 0 : i32
    %c0_i32_0 = arith.constant 0 : i32
    %c0_i32_1 = arith.constant 0 : i32
    return %c0_i32, %c0_i32_0 : i32, i32
  }
}

</mosaic_0001>

<llo_original>
// kernel: tpu_custom_call.1
$region0: #{tpu_custom_call.1}
  #allocation0 [shape = 'u32[]', space=smem, size = 0x4, offset = 0x4, fixed_abs, tag = 'smem constant byte address 0x4 - core index']
  #allocation1 [shape = 'u32[72,128]{1,0:T(1,128)}', space=vmem, size = 0x9000, scoped, tag = 'internal scratch']
  %s0 = inlined_call_operand.vmem [shape: f32[1024,1], index: 0, kind: input, shape index: {}]
  %s1 = inlined_call_operand.vmem [shape: f32[1024,1], index: 1, kind: input, shape index: {}]
  %s2 = inlined_call_operand.vmem [shape: f32[1,128], index: 2, kind: input, shape index: {}]
  %s3 = inlined_call_operand.vmem [shape: f32[1,128], index: 3, kind: input, shape index: {}]
  %s4 = inlined_call_operand.vmem [shape: f32[1,128], index: 4, kind: input, shape index: {}]
  %s5 = inlined_call_operand.vmem [shape: f32[1,128], index: 5, kind: input, shape index: {}]
  %s6 = inlined_call_operand.vmem [shape: f32[128,128], index: 6, kind: input, shape index: {}]
  %s7 = inlined_call_operand.vmem [shape: f32[1,128], index: 7, kind: input, shape index: {}]
  %s8 = inlined_call_operand.vmem [shape: f32[1,128], index: 8, kind: input, shape index: {}]
  %s9 = inlined_call_operand.vmem [shape: f32[1,128], index: 9, kind: input, shape index: {}]
  %s10 = inlined_call_operand.vmem [shape: f32[1,128], index: 10, kind: input, shape index: {}]
  %s11 = inlined_call_operand.vmem [shape: f32[1,128], index: 11, kind: input, shape index: {}]
  %s12 = inlined_call_operand.vmem [shape: f32[2], index: 12, kind: input, shape index: {}]
  %s13 = inlined_call_operand.hbm [shape: f32[1,1], index: 13, kind: output, shape index: {}]
  %s14 = sld [smem:[#allocation0]]
  $region97: #{tpu_custom_call.1} parent=0
    _
  %s16 = ssub.s32 1, %s14
  %s17 = scalar_select 0, %s16, %s14
  $region1: #{tpu_custom_call.1} parent=0
    #allocation2 [shape = 'u8[512]{0}', space=smem, size = 0x200, scoped, tag = 'input window, operand 12, single buffered']
    #allocation3 [shape = 's32[2]{0}', space=sflag, size = 0x8, scoped, tag = 'scoped memory for tpu_custom_call.1']
    #allocation4 [shape = 's32[2]{0}', space=sflag, size = 0x8, scoped, tag = 'scoped memory for tpu_custom_call.1']
    #allocation5 [shape = 'u8[512]{0}', space=smem, size = 0x200, scoped, tag = 'output window, operand 0, single buffered']
    %18 = vsyncpa [#allocation4], 0
    %19 = vsyncpa [#allocation3], 0
    loop: start=0, step=1, limit=6
    $region2: #{tpu_custom_call.1} parent=1 // loop_pre_header
      _
    $region3: #{tpu_custom_call.1} parent=1 // loop_header
      %s21 = sphi 0, %s25
      %p22 = scmp.ge.s32.totalorder %s21, 6
      %s31 = sphi 0, %s33
      %s34 = sphi 0, %s31
      %s35 = sphi 0, %s34
      %s51 = sphi 0, %s35
      %s57 = sphi 0, %s59
      %s60 = sphi 0, %s57
      %s61 = sphi 0, %s60
      %s77 = sphi 0, %s61
      %s81 = sphi 0, %s81
      %s83 = sphi 0, %s81
      %s84 = sphi 0, %s83
      %s98 = sphi 0, %s84
      %s102 = sphi 0, %s102
      %s104 = sphi 0, %s102
      %s105 = sphi 0, %s104
      %s119 = sphi 0, %s105
      %s123 = sphi 0, %s123
      %s125 = sphi 0, %s123
      %s126 = sphi 0, %s125
      %s140 = sphi 0, %s126
      %s144 = sphi 0, %s144
      %s146 = sphi 0, %s144
      %s147 = sphi 0, %s146
      %s161 = sphi 0, %s147
      %s165 = sphi 0, %s165
      %s167 = sphi 0, %s165
      %s168 = sphi 0, %s167
      %s182 = sphi 0, %s168
      %s186 = sphi 0, %s186
      %s188 = sphi 0, %s186
      %s189 = sphi 0, %s188
      %s203 = sphi 0, %s189
      %s207 = sphi 0, %s207
      %s209 = sphi 0, %s207
      %s210 = sphi 0, %s209
      %s224 = sphi 0, %s210
      %s228 = sphi 0, %s228
      %s230 = sphi 0, %s228
      %s231 = sphi 0, %s230
      %s245 = sphi 0, %s231
      %s249 = sphi 0, %s249
      %s251 = sphi 0, %s249
      %s252 = sphi 0, %s251
      %s266 = sphi 0, %s252
      %s270 = sphi 0, %s270
      %s272 = sphi 0, %s270
      %s273 = sphi 0, %s272
      %s287 = sphi 0, %s273
      %s291 = sphi 0, %s291
      %s293 = sphi 0, %s291
      %s294 = sphi 0, %s293
      %s308 = sphi 0, %s294
      %s312 = sphi 0, %s312
      %s314 = sphi 0, %s312
      %s315 = sphi 0, %s314
      %s329 = sphi 0, %s315
    $region4: #{tpu_custom_call.1} parent=1 // loop_header_branch
      %24 = sbr.rel (%p22) target = $region8
    $region5: #{tpu_custom_call.1} parent=1 // loop_body
      %s26 = ssub.s32 %s21, 1
      %s27 = ssub.s32 %s21, 2
      %s28 = sadd.s32 %s21, 1
      %s29 = ssub.s32 %s21, %s28
      %p30 = scmp.eq.s32.totalorder %s29, 0
      %s32 = sadd.s32 %s31, 1
      %s33 = scalar_select %p30, %s31, %s32
      %p36 = pneg %p30
      %p37 = scmp.eq.s32.totalorder %s21, 3
      %p38 = por %p36, %p37
      %p39 = scmp.ne.s32.totalorder %s31, %s34
      %p40 = scmp.eq.s32.totalorder %s21, 0
      %p41 = por %p39, %p40
      %p42 = scmp.ne.s32.totalorder %s31, %s34
      %p43 = scmp.eq.s32.totalorder %s26, 3
      %p44 = por %p42, %p43
      %p45 = scmp.ne.s32.totalorder %s34, %s35
      %p46 = scmp.eq.s32.totalorder %s26, 0
      %p47 = por %p45, %p46
      %p48 = scmp.ne.s32.totalorder %s34, %s35
      %p49 = scmp.eq.s32.totalorder %s27, 3
      %p50 = por %p48, %p49
      %p52 = scmp.ne.s32.totalorder %s35, %s51
      %p53 = scmp.eq.s32.totalorder %s27, 0
      %p54 = por %p52, %p53
      %s55 = ssub.s32 %s21, %s28
      %p56 = scmp.eq.s32.totalorder %s55, 0
      %s58 = sadd.s32 %s57, 1
      %s59 = scalar_select %p56, %s57, %s58
      %p62 = pneg %p56
      %p63 = scmp.eq.s32.totalorder %s21, 3
      %p64 = por %p62, %p63
      %p65 = scmp.ne.s32.totalorder %s57, %s60
      %p66 = scmp.eq.s32.totalorder %s21, 0
      %p67 = por %p65, %p66
      %p68 = scmp.ne.s32.totalorder %s57, %s60
      %p69 = scmp.eq.s32.totalorder %s26, 3
      %p70 = por %p68, %p69
      %p71 = scmp.ne.s32.totalorder %s60, %s61
      %p72 = scmp.eq.s32.totalorder %s26, 0
      %p73 = por %p71, %p72
      %p74 = scmp.ne.s32.totalorder %s60, %s61
      %p75 = scmp.eq.s32.totalorder %s27, 3
      %p76 = por %p74, %p75
      %p78 = scmp.ne.s32.totalorder %s61, %s77
      %p79 = scmp.eq.s32.totalorder %s27, 0
      %p80 = por %p78, %p79
      %s82 = sadd.s32 %s81, 1
      %p85 = scmp.eq.s32.totalorder %s21, 3
      %p86 = scmp.ne.s32.totalorder %s81, %s83
      %p87 = scmp.eq.s32.totalorder %s21, 0
      %p88 = por %p86, %p87
      %p89 = scmp.ne.s32.totalorder %s81, %s83
      %p90 = scmp.eq.s32.totalorder %s26, 3
      %p91 = por %p89, %p90
      %p92 = scmp.ne.s32.totalorder %s83, %s84
      %p93 = scmp.eq.s32.totalorder %s26, 0
      %p94 = por %p92, %p93
      %p95 = scmp.ne.s32.totalorder %s83, %s84
      %p96 = scmp.eq.s32.totalorder %s27, 3
      %p97 = por %p95, %p96
      %p99 = scmp.ne.s32.totalorder %s84, %s98
      %p100 = scmp.eq.s32.totalorder %s27, 0
      %p101 = por %p99, %p100
      %s103 = sadd.s32 %s102, 1
      %p106 = scmp.eq.s32.totalorder %s21, 3
      %p107 = scmp.ne.s32.totalorder %s102, %s104
      %p108 = scmp.eq.s32.totalorder %s21, 0
      %p109 = por %p107, %p108
      %p110 = scmp.ne.s32.totalorder %s102, %s104
      %p111 = scmp.eq.s32.totalorder %s26, 3
      %p112 = por %p110, %p111
      %p113 = scmp.ne.s32.totalorder %s104, %s105
      %p114 = scmp.eq.s32.totalorder %s26, 0
      %p115 = por %p113, %p114
      %p116 = scmp.ne.s32.totalorder %s104, %s105
      %p117 = scmp.eq.s32.totalorder %s27, 3
      %p118 = por %p116, %p117
      %p120 = scmp.ne.s32.totalorder %s105, %s119
      %p121 = scmp.eq.s32.totalorder %s27, 0
      %p122 = por %p120, %p121
      %s124 = sadd.s32 %s123, 1
      %p127 = scmp.eq.s32.totalorder %s21, 3
      %p128 = scmp.ne.s32.totalorder %s123, %s125
      %p129 = scmp.eq.s32.totalorder %s21, 0
      %p130 = por %p128, %p129
      %p131 = scmp.ne.s32.totalorder %s123, %s125
      %p132 = scmp.eq.s32.totalorder %s26, 3
      %p133 = por %p131, %p132
      %p134 = scmp.ne.s32.totalorder %s125, %s126
      %p135 = scmp.eq.s32.totalorder %s26, 0
      %p136 = por %p134, %p135
      %p137 = scmp.ne.s32.totalorder %s125, %s126
      %p138 = scmp.eq.s32.totalorder %s27, 3
      %p139 = por %p137, %p138
      %p141 = scmp.ne.s32.totalorder %s126, %s140
      %p142 = scmp.eq.s32.totalorder %s27, 0
      %p143 = por %p141, %p142
      %s145 = sadd.s32 %s144, 1
      %p148 = scmp.eq.s32.totalorder %s21, 3
      %p149 = scmp.ne.s32.totalorder %s144, %s146
      %p150 = scmp.eq.s32.totalorder %s21, 0
      %p151 = por %p149, %p150
      %p152 = scmp.ne.s32.totalorder %s144, %s146
      %p153 = scmp.eq.s32.totalorder %s26, 3
      %p154 = por %p152, %p153
      %p155 = scmp.ne.s32.totalorder %s146, %s147
      %p156 = scmp.eq.s32.totalorder %s26, 0
      %p157 = por %p155, %p156
      %p158 = scmp.ne.s32.totalorder %s146, %s147
      %p159 = scmp.eq.s32.totalorder %s27, 3
      %p160 = por %p158, %p159
      %p162 = scmp.ne.s32.totalorder %s147, %s161
      %p163 = scmp.eq.s32.totalorder %s27, 0
      %p164 = por %p162, %p163
      %s166 = sadd.s32 %s165, 1
      %p169 = scmp.eq.s32.totalorder %s21, 3
      %p170 = scmp.ne.s32.totalorder %s165, %s167
      %p171 = scmp.eq.s32.totalorder %s21, 0
      %p172 = por %p170, %p171
      %p173 = scmp.ne.s32.totalorder %s165, %s167
      %p174 = scmp.eq.s32.totalorder %s26, 3
      %p175 = por %p173, %p174
      %p176 = scmp.ne.s32.totalorder %s167, %s168
      %p177 = scmp.eq.s32.totalorder %s26, 0
      %p178 = por %p176, %p177
      %p179 = scmp.ne.s32.totalorder %s167, %s168
      %p180 = scmp.eq.s32.totalorder %s27, 3
      %p181 = por %p179, %p180
      %p183 = scmp.ne.s32.totalorder %s168, %s182
      %p184 = scmp.eq.s32.totalorder %s27, 0
      %p185 = por %p183, %p184
      %s187 = sadd.s32 %s186, 1
      %p190 = scmp.eq.s32.totalorder %s21, 3
      %p191 = scmp.ne.s32.totalorder %s186, %s188
      %p192 = scmp.eq.s32.totalorder %s21, 0
      %p193 = por %p191, %p192
      %p194 = scmp.ne.s32.totalorder %s186, %s188
      %p195 = scmp.eq.s32.totalorder %s26, 3
      %p196 = por %p194, %p195
      %p197 = scmp.ne.s32.totalorder %s188, %s189
      %p198 = scmp.eq.s32.totalorder %s26, 0
      %p199 = por %p197, %p198
      %p200 = scmp.ne.s32.totalorder %s188, %s189
      %p201 = scmp.eq.s32.totalorder %s27, 3
      %p202 = por %p200, %p201
      %p204 = scmp.ne.s32.totalorder %s189, %s203
      %p205 = scmp.eq.s32.totalorder %s27, 0
      %p206 = por %p204, %p205
      %s208 = sadd.s32 %s207, 1
      %p211 = scmp.eq.s32.totalorder %s21, 3
      %p212 = scmp.ne.s32.totalorder %s207, %s209
      %p213 = scmp.eq.s32.totalorder %s21, 0
      %p214 = por %p212, %p213
      %p215 = scmp.ne.s32.totalorder %s207, %s209
      %p216 = scmp.eq.s32.totalorder %s26, 3
      %p217 = por %p215, %p216
      %p218 = scmp.ne.s32.totalorder %s209, %s210
      %p219 = scmp.eq.s32.totalorder %s26, 0
      %p220 = por %p218, %p219
      %p221 = scmp.ne.s32.totalorder %s209, %s210
      %p222 = scmp.eq.s32.totalorder %s27, 3
      %p223 = por %p221, %p222
      %p225 = scmp.ne.s32.totalorder %s210, %s224
      %p226 = scmp.eq.s32.totalorder %s27, 0
      %p227 = por %p225, %p226
      %s229 = sadd.s32 %s228, 1
      %p232 = scmp.eq.s32.totalorder %s21, 3
      %p233 = scmp.ne.s32.totalorder %s228, %s230
      %p234 = scmp.eq.s32.totalorder %s21, 0
      %p235 = por %p233, %p234
      %p236 = scmp.ne.s32.totalorder %s228, %s230
      %p237 = scmp.eq.s32.totalorder %s26, 3
      %p238 = por %p236, %p237
      %p239 = scmp.ne.s32.totalorder %s230, %s231
      %p240 = scmp.eq.s32.totalorder %s26, 0
      %p241 = por %p239, %p240
      %p242 = scmp.ne.s32.totalorder %s230, %s231
      %p243 = scmp.eq.s32.totalorder %s27, 3
      %p244 = por %p242, %p243
      %p246 = scmp.ne.s32.totalorder %s231, %s245
      %p247 = scmp.eq.s32.totalorder %s27, 0
      %p248 = por %p246, %p247
      %s250 = sadd.s32 %s249, 1
      %p253 = scmp.eq.s32.totalorder %s21, 3
      %p254 = scmp.ne.s32.totalorder %s249, %s251
      %p255 = scmp.eq.s32.totalorder %s21, 0
      %p256 = por %p254, %p255
      %p257 = scmp.ne.s32.totalorder %s249, %s251
      %p258 = scmp.eq.s32.totalorder %s26, 3
      %p259 = por %p257, %p258
      %p260 = scmp.ne.s32.totalorder %s251, %s252
      %p261 = scmp.eq.s32.totalorder %s26, 0
      %p262 = por %p260, %p261
      %p263 = scmp.ne.s32.totalorder %s251, %s252
      %p264 = scmp.eq.s32.totalorder %s27, 3
      %p265 = por %p263, %p264
      %p267 = scmp.ne.s32.totalorder %s252, %s266
      %p268 = scmp.eq.s32.totalorder %s27, 0
      %p269 = por %p267, %p268
      %s271 = sadd.s32 %s270, 1
      %p274 = scmp.eq.s32.totalorder %s21, 3
      %p275 = scmp.ne.s32.totalorder %s270, %s272
      %p276 = scmp.eq.s32.totalorder %s21, 0
      %p277 = por %p275, %p276
      %p278 = scmp.ne.s32.totalorder %s270, %s272
      %p279 = scmp.eq.s32.totalorder %s26, 3
      %p280 = por %p278, %p279
      %p281 = scmp.ne.s32.totalorder %s272, %s273
      %p282 = scmp.eq.s32.totalorder %s26, 0
      %p283 = por %p281, %p282
      %p284 = scmp.ne.s32.totalorder %s272, %s273
      %p285 = scmp.eq.s32.totalorder %s27, 3
      %p286 = por %p284, %p285
      %p288 = scmp.ne.s32.totalorder %s273, %s287
      %p289 = scmp.eq.s32.totalorder %s27, 0
      %p290 = por %p288, %p289
      %s292 = sadd.s32 %s291, 1
      %p295 = scmp.eq.s32.totalorder %s21, 3
      %p296 = scmp.ne.s32.totalorder %s291, %s293
      %p297 = scmp.eq.s32.totalorder %s21, 0
      %p298 = por %p296, %p297
      %p299 = scmp.ne.s32.totalorder %s291, %s293
      %p300 = scmp.eq.s32.totalorder %s26, 3
      %p301 = por %p299, %p300
      %p302 = scmp.ne.s32.totalorder %s293, %s294
      %p303 = scmp.eq.s32.totalorder %s26, 0
      %p304 = por %p302, %p303
      %p305 = scmp.ne.s32.totalorder %s293, %s294
      %p306 = scmp.eq.s32.totalorder %s27, 3
      %p307 = por %p305, %p306
      %p309 = scmp.ne.s32.totalorder %s294, %s308
      %p310 = scmp.eq.s32.totalorder %s27, 0
      %p311 = por %p309, %p310
      %s313 = sadd.s32 %s312, 1
      %p316 = scmp.eq.s32.totalorder %s21, 3
      %p317 = scmp.ne.s32.totalorder %s312, %s314
      %p318 = scmp.eq.s32.totalorder %s21, 0
      %p319 = por %p317, %p318
      %p320 = scmp.ne.s32.totalorder %s312, %s314
      %p321 = scmp.eq.s32.totalorder %s26, 3
      %p322 = por %p320, %p321
      %p323 = scmp.ne.s32.totalorder %s314, %s315
      %p324 = scmp.eq.s32.totalorder %s26, 0
      %p325 = por %p323, %p324
      %p326 = scmp.ne.s32.totalorder %s314, %s315
      %p327 = scmp.eq.s32.totalorder %s27, 3
      %p328 = por %p326, %p327
      %p330 = scmp.ne.s32.totalorder %s315, %s329
      %p331 = scmp.eq.s32.totalorder %s27, 0
      %p332 = por %p330, %p331
      %p333 = scmp.le.s32.totalorder 1, %s21
      %p334 = scmp.lt.s32.totalorder %s21, 5
      %p335 = pnand %p333, %p334
      %p336 = pneg %p335
      // Predicated region
      $region9: #{tpu_custom_call.1} parent=5 // pred_check
        _
      $region10: #{tpu_custom_call.1} parent=5 // pred_check_branch
        %338 = sbr.rel (%p335) target = $region12
      $region11: #{tpu_custom_call.1} parent=5 // pred_region
        %s339 = ssub.s32 %s21, 1
        // Predicated region
        $region13: #{tpu_custom_call.1} parent=11 // pred_check
          %p340 = pneg %p94
        $region14: #{tpu_custom_call.1} parent=11 // pred_check_branch
          %342 = sbr.rel (%p340) target = $region16
        $region15: #{tpu_custom_call.1} parent=11 // pred_region
          _
        $region16: #{tpu_custom_call.1} parent=11 // pred_fallthru
          _
        // Predicated region
        $region17: #{tpu_custom_call.1} parent=11 // pred_check
          %p343 = pneg %p115
        $region18: #{tpu_custom_call.1} parent=11 // pred_check_branch
          %345 = sbr.rel (%p343) target = $region20
        $region19: #{tpu_custom_call.1} parent=11 // pred_region
          _
        $region20: #{tpu_custom_call.1} parent=11 // pred_fallthru
          _
        // Predicated region
        $region21: #{tpu_custom_call.1} parent=11 // pred_check
          %p346 = pneg %p136
        $region22: #{tpu_custom_call.1} parent=11 // pred_check_branch
          %348 = sbr.rel (%p346) target = $region24
        $region23: #{tpu_custom_call.1} parent=11 // pred_region
          _
        $region24: #{tpu_custom_call.1} parent=11 // pred_fallthru
          _
        // Predicated region
        $region25: #{tpu_custom_call.1} parent=11 // pred_check
          %p349 = pneg %p157
        $region26: #{tpu_custom_call.1} parent=11 // pred_check_branch
          %351 = sbr.rel (%p349) target = $region28
        $region27: #{tpu_custom_call.1} parent=11 // pred_region
          _
        $region28: #{tpu_custom_call.1} parent=11 // pred_fallthru
          _
        // Predicated region
        $region29: #{tpu_custom_call.1} parent=11 // pred_check
          %p352 = pneg %p178
        $region30: #{tpu_custom_call.1} parent=11 // pred_check_branch
          %354 = sbr.rel (%p352) target = $region32
        $region31: #{tpu_custom_call.1} parent=11 // pred_region
          _
        $region32: #{tpu_custom_call.1} parent=11 // pred_fallthru
          _
        // Predicated region
        $region33: #{tpu_custom_call.1} parent=11 // pred_check
          %p355 = pneg %p199
        $region34: #{tpu_custom_call.1} parent=11 // pred_check_branch
          %357 = sbr.rel (%p355) target = $region36
        $region35: #{tpu_custom_call.1} parent=11 // pred_region
          _
        $region36: #{tpu_custom_call.1} parent=11 // pred_fallthru
          _
        // Predicated region
        $region37: #{tpu_custom_call.1} parent=11 // pred_check
          %p358 = pneg %p220
        $region38: #{tpu_custom_call.1} parent=11 // pred_check_branch
          %360 = sbr.rel (%p358) target = $region40
        $region39: #{tpu_custom_call.1} parent=11 // pred_region
          _
        $region40: #{tpu_custom_call.1} parent=11 // pred_fallthru
          _
        // Predicated region
        $region41: #{tpu_custom_call.1} parent=11 // pred_check
          %p361 = pneg %p241
        $region42: #{tpu_custom_call.1} parent=11 // pred_check_branch
          %363 = sbr.rel (%p361) target = $region44
        $region43: #{tpu_custom_call.1} parent=11 // pred_region
          _
        $region44: #{tpu_custom_call.1} parent=11 // pred_fallthru
          _
        // Predicated region
        $region45: #{tpu_custom_call.1} parent=11 // pred_check
          %p364 = pneg %p262
        $region46: #{tpu_custom_call.1} parent=11 // pred_check_branch
          %366 = sbr.rel (%p364) target = $region48
        $region47: #{tpu_custom_call.1} parent=11 // pred_region
          _
        $region48: #{tpu_custom_call.1} parent=11 // pred_fallthru
          _
        // Predicated region
        $region49: #{tpu_custom_call.1} parent=11 // pred_check
          %p367 = pneg %p283
        $region50: #{tpu_custom_call.1} parent=11 // pred_check_branch
          %369 = sbr.rel (%p367) target = $region52
        $region51: #{tpu_custom_call.1} parent=11 // pred_region
          _
        $region52: #{tpu_custom_call.1} parent=11 // pred_fallthru
          _
        // Predicated region
        $region53: #{tpu_custom_call.1} parent=11 // pred_check
          %p370 = pneg %p304
        $region54: #{tpu_custom_call.1} parent=11 // pred_check_branch
          %372 = sbr.rel (%p370) target = $region56
        $region55: #{tpu_custom_call.1} parent=11 // pred_region
          %374 = vsyncadd [#allocation4], 0
          %s376 = sshll.u32 %s12, 4
          %s377 = int_to_ptr.vmem [resolvable:$true] %s376
          %379 = dma.vmem_to_smem %s377, 16, [#allocation2], [#allocation4]
        $region56: #{tpu_custom_call.1} parent=11 // pred_fallthru
          _
      $region12: #{tpu_custom_call.1} parent=5 // pred_fallthru
        _
      %p380 = scmp.lt.s32.totalorder %s21, 4
      // Predicated region
      $region57: #{tpu_custom_call.1} parent=5 // pred_check
        %p381 = pneg %p380
      $region58: #{tpu_custom_call.1} parent=5 // pred_check_branch
        %383 = sbr.rel (%p381) target = $region60
      $region59: #{tpu_custom_call.1} parent=5 // pred_region
        // Predicated region
        $region61: #{tpu_custom_call.1} parent=59 // pred_check
          %p384 = pneg %p41
        $region62: #{tpu_custom_call.1} parent=59 // pred_check_branch
          %386 = sbr.rel (%p384) target = $region64
        $region63: #{tpu_custom_call.1} parent=59 // pred_region
          %s387 = smul.u32 32, %s21
          %p388 = scmp.lt.s32.totalorder %s387, 127
          %s389 = scalar_select %p388, %s387, 127
          %s390 = smul.addr %s389, 8
          %s391 = scalar_lea.vmem %s0, %s390
          %s392 = smul.u32 32, %s21
        $region64: #{tpu_custom_call.1} parent=59 // pred_fallthru
          _
        // Predicated region
        $region65: #{tpu_custom_call.1} parent=59 // pred_check
          %p393 = pneg %p67
        $region66: #{tpu_custom_call.1} parent=59 // pred_check_branch
          %395 = sbr.rel (%p393) target = $region68
        $region67: #{tpu_custom_call.1} parent=59 // pred_region
          %s396 = smul.u32 32, %s21
          %p397 = scmp.lt.s32.totalorder %s396, 127
          %s398 = scalar_select %p397, %s396, 127
          %s399 = smul.addr %s398, 8
          %s400 = scalar_lea.vmem %s1, %s399
          %s401 = smul.u32 32, %s21
        $region68: #{tpu_custom_call.1} parent=59 // pred_fallthru
          _
      $region60: #{tpu_custom_call.1} parent=5 // pred_fallthru
        _
      %p402 = scmp.le.s32.totalorder 1, %s21
      %p403 = scmp.lt.s32.totalorder %s21, 5
      %p404 = pnand %p402, %p403
      %p405 = pneg %p404
      // Predicated region
      $region69: #{tpu_custom_call.1} parent=5 // pred_check
        _
      $region70: #{tpu_custom_call.1} parent=5 // pred_check_branch
        %407 = sbr.rel (%p404) target = $region72
      $region71: #{tpu_custom_call.1} parent=5 // pred_region
        %s408 = ssub.s32 %s21, 1
        // Predicated region
        $region73: #{tpu_custom_call.1} parent=71 // pred_check
          %p409 = pneg %p304
        $region74: #{tpu_custom_call.1} parent=71 // pred_check_branch
          %411 = sbr.rel (%p409) target = $region76
        $region75: #{tpu_custom_call.1} parent=71 // pred_region
          %413 = dma.done [#allocation4], 16
        $region76: #{tpu_custom_call.1} parent=71 // pred_fallthru
          _
        %414 = sfence
        %s415 = smul.u32 32, %s26
        %p416 = scmp.lt.s32.totalorder %s415, 127
        %s417 = scalar_select %p416, %s415, 127
        %s418 = smul.addr %s417, 8
        %s419 = scalar_lea.vmem %s0, %s418
        %p420 = pneg %p47
        %p421 = pneg %p44
        %s422 = smul.u32 32, %s26
        %p423 = scmp.lt.s32.totalorder %s422, 127
        %s424 = scalar_select %p423, %s422, 127
        %s425 = smul.addr %s424, 8
        %s426 = scalar_lea.vmem %s1, %s425
        %p427 = pneg %p73
        %p428 = pneg %p70
        %p429 = pneg %p94
        %p430 = pneg %p91
        %p431 = pneg %p115
        %p432 = pneg %p112
        %p433 = pneg %p136
        %p434 = pneg %p133
        %p435 = pneg %p157
        %p436 = pneg %p154
        %p437 = pneg %p178
        %p438 = pneg %p175
        %p439 = pneg %p199
        %p440 = pneg %p196
        %p441 = pneg %p220
        %p442 = pneg %p217
        %p443 = pneg %p241
        %p444 = pneg %p238
        %p445 = pneg %p262
        %p446 = pneg %p259
        %p447 = pneg %p283
        %p448 = pneg %p280
        %p449 = pneg %p304
        %p450 = pneg %p301
        %p451 = pneg %p325
        %p452 = pneg %p322
        %s453 = smul.u32 32, %s26
        %p454 = scmp.lt.s32.totalorder %s453, 127
        %s455 = scalar_select %p454, %s453, 127
        %s456 = smul.addr %s455, 8
        %s457 = scalar_lea.vmem %s0, %s456
        %s458 = smul.u32 32, %s26
        %s459 = smul.u32 32, %s26
        %p460 = scmp.lt.s32.totalorder %s459, 127
        %s461 = scalar_select %p460, %s459, 127
        %s462 = smul.addr %s461, 8
        %s463 = scalar_lea.vmem %s1, %s462
        %s464 = smul.u32 32, %s26
        %v465 = vld [vmem:[%s457] sm:$0xff]
        %v466 = vld [vmem:[%s457 + $0x8] sm:$0xff]
        %v467 = vld [vmem:[%s457 + $0x10] sm:$0xff]
        %v468 = vld [vmem:[%s457 + $0x18] sm:$0xff]
        %v469 = vld [vmem:[%s457 + $0x20] sm:$0xff]
        %v470 = vld [vmem:[%s457 + $0x28] sm:$0xff]
        %v471 = vld [vmem:[%s457 + $0x30] sm:$0xff]
        %v472 = vld [vmem:[%s457 + $0x38] sm:$0xff]
        %v473 = vld [vmem:[%s457 + $0x40] sm:$0xff]
        %v474 = vld [vmem:[%s457 + $0x48] sm:$0xff]
        %v475 = vld [vmem:[%s457 + $0x50] sm:$0xff]
        %v476 = vld [vmem:[%s457 + $0x58] sm:$0xff]
        %v477 = vld [vmem:[%s457 + $0x60] sm:$0xff]
        %v478 = vld [vmem:[%s457 + $0x68] sm:$0xff]
        %v479 = vld [vmem:[%s457 + $0x70] sm:$0xff]
        %v480 = vld [vmem:[%s457 + $0x78] sm:$0xff]
        %v481 = vld [vmem:[%s457 + $0x80] sm:$0xff]
        %v482 = vld [vmem:[%s457 + $0x88] sm:$0xff]
        %v483 = vld [vmem:[%s457 + $0x90] sm:$0xff]
        %v484 = vld [vmem:[%s457 + $0x98] sm:$0xff]
        %v485 = vld [vmem:[%s457 + $0xa0] sm:$0xff]
        %v486 = vld [vmem:[%s457 + $0xa8] sm:$0xff]
        %v487 = vld [vmem:[%s457 + $0xb0] sm:$0xff]
        %v488 = vld [vmem:[%s457 + $0xb8] sm:$0xff]
        %v489 = vld [vmem:[%s457 + $0xc0] sm:$0xff]
        %v490 = vld [vmem:[%s457 + $0xc8] sm:$0xff]
        %v491 = vld [vmem:[%s457 + $0xd0] sm:$0xff]
        %v492 = vld [vmem:[%s457 + $0xd8] sm:$0xff]
        %v493 = vld [vmem:[%s457 + $0xe0] sm:$0xff]
        %v494 = vld [vmem:[%s457 + $0xe8] sm:$0xff]
        %v495 = vld [vmem:[%s457 + $0xf0] sm:$0xff]
        %v496 = vld [vmem:[%s457 + $0xf8] sm:$0xff]
        %v497 = vld [vmem:[%s463] sm:$0xff]
        %v498 = vld [vmem:[%s463 + $0x8] sm:$0xff]
        %v499 = vld [vmem:[%s463 + $0x10] sm:$0xff]
        %v500 = vld [vmem:[%s463 + $0x18] sm:$0xff]
        %v501 = vld [vmem:[%s463 + $0x20] sm:$0xff]
        %v502 = vld [vmem:[%s463 + $0x28] sm:$0xff]
        %v503 = vld [vmem:[%s463 + $0x30] sm:$0xff]
        %v504 = vld [vmem:[%s463 + $0x38] sm:$0xff]
        %v505 = vld [vmem:[%s463 + $0x40] sm:$0xff]
        %v506 = vld [vmem:[%s463 + $0x48] sm:$0xff]
        %v507 = vld [vmem:[%s463 + $0x50] sm:$0xff]
        %v508 = vld [vmem:[%s463 + $0x58] sm:$0xff]
        %v509 = vld [vmem:[%s463 + $0x60] sm:$0xff]
        %v510 = vld [vmem:[%s463 + $0x68] sm:$0xff]
        %v511 = vld [vmem:[%s463 + $0x70] sm:$0xff]
        %v512 = vld [vmem:[%s463 + $0x78] sm:$0xff]
        %v513 = vld [vmem:[%s463 + $0x80] sm:$0xff]
        %v514 = vld [vmem:[%s463 + $0x88] sm:$0xff]
        %v515 = vld [vmem:[%s463 + $0x90] sm:$0xff]
        %v516 = vld [vmem:[%s463 + $0x98] sm:$0xff]
        %v517 = vld [vmem:[%s463 + $0xa0] sm:$0xff]
        %v518 = vld [vmem:[%s463 + $0xa8] sm:$0xff]
        %v519 = vld [vmem:[%s463 + $0xb0] sm:$0xff]
        %v520 = vld [vmem:[%s463 + $0xb8] sm:$0xff]
        %v521 = vld [vmem:[%s463 + $0xc0] sm:$0xff]
        %v522 = vld [vmem:[%s463 + $0xc8] sm:$0xff]
        %v523 = vld [vmem:[%s463 + $0xd0] sm:$0xff]
        %v524 = vld [vmem:[%s463 + $0xd8] sm:$0xff]
        %v525 = vld [vmem:[%s463 + $0xe0] sm:$0xff]
        %v526 = vld [vmem:[%s463 + $0xe8] sm:$0xff]
        %v527 = vld [vmem:[%s463 + $0xf0] sm:$0xff]
        %v528 = vld [vmem:[%s463 + $0xf8] sm:$0xff]
        %v529 = vld [vmem:[%s2] sm:$0x1]
        %531 = vset.pattern.permute.xlu0 0
        %532 = vperm.xlu0 %531, %v497
        %v533 = vpop.permute.xlu0 %532
        %536 = vset.pattern.permute.xlu0 0
        %537 = vperm.xlu0 %536, %v498
        %v538 = vpop.permute.xlu0 %537
        %541 = vset.pattern.permute.xlu0 0
        %542 = vperm.xlu0 %541, %v499
        %v543 = vpop.permute.xlu0 %542
        %546 = vset.pattern.permute.xlu0 0
        %547 = vperm.xlu0 %546, %v500
        %v548 = vpop.permute.xlu0 %547
        %551 = vset.pattern.permute.xlu0 0
        %552 = vperm.xlu0 %551, %v501
        %v553 = vpop.permute.xlu0 %552
        %556 = vset.pattern.permute.xlu0 0
        %557 = vperm.xlu0 %556, %v502
        %v558 = vpop.permute.xlu0 %557
        %561 = vset.pattern.permute.xlu0 0
        %562 = vperm.xlu0 %561, %v503
        %v563 = vpop.permute.xlu0 %562
        %566 = vset.pattern.permute.xlu0 0
        %567 = vperm.xlu0 %566, %v504
        %v568 = vpop.permute.xlu0 %567
        %571 = vset.pattern.permute.xlu0 0
        %572 = vperm.xlu0 %571, %v505
        %v573 = vpop.permute.xlu0 %572
        %576 = vset.pattern.permute.xlu0 0
        %577 = vperm.xlu0 %576, %v506
        %v578 = vpop.permute.xlu0 %577
        %581 = vset.pattern.permute.xlu0 0
        %582 = vperm.xlu0 %581, %v507
        %v583 = vpop.permute.xlu0 %582
        %586 = vset.pattern.permute.xlu0 0
        %587 = vperm.xlu0 %586, %v508
        %v588 = vpop.permute.xlu0 %587
        %591 = vset.pattern.permute.xlu0 0
        %592 = vperm.xlu0 %591, %v509
        %v593 = vpop.permute.xlu0 %592
        %596 = vset.pattern.permute.xlu0 0
        %597 = vperm.xlu0 %596, %v510
        %v598 = vpop.permute.xlu0 %597
        %601 = vset.pattern.permute.xlu0 0
        %602 = vperm.xlu0 %601, %v511
        %v603 = vpop.permute.xlu0 %602
        %606 = vset.pattern.permute.xlu0 0
        %607 = vperm.xlu0 %606, %v512
        %v608 = vpop.permute.xlu0 %607
        %611 = vset.pattern.permute.xlu0 0
        %612 = vperm.xlu0 %611, %v513
        %v613 = vpop.permute.xlu0 %612
        %616 = vset.pattern.permute.xlu0 0
        %617 = vperm.xlu0 %616, %v514
        %v618 = vpop.permute.xlu0 %617
        %621 = vset.pattern.permute.xlu0 0
        %622 = vperm.xlu0 %621, %v515
        %v623 = vpop.permute.xlu0 %622
        %626 = vset.pattern.permute.xlu0 0
        %627 = vperm.xlu0 %626, %v516
        %v628 = vpop.permute.xlu0 %627
        %631 = vset.pattern.permute.xlu0 0
        %632 = vperm.xlu0 %631, %v517
        %v633 = vpop.permute.xlu0 %632
        %636 = vset.pattern.permute.xlu0 0
        %637 = vperm.xlu0 %636, %v518
        %v638 = vpop.permute.xlu0 %637
        %641 = vset.pattern.permute.xlu0 0
        %642 = vperm.xlu0 %641, %v519
        %v643 = vpop.permute.xlu0 %642
        %646 = vset.pattern.permute.xlu0 0
        %647 = vperm.xlu0 %646, %v520
        %v648 = vpop.permute.xlu0 %647
        %651 = vset.pattern.permute.xlu0 0
        %652 = vperm.xlu0 %651, %v521
        %v653 = vpop.permute.xlu0 %652
        %656 = vset.pattern.permute.xlu0 0
        %657 = vperm.xlu0 %656, %v522
        %v658 = vpop.permute.xlu0 %657
        %661 = vset.pattern.permute.xlu0 0
        %662 = vperm.xlu0 %661, %v523
        %v663 = vpop.permute.xlu0 %662
        %666 = vset.pattern.permute.xlu0 0
        %667 = vperm.xlu0 %666, %v524
        %v668 = vpop.permute.xlu0 %667
        %671 = vset.pattern.permute.xlu0 0
        %672 = vperm.xlu0 %671, %v525
        %v673 = vpop.permute.xlu0 %672
        %676 = vset.pattern.permute.xlu0 0
        %677 = vperm.xlu0 %676, %v526
        %v678 = vpop.permute.xlu0 %677
        %681 = vset.pattern.permute.xlu0 0
        %682 = vperm.xlu0 %681, %v527
        %v683 = vpop.permute.xlu0 %682
        %686 = vset.pattern.permute.xlu0 0
        %687 = vperm.xlu0 %686, %v528
        %v688 = vpop.permute.xlu0 %687
        %v691 = vperm.slane %v529, 0
        %v693 = vmul.f32 %v533, %v691
        %v694 = vmul.f32 %v538, %v691
        %v695 = vmul.f32 %v543, %v691
        %v696 = vmul.f32 %v548, %v691
        %v697 = vmul.f32 %v553, %v691
        %v698 = vmul.f32 %v558, %v691
        %v699 = vmul.f32 %v563, %v691
        %v700 = vmul.f32 %v568, %v691
        %v701 = vmul.f32 %v573, %v691
        %v702 = vmul.f32 %v578, %v691
        %v703 = vmul.f32 %v583, %v691
        %v704 = vmul.f32 %v588, %v691
        %v705 = vmul.f32 %v593, %v691
        %v706 = vmul.f32 %v598, %v691
        %v707 = vmul.f32 %v603, %v691
        %v708 = vmul.f32 %v608, %v691
        %v709 = vmul.f32 %v613, %v691
        %v710 = vmul.f32 %v618, %v691
        %v711 = vmul.f32 %v623, %v691
        %v712 = vmul.f32 %v628, %v691
        %v713 = vmul.f32 %v633, %v691
        %v714 = vmul.f32 %v638, %v691
        %v715 = vmul.f32 %v643, %v691
        %v716 = vmul.f32 %v648, %v691
        %v717 = vmul.f32 %v653, %v691
        %v718 = vmul.f32 %v658, %v691
        %v719 = vmul.f32 %v663, %v691
        %v720 = vmul.f32 %v668, %v691
        %v721 = vmul.f32 %v673, %v691
        %v722 = vmul.f32 %v678, %v691
        %v723 = vmul.f32 %v683, %v691
        %v724 = vmul.f32 %v688, %v691
        %v725 = vld [vmem:[%s3] sm:$0x1]
        %v727 = vperm.slane %v725, 0
        %v729 = vadd.f32 %v693, %v727
        %v730 = vadd.f32 %v694, %v727
        %v731 = vadd.f32 %v695, %v727
        %v732 = vadd.f32 %v696, %v727
        %v733 = vadd.f32 %v697, %v727
        %v734 = vadd.f32 %v698, %v727
        %v735 = vadd.f32 %v699, %v727
        %v736 = vadd.f32 %v700, %v727
        %v737 = vadd.f32 %v701, %v727
        %v738 = vadd.f32 %v702, %v727
        %v739 = vadd.f32 %v703, %v727
        %v740 = vadd.f32 %v704, %v727
        %v741 = vadd.f32 %v705, %v727
        %v742 = vadd.f32 %v706, %v727
        %v743 = vadd.f32 %v707, %v727
        %v744 = vadd.f32 %v708, %v727
        %v745 = vadd.f32 %v709, %v727
        %v746 = vadd.f32 %v710, %v727
        %v747 = vadd.f32 %v711, %v727
        %v748 = vadd.f32 %v712, %v727
        %v749 = vadd.f32 %v713, %v727
        %v750 = vadd.f32 %v714, %v727
        %v751 = vadd.f32 %v715, %v727
        %v752 = vadd.f32 %v716, %v727
        %v753 = vadd.f32 %v717, %v727
        %v754 = vadd.f32 %v718, %v727
        %v755 = vadd.f32 %v719, %v727
        %v756 = vadd.f32 %v720, %v727
        %v757 = vadd.f32 %v721, %v727
        %v758 = vadd.f32 %v722, %v727
        %v759 = vadd.f32 %v723, %v727
        %v760 = vadd.f32 %v724, %v727
        %v761 = vld [vmem:[%s4] sm:$0x1]
        %v762 = vld [vmem:[%s5] sm:$0x1]
        %763 = vadd.xlane.f32.xlu0 %v729
        %v764 = vpop.xlane.xlu0 %763
        %765 = vadd.xlane.f32.xlu0 %v730
        %v766 = vpop.xlane.xlu0 %765
        %767 = vadd.xlane.f32.xlu0 %v731
        %v768 = vpop.xlane.xlu0 %767
        %769 = vadd.xlane.f32.xlu0 %v732
        %v770 = vpop.xlane.xlu0 %769
        %771 = vadd.xlane.f32.xlu0 %v733
        %v772 = vpop.xlane.xlu0 %771
        %773 = vadd.xlane.f32.xlu0 %v734
        %v774 = vpop.xlane.xlu0 %773
        %775 = vadd.xlane.f32.xlu0 %v735
        %v776 = vpop.xlane.xlu0 %775
        %777 = vadd.xlane.f32.xlu0 %v736
        %v778 = vpop.xlane.xlu0 %777
        %779 = vadd.xlane.f32.xlu0 %v737
        %v780 = vpop.xlane.xlu0 %779
        %781 = vadd.xlane.f32.xlu0 %v738
        %v782 = vpop.xlane.xlu0 %781
        %783 = vadd.xlane.f32.xlu0 %v739
        %v784 = vpop.xlane.xlu0 %783
        %785 = vadd.xlane.f32.xlu0 %v740
        %v786 = vpop.xlane.xlu0 %785
        %787 = vadd.xlane.f32.xlu0 %v741
        %v788 = vpop.xlane.xlu0 %787
        %789 = vadd.xlane.f32.xlu0 %v742
        %v790 = vpop.xlane.xlu0 %789
        %791 = vadd.xlane.f32.xlu0 %v743
        %v792 = vpop.xlane.xlu0 %791
        %793 = vadd.xlane.f32.xlu0 %v744
        %v794 = vpop.xlane.xlu0 %793
        %795 = vadd.xlane.f32.xlu0 %v745
        %v796 = vpop.xlane.xlu0 %795
        %797 = vadd.xlane.f32.xlu0 %v746
        %v798 = vpop.xlane.xlu0 %797
        %799 = vadd.xlane.f32.xlu0 %v747
        %v800 = vpop.xlane.xlu0 %799
        %801 = vadd.xlane.f32.xlu0 %v748
        %v802 = vpop.xlane.xlu0 %801
        %803 = vadd.xlane.f32.xlu0 %v749
        %v804 = vpop.xlane.xlu0 %803
        %805 = vadd.xlane.f32.xlu0 %v750
        %v806 = vpop.xlane.xlu0 %805
        %807 = vadd.xlane.f32.xlu0 %v751
        %v808 = vpop.xlane.xlu0 %807
        %809 = vadd.xlane.f32.xlu0 %v752
        %v810 = vpop.xlane.xlu0 %809
        %811 = vadd.xlane.f32.xlu0 %v753
        %v812 = vpop.xlane.xlu0 %811
        %813 = vadd.xlane.f32.xlu0 %v754
        %v814 = vpop.xlane.xlu0 %813
        %815 = vadd.xlane.f32.xlu0 %v755
        %v816 = vpop.xlane.xlu0 %815
        %817 = vadd.xlane.f32.xlu0 %v756
        %v818 = vpop.xlane.xlu0 %817
        %819 = vadd.xlane.f32.xlu0 %v757
        %v820 = vpop.xlane.xlu0 %819
        %821 = vadd.xlane.f32.xlu0 %v758
        %v822 = vpop.xlane.xlu0 %821
        %823 = vadd.xlane.f32.xlu0 %v759
        %v824 = vpop.xlane.xlu0 %823
        %825 = vadd.xlane.f32.xlu0 %v760
        %v826 = vpop.xlane.xlu0 %825
        %v827 = vrcp.pop 128.0
        %v828 = vmul.f32 128.0, %v827
        %v829 = vsub.f32 1.0, %v828
        %v830 = vmul.f32 %v827, %v829
        %v831 = vadd.f32 %v827, %v830
        %vm832 = vweird.f32 %v827
        %v833 = vsel %vm832, %v827, %v831
        %v834 = vmul.f32 %v764, %v833
        %v835 = vmul.f32 %v766, %v833
        %v836 = vmul.f32 %v768, %v833
        %v837 = vmul.f32 %v770, %v833
        %v838 = vmul.f32 %v772, %v833
        %v839 = vmul.f32 %v774, %v833
        %v840 = vmul.f32 %v776, %v833
        %v841 = vmul.f32 %v778, %v833
        %v842 = vmul.f32 %v780, %v833
        %v843 = vmul.f32 %v782, %v833
        %v844 = vmul.f32 %v784, %v833
        %v845 = vmul.f32 %v786, %v833
        %v846 = vmul.f32 %v788, %v833
        %v847 = vmul.f32 %v790, %v833
        %v848 = vmul.f32 %v792, %v833
        %v849 = vmul.f32 %v794, %v833
        %v850 = vmul.f32 %v796, %v833
        %v851 = vmul.f32 %v798, %v833
        %v852 = vmul.f32 %v800, %v833
        %v853 = vmul.f32 %v802, %v833
        %v854 = vmul.f32 %v804, %v833
        %v855 = vmul.f32 %v806, %v833
        %v856 = vmul.f32 %v808, %v833
        %v857 = vmul.f32 %v810, %v833
        %v858 = vmul.f32 %v812, %v833
        %v859 = vmul.f32 %v814, %v833
        %v860 = vmul.f32 %v816, %v833
        %v861 = vmul.f32 %v818, %v833
        %v862 = vmul.f32 %v820, %v833
        %v863 = vmul.f32 %v822, %v833
        %v864 = vmul.f32 %v824, %v833
        %v865 = vmul.f32 %v826, %v833
        %v866 = vsub.f32 %v729, %v834
        %v867 = vsub.f32 %v730, %v835
        %v868 = vsub.f32 %v731, %v836
        %v869 = vsub.f32 %v732, %v837
        %v870 = vsub.f32 %v733, %v838
        %v871 = vsub.f32 %v734, %v839
        %v872 = vsub.f32 %v735, %v840
        %v873 = vsub.f32 %v736, %v841
        %v874 = vsub.f32 %v737, %v842
        %v875 = vsub.f32 %v738, %v843
        %v876 = vsub.f32 %v739, %v844
        %v877 = vsub.f32 %v740, %v845
        %v878 = vsub.f32 %v741, %v846
        %v879 = vsub.f32 %v742, %v847
        %v880 = vsub.f32 %v743, %v848
        %v881 = vsub.f32 %v744, %v849
        %v882 = vsub.f32 %v745, %v850
        %v883 = vsub.f32 %v746, %v851
        %v884 = vsub.f32 %v747, %v852
        %v885 = vsub.f32 %v748, %v853
        %v886 = vsub.f32 %v749, %v854
        %v887 = vsub.f32 %v750, %v855
        %v888 = vsub.f32 %v751, %v856
        %v889 = vsub.f32 %v752, %v857
        %v890 = vsub.f32 %v753, %v858
        %v891 = vsub.f32 %v754, %v859
        %v892 = vsub.f32 %v755, %v860
        %v893 = vsub.f32 %v756, %v861
        %v894 = vsub.f32 %v757, %v862
        %v895 = vsub.f32 %v758, %v863
        %v896 = vsub.f32 %v759, %v864
        %v897 = vsub.f32 %v760, %v865
        %v898 = vmul.f32 %v866, %v866
        %v899 = vmul.f32 %v867, %v867
        %v900 = vmul.f32 %v868, %v868
        %v901 = vmul.f32 %v869, %v869
        %v902 = vmul.f32 %v870, %v870
        %v903 = vmul.f32 %v871, %v871
        %v904 = vmul.f32 %v872, %v872
        %v905 = vmul.f32 %v873, %v873
        %v906 = vmul.f32 %v874, %v874
        %v907 = vmul.f32 %v875, %v875
        %v908 = vmul.f32 %v876, %v876
        %v909 = vmul.f32 %v877, %v877
        %v910 = vmul.f32 %v878, %v878
        %v911 = vmul.f32 %v879, %v879
        %v912 = vmul.f32 %v880, %v880
        %v913 = vmul.f32 %v881, %v881
        %v914 = vmul.f32 %v882, %v882
        %v915 = vmul.f32 %v883, %v883
        %v916 = vmul.f32 %v884, %v884
        %v917 = vmul.f32 %v885, %v885
        %v918 = vmul.f32 %v886, %v886
        %v919 = vmul.f32 %v887, %v887
        %v920 = vmul.f32 %v888, %v888
        %v921 = vmul.f32 %v889, %v889
        %v922 = vmul.f32 %v890, %v890
        %v923 = vmul.f32 %v891, %v891
        %v924 = vmul.f32 %v892, %v892
        %v925 = vmul.f32 %v893, %v893
        %v926 = vmul.f32 %v894, %v894
        %v927 = vmul.f32 %v895, %v895
        %v928 = vmul.f32 %v896, %v896
        %v929 = vmul.f32 %v897, %v897
        %930 = vadd.xlane.f32.xlu0 %v898
        %v931 = vpop.xlane.xlu0 %930
        %932 = vadd.xlane.f32.xlu0 %v899
        %v933 = vpop.xlane.xlu0 %932
        %934 = vadd.xlane.f32.xlu0 %v900
        %v935 = vpop.xlane.xlu0 %934
        %936 = vadd.xlane.f32.xlu0 %v901
        %v937 = vpop.xlane.xlu0 %936
        %938 = vadd.xlane.f32.xlu0 %v902
        %v939 = vpop.xlane.xlu0 %938
        %940 = vadd.xlane.f32.xlu0 %v903
        %v941 = vpop.xlane.xlu0 %940
        %942 = vadd.xlane.f32.xlu0 %v904
        %v943 = vpop.xlane.xlu0 %942
        %944 = vadd.xlane.f32.xlu0 %v905
        %v945 = vpop.xlane.xlu0 %944
        %946 = vadd.xlane.f32.xlu0 %v906
        %v947 = vpop.xlane.xlu0 %946
        %948 = vadd.xlane.f32.xlu0 %v907
        %v949 = vpop.xlane.xlu0 %948
        %950 = vadd.xlane.f32.xlu0 %v908
        %v951 = vpop.xlane.xlu0 %950
        %952 = vadd.xlane.f32.xlu0 %v909
        %v953 = vpop.xlane.xlu0 %952
        %954 = vadd.xlane.f32.xlu0 %v910
        %v955 = vpop.xlane.xlu0 %954
        %956 = vadd.xlane.f32.xlu0 %v911
        %v957 = vpop.xlane.xlu0 %956
        %958 = vadd.xlane.f32.xlu0 %v912
        %v959 = vpop.xlane.xlu0 %958
        %960 = vadd.xlane.f32.xlu0 %v913
        %v961 = vpop.xlane.xlu0 %960
        %962 = vadd.xlane.f32.xlu0 %v914
        %v963 = vpop.xlane.xlu0 %962
        %964 = vadd.xlane.f32.xlu0 %v915
        %v965 = vpop.xlane.xlu0 %964
        %966 = vadd.xlane.f32.xlu0 %v916
        %v967 = vpop.xlane.xlu0 %966
        %968 = vadd.xlane.f32.xlu0 %v917
        %v969 = vpop.xlane.xlu0 %968
        %970 = vadd.xlane.f32.xlu0 %v918
        %v971 = vpop.xlane.xlu0 %970
        %972 = vadd.xlane.f32.xlu0 %v919
        %v973 = vpop.xlane.xlu0 %972
        %974 = vadd.xlane.f32.xlu0 %v920
        %v975 = vpop.xlane.xlu0 %974
        %976 = vadd.xlane.f32.xlu0 %v921
        %v977 = vpop.xlane.xlu0 %976
        %978 = vadd.xlane.f32.xlu0 %v922
        %v979 = vpop.xlane.xlu0 %978
        %980 = vadd.xlane.f32.xlu0 %v923
        %v981 = vpop.xlane.xlu0 %980
        %982 = vadd.xlane.f32.xlu0 %v924
        %v983 = vpop.xlane.xlu0 %982
        %984 = vadd.xlane.f32.xlu0 %v925
        %v985 = vpop.xlane.xlu0 %984
        %986 = vadd.xlane.f32.xlu0 %v926
        %v987 = vpop.xlane.xlu0 %986
        %988 = vadd.xlane.f32.xlu0 %v927
        %v989 = vpop.xlane.xlu0 %988
        %990 = vadd.xlane.f32.xlu0 %v928
        %v991 = vpop.xlane.xlu0 %990
        %992 = vadd.xlane.f32.xlu0 %v929
        %v993 = vpop.xlane.xlu0 %992
        %v994 = vmul.f32 %v931, %v833
        %v995 = vmul.f32 %v933, %v833
        %v996 = vmul.f32 %v935, %v833
        %v997 = vmul.f32 %v937, %v833
        %v998 = vmul.f32 %v939, %v833
        %v999 = vmul.f32 %v941, %v833
        %v1000 = vmul.f32 %v943, %v833
        %v1001 = vmul.f32 %v945, %v833
        %v1002 = vmul.f32 %v947, %v833
        %v1003 = vmul.f32 %v949, %v833
        %v1004 = vmul.f32 %v951, %v833
        %v1005 = vmul.f32 %v953, %v833
        %v1006 = vmul.f32 %v955, %v833
        %v1007 = vmul.f32 %v957, %v833
        %v1008 = vmul.f32 %v959, %v833
        %v1009 = vmul.f32 %v961, %v833
        %v1010 = vmul.f32 %v963, %v833
        %v1011 = vmul.f32 %v965, %v833
        %v1012 = vmul.f32 %v967, %v833
        %v1013 = vmul.f32 %v969, %v833
        %v1014 = vmul.f32 %v971, %v833
        %v1015 = vmul.f32 %v973, %v833
        %v1016 = vmul.f32 %v975, %v833
        %v1017 = vmul.f32 %v977, %v833
        %v1018 = vmul.f32 %v979, %v833
        %v1019 = vmul.f32 %v981, %v833
        %v1020 = vmul.f32 %v983, %v833
        %v1021 = vmul.f32 %v985, %v833
        %v1022 = vmul.f32 %v987, %v833
        %v1023 = vmul.f32 %v989, %v833
        %v1024 = vmul.f32 %v991, %v833
        %v1025 = vmul.f32 %v993, %v833
        %v1026 = vadd.f32 %v994, 1e-05
        %v1027 = vadd.f32 %v995, 1e-05
        %v1028 = vadd.f32 %v996, 1e-05
        %v1029 = vadd.f32 %v997, 1e-05
        %v1030 = vadd.f32 %v998, 1e-05
        %v1031 = vadd.f32 %v999, 1e-05
        %v1032 = vadd.f32 %v1000, 1e-05
        %v1033 = vadd.f32 %v1001, 1e-05
        %v1034 = vadd.f32 %v1002, 1e-05
        %v1035 = vadd.f32 %v1003, 1e-05
        %v1036 = vadd.f32 %v1004, 1e-05
        %v1037 = vadd.f32 %v1005, 1e-05
        %v1038 = vadd.f32 %v1006, 1e-05
        %v1039 = vadd.f32 %v1007, 1e-05
        %v1040 = vadd.f32 %v1008, 1e-05
        %v1041 = vadd.f32 %v1009, 1e-05
        %v1042 = vadd.f32 %v1010, 1e-05
        %v1043 = vadd.f32 %v1011, 1e-05
        %v1044 = vadd.f32 %v1012, 1e-05
        %v1045 = vadd.f32 %v1013, 1e-05
        %v1046 = vadd.f32 %v1014, 1e-05
        %v1047 = vadd.f32 %v1015, 1e-05
        %v1048 = vadd.f32 %v1016, 1e-05
        %v1049 = vadd.f32 %v1017, 1e-05
        %v1050 = vadd.f32 %v1018, 1e-05
        %v1051 = vadd.f32 %v1019, 1e-05
        %v1052 = vadd.f32 %v1020, 1e-05
        %v1053 = vadd.f32 %v1021, 1e-05
        %v1054 = vadd.f32 %v1022, 1e-05
        %v1055 = vadd.f32 %v1023, 1e-05
        %v1056 = vadd.f32 %v1024, 1e-05
        %v1057 = vadd.f32 %v1025, 1e-05
        %v1058 = vrsqrt.pop %v1026
        %v1059 = vmul.f32 %v1058, %v1026
        %v1060 = vmul.f32 %v1059, %v1058
        %v1061 = vmul.f32 0.5, %v1060
        %v1062 = vsub.f32 1.5, %v1061
        %v1063 = vmul.f32 %v1058, %v1062
        %vm1064 = vweird.f32 %v1026
        %vm1065 = vweird.f32 %v1058
        %vm1066 = vmor %vm1064, %vm1065
        %v1067 = vsel %vm1066, %v1058, %v1063
        %v1068 = vrsqrt.pop %v1027
        %v1069 = vmul.f32 %v1068, %v1027
        %v1070 = vmul.f32 %v1069, %v1068
        %v1071 = vmul.f32 0.5, %v1070
        %v1072 = vsub.f32 1.5, %v1071
        %v1073 = vmul.f32 %v1068, %v1072
        %vm1074 = vweird.f32 %v1027
        %vm1075 = vweird.f32 %v1068
        %vm1076 = vmor %vm1074, %vm1075
        %v1077 = vsel %vm1076, %v1068, %v1073
        %v1078 = vrsqrt.pop %v1028
        %v1079 = vmul.f32 %v1078, %v1028
        %v1080 = vmul.f32 %v1079, %v1078
        %v1081 = vmul.f32 0.5, %v1080
        %v1082 = vsub.f32 1.5, %v1081
        %v1083 = vmul.f32 %v1078, %v1082
        %vm1084 = vweird.f32 %v1028
        %vm1085 = vweird.f32 %v1078
        %vm1086 = vmor %vm1084, %vm1085
        %v1087 = vsel %vm1086, %v1078, %v1083
        %v1088 = vrsqrt.pop %v1029
        %v1089 = vmul.f32 %v1088, %v1029
        %v1090 = vmul.f32 %v1089, %v1088
        %v1091 = vmul.f32 0.5, %v1090
        %v1092 = vsub.f32 1.5, %v1091
        %v1093 = vmul.f32 %v1088, %v1092
        %vm1094 = vweird.f32 %v1029
        %vm1095 = vweird.f32 %v1088
        %vm1096 = vmor %vm1094, %vm1095
        %v1097 = vsel %vm1096, %v1088, %v1093
        %v1098 = vrsqrt.pop %v1030
        %v1099 = vmul.f32 %v1098, %v1030
        %v1100 = vmul.f32 %v1099, %v1098
        %v1101 = vmul.f32 0.5, %v1100
        %v1102 = vsub.f32 1.5, %v1101
        %v1103 = vmul.f32 %v1098, %v1102
        %vm1104 = vweird.f32 %v1030
        %vm1105 = vweird.f32 %v1098
        %vm1106 = vmor %vm1104, %vm1105
        %v1107 = vsel %vm1106, %v1098, %v1103
        %v1108 = vrsqrt.pop %v1031
        %v1109 = vmul.f32 %v1108, %v1031
        %v1110 = vmul.f32 %v1109, %v1108
        %v1111 = vmul.f32 0.5, %v1110
        %v1112 = vsub.f32 1.5, %v1111
        %v1113 = vmul.f32 %v1108, %v1112
        %vm1114 = vweird.f32 %v1031
        %vm1115 = vweird.f32 %v1108
        %vm1116 = vmor %vm1114, %vm1115
        %v1117 = vsel %vm1116, %v1108, %v1113
        %v1118 = vrsqrt.pop %v1032
        %v1119 = vmul.f32 %v1118, %v1032
        %v1120 = vmul.f32 %v1119, %v1118
        %v1121 = vmul.f32 0.5, %v1120
        %v1122 = vsub.f32 1.5, %v1121
        %v1123 = vmul.f32 %v1118, %v1122
        %vm1124 = vweird.f32 %v1032
        %vm1125 = vweird.f32 %v1118
        %vm1126 = vmor %vm1124, %vm1125
        %v1127 = vsel %vm1126, %v1118, %v1123
        %v1128 = vrsqrt.pop %v1033
        %v1129 = vmul.f32 %v1128, %v1033
        %v1130 = vmul.f32 %v1129, %v1128
        %v1131 = vmul.f32 0.5, %v1130
        %v1132 = vsub.f32 1.5, %v1131
        %v1133 = vmul.f32 %v1128, %v1132
        %vm1134 = vweird.f32 %v1033
        %vm1135 = vweird.f32 %v1128
        %vm1136 = vmor %vm1134, %vm1135
        %v1137 = vsel %vm1136, %v1128, %v1133
        %v1138 = vrsqrt.pop %v1034
        %v1139 = vmul.f32 %v1138, %v1034
        %v1140 = vmul.f32 %v1139, %v1138
        %v1141 = vmul.f32 0.5, %v1140
        %v1142 = vsub.f32 1.5, %v1141
        %v1143 = vmul.f32 %v1138, %v1142
        %vm1144 = vweird.f32 %v1034
        %vm1145 = vweird.f32 %v1138
        %vm1146 = vmor %vm1144, %vm1145
        %v1147 = vsel %vm1146, %v1138, %v1143
        %v1148 = vrsqrt.pop %v1035
        %v1149 = vmul.f32 %v1148, %v1035
        %v1150 = vmul.f32 %v1149, %v1148
        %v1151 = vmul.f32 0.5, %v1150
        %v1152 = vsub.f32 1.5, %v1151
        %v1153 = vmul.f32 %v1148, %v1152
        %vm1154 = vweird.f32 %v1035
        %vm1155 = vweird.f32 %v1148
        %vm1156 = vmor %vm1154, %vm1155
        %v1157 = vsel %vm1156, %v1148, %v1153
        %v1158 = vrsqrt.pop %v1036
        %v1159 = vmul.f32 %v1158, %v1036
        %v1160 = vmul.f32 %v1159, %v1158
        %v1161 = vmul.f32 0.5, %v1160
        %v1162 = vsub.f32 1.5, %v1161
        %v1163 = vmul.f32 %v1158, %v1162
        %vm1164 = vweird.f32 %v1036
        %vm1165 = vweird.f32 %v1158
        %vm1166 = vmor %vm1164, %vm1165
        %v1167 = vsel %vm1166, %v1158, %v1163
        %v1168 = vrsqrt.pop %v1037
        %v1169 = vmul.f32 %v1168, %v1037
        %v1170 = vmul.f32 %v1169, %v1168
        %v1171 = vmul.f32 0.5, %v1170
        %v1172 = vsub.f32 1.5, %v1171
        %v1173 = vmul.f32 %v1168, %v1172
        %vm1174 = vweird.f32 %v1037
        %vm1175 = vweird.f32 %v1168
        %vm1176 = vmor %vm1174, %vm1175
        %v1177 = vsel %vm1176, %v1168, %v1173
        %v1178 = vrsqrt.pop %v1038
        %v1179 = vmul.f32 %v1178, %v1038
        %v1180 = vmul.f32 %v1179, %v1178
        %v1181 = vmul.f32 0.5, %v1180
        %v1182 = vsub.f32 1.5, %v1181
        %v1183 = vmul.f32 %v1178, %v1182
        %vm1184 = vweird.f32 %v1038
        %vm1185 = vweird.f32 %v1178
        %vm1186 = vmor %vm1184, %vm1185
        %v1187 = vsel %vm1186, %v1178, %v1183
        %v1188 = vrsqrt.pop %v1039
        %v1189 = vmul.f32 %v1188, %v1039
        %v1190 = vmul.f32 %v1189, %v1188
        %v1191 = vmul.f32 0.5, %v1190
        %v1192 = vsub.f32 1.5, %v1191
        %v1193 = vmul.f32 %v1188, %v1192
        %vm1194 = vweird.f32 %v1039
        %vm1195 = vweird.f32 %v1188
        %vm1196 = vmor %vm1194, %vm1195
        %v1197 = vsel %vm1196, %v1188, %v1193
        %v1198 = vrsqrt.pop %v1040
        %v1199 = vmul.f32 %v1198, %v1040
        %v1200 = vmul.f32 %v1199, %v1198
        %v1201 = vmul.f32 0.5, %v1200
        %v1202 = vsub.f32 1.5, %v1201
        %v1203 = vmul.f32 %v1198, %v1202
        %vm1204 = vweird.f32 %v1040
        %vm1205 = vweird.f32 %v1198
        %vm1206 = vmor %vm1204, %vm1205
        %v1207 = vsel %vm1206, %v1198, %v1203
        %v1208 = vrsqrt.pop %v1041
        %v1209 = vmul.f32 %v1208, %v1041
        %v1210 = vmul.f32 %v1209, %v1208
        %v1211 = vmul.f32 0.5, %v1210
        %v1212 = vsub.f32 1.5, %v1211
        %v1213 = vmul.f32 %v1208, %v1212
        %vm1214 = vweird.f32 %v1041
        %vm1215 = vweird.f32 %v1208
        %vm1216 = vmor %vm1214, %vm1215
        %v1217 = vsel %vm1216, %v1208, %v1213
        %v1218 = vrsqrt.pop %v1042
        %v1219 = vmul.f32 %v1218, %v1042
        %v1220 = vmul.f32 %v1219, %v1218
        %v1221 = vmul.f32 0.5, %v1220
        %v1222 = vsub.f32 1.5, %v1221
        %v1223 = vmul.f32 %v1218, %v1222
        %vm1224 = vweird.f32 %v1042
        %vm1225 = vweird.f32 %v1218
        %vm1226 = vmor %vm1224, %vm1225
        %v1227 = vsel %vm1226, %v1218, %v1223
        %v1228 = vrsqrt.pop %v1043
        %v1229 = vmul.f32 %v1228, %v1043
        %v1230 = vmul.f32 %v1229, %v1228
        %v1231 = vmul.f32 0.5, %v1230
        %v1232 = vsub.f32 1.5, %v1231
        %v1233 = vmul.f32 %v1228, %v1232
        %vm1234 = vweird.f32 %v1043
        %vm1235 = vweird.f32 %v1228
        %vm1236 = vmor %vm1234, %vm1235
        %v1237 = vsel %vm1236, %v1228, %v1233
        %v1238 = vrsqrt.pop %v1044
        %v1239 = vmul.f32 %v1238, %v1044
        %v1240 = vmul.f32 %v1239, %v1238
        %v1241 = vmul.f32 0.5, %v1240
        %v1242 = vsub.f32 1.5, %v1241
        %v1243 = vmul.f32 %v1238, %v1242
        %vm1244 = vweird.f32 %v1044
        %vm1245 = vweird.f32 %v1238
        %vm1246 = vmor %vm1244, %vm1245
        %v1247 = vsel %vm1246, %v1238, %v1243
        %v1248 = vrsqrt.pop %v1045
        %v1249 = vmul.f32 %v1248, %v1045
        %v1250 = vmul.f32 %v1249, %v1248
        %v1251 = vmul.f32 0.5, %v1250
        %v1252 = vsub.f32 1.5, %v1251
        %v1253 = vmul.f32 %v1248, %v1252
        %vm1254 = vweird.f32 %v1045
        %vm1255 = vweird.f32 %v1248
        %vm1256 = vmor %vm1254, %vm1255
        %v1257 = vsel %vm1256, %v1248, %v1253
        %v1258 = vrsqrt.pop %v1046
        %v1259 = vmul.f32 %v1258, %v1046
        %v1260 = vmul.f32 %v1259, %v1258
        %v1261 = vmul.f32 0.5, %v1260
        %v1262 = vsub.f32 1.5, %v1261
        %v1263 = vmul.f32 %v1258, %v1262
        %vm1264 = vweird.f32 %v1046
        %vm1265 = vweird.f32 %v1258
        %vm1266 = vmor %vm1264, %vm1265
        %v1267 = vsel %vm1266, %v1258, %v1263
        %v1268 = vrsqrt.pop %v1047
        %v1269 = vmul.f32 %v1268, %v1047
        %v1270 = vmul.f32 %v1269, %v1268
        %v1271 = vmul.f32 0.5, %v1270
        %v1272 = vsub.f32 1.5, %v1271
        %v1273 = vmul.f32 %v1268, %v1272
        %vm1274 = vweird.f32 %v1047
        %vm1275 = vweird.f32 %v1268
        %vm1276 = vmor %vm1274, %vm1275
        %v1277 = vsel %vm1276, %v1268, %v1273
        %v1278 = vrsqrt.pop %v1048
        %v1279 = vmul.f32 %v1278, %v1048
        %v1280 = vmul.f32 %v1279, %v1278
        %v1281 = vmul.f32 0.5, %v1280
        %v1282 = vsub.f32 1.5, %v1281
        %v1283 = vmul.f32 %v1278, %v1282
        %vm1284 = vweird.f32 %v1048
        %vm1285 = vweird.f32 %v1278
        %vm1286 = vmor %vm1284, %vm1285
        %v1287 = vsel %vm1286, %v1278, %v1283
        %v1288 = vrsqrt.pop %v1049
        %v1289 = vmul.f32 %v1288, %v1049
        %v1290 = vmul.f32 %v1289, %v1288
        %v1291 = vmul.f32 0.5, %v1290
        %v1292 = vsub.f32 1.5, %v1291
        %v1293 = vmul.f32 %v1288, %v1292
        %vm1294 = vweird.f32 %v1049
        %vm1295 = vweird.f32 %v1288
        %vm1296 = vmor %vm1294, %vm1295
        %v1297 = vsel %vm1296, %v1288, %v1293
        %v1298 = vrsqrt.pop %v1050
        %v1299 = vmul.f32 %v1298, %v1050
        %v1300 = vmul.f32 %v1299, %v1298
        %v1301 = vmul.f32 0.5, %v1300
        %v1302 = vsub.f32 1.5, %v1301
        %v1303 = vmul.f32 %v1298, %v1302
        %vm1304 = vweird.f32 %v1050
        %vm1305 = vweird.f32 %v1298
        %vm1306 = vmor %vm1304, %vm1305
        %v1307 = vsel %vm1306, %v1298, %v1303
        %v1308 = vrsqrt.pop %v1051
        %v1309 = vmul.f32 %v1308, %v1051
        %v1310 = vmul.f32 %v1309, %v1308
        %v1311 = vmul.f32 0.5, %v1310
        %v1312 = vsub.f32 1.5, %v1311
        %v1313 = vmul.f32 %v1308, %v1312
        %vm1314 = vweird.f32 %v1051
        %vm1315 = vweird.f32 %v1308
        %vm1316 = vmor %vm1314, %vm1315
        %v1317 = vsel %vm1316, %v1308, %v1313
        %v1318 = vrsqrt.pop %v1052
        %v1319 = vmul.f32 %v1318, %v1052
        %v1320 = vmul.f32 %v1319, %v1318
        %v1321 = vmul.f32 0.5, %v1320
        %v1322 = vsub.f32 1.5, %v1321
        %v1323 = vmul.f32 %v1318, %v1322
        %vm1324 = vweird.f32 %v1052
        %vm1325 = vweird.f32 %v1318
        %vm1326 = vmor %vm1324, %vm1325
        %v1327 = vsel %vm1326, %v1318, %v1323
        %v1328 = vrsqrt.pop %v1053
        %v1329 = vmul.f32 %v1328, %v1053
        %v1330 = vmul.f32 %v1329, %v1328
        %v1331 = vmul.f32 0.5, %v1330
        %v1332 = vsub.f32 1.5, %v1331
        %v1333 = vmul.f32 %v1328, %v1332
        %vm1334 = vweird.f32 %v1053
        %vm1335 = vweird.f32 %v1328
        %vm1336 = vmor %vm1334, %vm1335
        %v1337 = vsel %vm1336, %v1328, %v1333
        %v1338 = vrsqrt.pop %v1054
        %v1339 = vmul.f32 %v1338, %v1054
        %v1340 = vmul.f32 %v1339, %v1338
        %v1341 = vmul.f32 0.5, %v1340
        %v1342 = vsub.f32 1.5, %v1341
        %v1343 = vmul.f32 %v1338, %v1342
        %vm1344 = vweird.f32 %v1054
        %vm1345 = vweird.f32 %v1338
        %vm1346 = vmor %vm1344, %vm1345
        %v1347 = vsel %vm1346, %v1338, %v1343
        %v1348 = vrsqrt.pop %v1055
        %v1349 = vmul.f32 %v1348, %v1055
        %v1350 = vmul.f32 %v1349, %v1348
        %v1351 = vmul.f32 0.5, %v1350
        %v1352 = vsub.f32 1.5, %v1351
        %v1353 = vmul.f32 %v1348, %v1352
        %vm1354 = vweird.f32 %v1055
        %vm1355 = vweird.f32 %v1348
        %vm1356 = vmor %vm1354, %vm1355
        %v1357 = vsel %vm1356, %v1348, %v1353
        %v1358 = vrsqrt.pop %v1056
        %v1359 = vmul.f32 %v1358, %v1056
        %v1360 = vmul.f32 %v1359, %v1358
        %v1361 = vmul.f32 0.5, %v1360
        %v1362 = vsub.f32 1.5, %v1361
        %v1363 = vmul.f32 %v1358, %v1362
        %vm1364 = vweird.f32 %v1056
        %vm1365 = vweird.f32 %v1358
        %vm1366 = vmor %vm1364, %vm1365
        %v1367 = vsel %vm1366, %v1358, %v1363
        %v1368 = vrsqrt.pop %v1057
        %v1369 = vmul.f32 %v1368, %v1057
        %v1370 = vmul.f32 %v1369, %v1368
        %v1371 = vmul.f32 0.5, %v1370
        %v1372 = vsub.f32 1.5, %v1371
        %v1373 = vmul.f32 %v1368, %v1372
        %vm1374 = vweird.f32 %v1057
        %vm1375 = vweird.f32 %v1368
        %vm1376 = vmor %vm1374, %vm1375
        %v1377 = vsel %vm1376, %v1368, %v1373
        %v1378 = vmul.f32 %v866, %v1067
        %v1379 = vmul.f32 %v867, %v1077
        %v1380 = vmul.f32 %v868, %v1087
        %v1381 = vmul.f32 %v869, %v1097
        %v1382 = vmul.f32 %v870, %v1107
        %v1383 = vmul.f32 %v871, %v1117
        %v1384 = vmul.f32 %v872, %v1127
        %v1385 = vmul.f32 %v873, %v1137
        %v1386 = vmul.f32 %v874, %v1147
        %v1387 = vmul.f32 %v875, %v1157
        %v1388 = vmul.f32 %v876, %v1167
        %v1389 = vmul.f32 %v877, %v1177
        %v1390 = vmul.f32 %v878, %v1187
        %v1391 = vmul.f32 %v879, %v1197
        %v1392 = vmul.f32 %v880, %v1207
        %v1393 = vmul.f32 %v881, %v1217
        %v1394 = vmul.f32 %v882, %v1227
        %v1395 = vmul.f32 %v883, %v1237
        %v1396 = vmul.f32 %v884, %v1247
        %v1397 = vmul.f32 %v885, %v1257
        %v1398 = vmul.f32 %v886, %v1267
        %v1399 = vmul.f32 %v887, %v1277
        %v1400 = vmul.f32 %v888, %v1287
        %v1401 = vmul.f32 %v889, %v1297
        %v1402 = vmul.f32 %v890, %v1307
        %v1403 = vmul.f32 %v891, %v1317
        %v1404 = vmul.f32 %v892, %v1327
        %v1405 = vmul.f32 %v893, %v1337
        %v1406 = vmul.f32 %v894, %v1347
        %v1407 = vmul.f32 %v895, %v1357
        %v1408 = vmul.f32 %v896, %v1367
        %v1409 = vmul.f32 %v897, %v1377
        %v1411 = vperm.slane %v761, 0
        %v1413 = vmul.f32 %v1378, %v1411
        %v1414 = vmul.f32 %v1379, %v1411
        %v1415 = vmul.f32 %v1380, %v1411
        %v1416 = vmul.f32 %v1381, %v1411
        %v1417 = vmul.f32 %v1382, %v1411
        %v1418 = vmul.f32 %v1383, %v1411
        %v1419 = vmul.f32 %v1384, %v1411
        %v1420 = vmul.f32 %v1385, %v1411
        %v1421 = vmul.f32 %v1386, %v1411
        %v1422 = vmul.f32 %v1387, %v1411
        %v1423 = vmul.f32 %v1388, %v1411
        %v1424 = vmul.f32 %v1389, %v1411
        %v1425 = vmul.f32 %v1390, %v1411
        %v1426 = vmul.f32 %v1391, %v1411
        %v1427 = vmul.f32 %v1392, %v1411
        %v1428 = vmul.f32 %v1393, %v1411
        %v1429 = vmul.f32 %v1394, %v1411
        %v1430 = vmul.f32 %v1395, %v1411
        %v1431 = vmul.f32 %v1396, %v1411
        %v1432 = vmul.f32 %v1397, %v1411
        %v1433 = vmul.f32 %v1398, %v1411
        %v1434 = vmul.f32 %v1399, %v1411
        %v1435 = vmul.f32 %v1400, %v1411
        %v1436 = vmul.f32 %v1401, %v1411
        %v1437 = vmul.f32 %v1402, %v1411
        %v1438 = vmul.f32 %v1403, %v1411
        %v1439 = vmul.f32 %v1404, %v1411
        %v1440 = vmul.f32 %v1405, %v1411
        %v1441 = vmul.f32 %v1406, %v1411
        %v1442 = vmul.f32 %v1407, %v1411
        %v1443 = vmul.f32 %v1408, %v1411
        %v1444 = vmul.f32 %v1409, %v1411
        %v1446 = vperm.slane %v762, 0
        %v1448 = vadd.f32 %v1413, %v1446
        %v1449 = vadd.f32 %v1414, %v1446
        %v1450 = vadd.f32 %v1415, %v1446
        %v1451 = vadd.f32 %v1416, %v1446
        %v1452 = vadd.f32 %v1417, %v1446
        %v1453 = vadd.f32 %v1418, %v1446
        %v1454 = vadd.f32 %v1419, %v1446
        %v1455 = vadd.f32 %v1420, %v1446
        %v1456 = vadd.f32 %v1421, %v1446
        %v1457 = vadd.f32 %v1422, %v1446
        %v1458 = vadd.f32 %v1423, %v1446
        %v1459 = vadd.f32 %v1424, %v1446
        %v1460 = vadd.f32 %v1425, %v1446
        %v1461 = vadd.f32 %v1426, %v1446
        %v1462 = vadd.f32 %v1427, %v1446
        %v1463 = vadd.f32 %v1428, %v1446
        %v1464 = vadd.f32 %v1429, %v1446
        %v1465 = vadd.f32 %v1430, %v1446
        %v1466 = vadd.f32 %v1431, %v1446
        %v1467 = vadd.f32 %v1432, %v1446
        %v1468 = vadd.f32 %v1433, %v1446
        %v1469 = vadd.f32 %v1434, %v1446
        %v1470 = vadd.f32 %v1435, %v1446
        %v1471 = vadd.f32 %v1436, %v1446
        %v1472 = vadd.f32 %v1437, %v1446
        %v1473 = vadd.f32 %v1438, %v1446
        %v1474 = vadd.f32 %v1439, %v1446
        %v1475 = vadd.f32 %v1440, %v1446
        %v1476 = vadd.f32 %v1441, %v1446
        %v1477 = vadd.f32 %v1442, %v1446
        %v1478 = vadd.f32 %v1443, %v1446
        %v1479 = vadd.f32 %v1444, %v1446
        %v1480 = vtanh.pop %v1448
        %v1481 = vtanh.pop %v1449
        %v1482 = vtanh.pop %v1450
        %v1483 = vtanh.pop %v1451
        %v1484 = vtanh.pop %v1452
        %v1485 = vtanh.pop %v1453
        %v1486 = vtanh.pop %v1454
        %v1487 = vtanh.pop %v1455
        %v1488 = vtanh.pop %v1456
        %v1489 = vtanh.pop %v1457
        %v1490 = vtanh.pop %v1458
        %v1491 = vtanh.pop %v1459
        %v1492 = vtanh.pop %v1460
        %v1493 = vtanh.pop %v1461
        %v1494 = vtanh.pop %v1462
        %v1495 = vtanh.pop %v1463
        %v1496 = vtanh.pop %v1464
        %v1497 = vtanh.pop %v1465
        %v1498 = vtanh.pop %v1466
        %v1499 = vtanh.pop %v1467
        %v1500 = vtanh.pop %v1468
        %v1501 = vtanh.pop %v1469
        %v1502 = vtanh.pop %v1470
        %v1503 = vtanh.pop %v1471
        %v1504 = vtanh.pop %v1472
        %v1505 = vtanh.pop %v1473
        %v1506 = vtanh.pop %v1474
        %v1507 = vtanh.pop %v1475
        %v1508 = vtanh.pop %v1476
        %v1509 = vtanh.pop %v1477
        %v1510 = vtanh.pop %v1478
        %v1511 = vtanh.pop %v1479
        %v1512 = vld [vmem:[%s6] sm:$0xff]
        %v1513 = vld [vmem:[%s6 + $0x8] sm:$0xff]
        %v1514 = vld [vmem:[%s6 + $0x10] sm:$0xff]
        %v1515 = vld [vmem:[%s6 + $0x18] sm:$0xff]
        %v1516 = vld [vmem:[%s6 + $0x20] sm:$0xff]
        %v1517 = vld [vmem:[%s6 + $0x28] sm:$0xff]
        %v1518 = vld [vmem:[%s6 + $0x30] sm:$0xff]
        %v1519 = vld [vmem:[%s6 + $0x38] sm:$0xff]
        %v1520 = vld [vmem:[%s6 + $0x40] sm:$0xff]
        %v1521 = vld [vmem:[%s6 + $0x48] sm:$0xff]
        %v1522 = vld [vmem:[%s6 + $0x50] sm:$0xff]
        %v1523 = vld [vmem:[%s6 + $0x58] sm:$0xff]
        %v1524 = vld [vmem:[%s6 + $0x60] sm:$0xff]
        %v1525 = vld [vmem:[%s6 + $0x68] sm:$0xff]
        %v1526 = vld [vmem:[%s6 + $0x70] sm:$0xff]
        %v1527 = vld [vmem:[%s6 + $0x78] sm:$0xff]
        %v1528 = vld [vmem:[%s7] sm:$0x1]
        %v1530 = vperm.slane %v1528, 0
        %1532 = vmatpush.msra.mxu0 %v1527
        %1533 = vmatpush.msra.mxu0 %v1526
        %1534 = vmatpush.msra.mxu0 %v1525
        %1535 = vmatpush.msra.mxu0 %v1524
        %1536 = vmatpush.msra.mxu0 %v1523
        %1537 = vmatpush.msra.mxu0 %v1522
        %1538 = vmatpush.msra.mxu0 %v1521
        %1539 = vmatpush.msra.mxu0 %v1520
        %1540 = vmatpush.msra.mxu0 %v1519
        %1541 = vmatpush.msra.mxu0 %v1518
        %1542 = vmatpush.msra.mxu0 %v1517
        %1543 = vmatpush.msra.mxu0 %v1516
        %1544 = vmatpush.msra.mxu0 %v1515
        %1545 = vmatpush.msra.mxu0 %v1514
        %1546 = vmatpush.msra.mxu0 %v1513
        %1547 = vmatpush.msra.mxu0 %v1512
        %1548 = vmatmul.f32.gmra.mxu0 %v1480
        %v1549 = vpop.f32.mrf.mxu0
        %v1550 = vadd.f32 %v1530, %v1549
        %1551 = vmatmul.f32.gmra.mxu0 %v1481
        %v1552 = vpop.f32.mrf.mxu0
        %v1553 = vadd.f32 %v1530, %v1552
        %1554 = vmatmul.f32.gmra.mxu0 %v1482
        %v1555 = vpop.f32.mrf.mxu0
        %v1556 = vadd.f32 %v1530, %v1555
        %1557 = vmatmul.f32.gmra.mxu0 %v1483
        %v1558 = vpop.f32.mrf.mxu0
        %v1559 = vadd.f32 %v1530, %v1558
        %1560 = vmatmul.f32.gmra.mxu0 %v1484
        %v1561 = vpop.f32.mrf.mxu0
        %v1562 = vadd.f32 %v1530, %v1561
        %1563 = vmatmul.f32.gmra.mxu0 %v1485
        %v1564 = vpop.f32.mrf.mxu0
        %v1565 = vadd.f32 %v1530, %v1564
        %1566 = vmatmul.f32.gmra.mxu0 %v1486
        %v1567 = vpop.f32.mrf.mxu0
        %v1568 = vadd.f32 %v1530, %v1567
        %1569 = vmatmul.f32.gmra.mxu0 %v1487
        %v1570 = vpop.f32.mrf.mxu0
        %v1571 = vadd.f32 %v1530, %v1570
        %1572 = vmatmul.f32.gmra.mxu0 %v1488
        %v1573 = vpop.f32.mrf.mxu0
        %v1574 = vadd.f32 %v1530, %v1573
        %1575 = vmatmul.f32.gmra.mxu0 %v1489
        %v1576 = vpop.f32.mrf.mxu0
        %v1577 = vadd.f32 %v1530, %v1576
        %1578 = vmatmul.f32.gmra.mxu0 %v1490
        %v1579 = vpop.f32.mrf.mxu0
        %v1580 = vadd.f32 %v1530, %v1579
        %1581 = vmatmul.f32.gmra.mxu0 %v1491
        %v1582 = vpop.f32.mrf.mxu0
        %v1583 = vadd.f32 %v1530, %v1582
        %1584 = vmatmul.f32.gmra.mxu0 %v1492
        %v1585 = vpop.f32.mrf.mxu0
        %v1586 = vadd.f32 %v1530, %v1585
        %1587 = vmatmul.f32.gmra.mxu0 %v1493
        %v1588 = vpop.f32.mrf.mxu0
        %v1589 = vadd.f32 %v1530, %v1588
        %1590 = vmatmul.f32.gmra.mxu0 %v1494
        %v1591 = vpop.f32.mrf.mxu0
        %v1592 = vadd.f32 %v1530, %v1591
        %1593 = vmatmul.f32.gmra.mxu0 %v1495
        %v1594 = vpop.f32.mrf.mxu0
        %v1595 = vadd.f32 %v1530, %v1594
        %1596 = vmatmul.f32.gmra.mxu0 %v1496
        %v1597 = vpop.f32.mrf.mxu0
        %v1598 = vadd.f32 %v1530, %v1597
        %1599 = vmatmul.f32.gmra.mxu0 %v1497
        %v1600 = vpop.f32.mrf.mxu0
        %v1601 = vadd.f32 %v1530, %v1600
        %1602 = vmatmul.f32.gmra.mxu0 %v1498
        %v1603 = vpop.f32.mrf.mxu0
        %v1604 = vadd.f32 %v1530, %v1603
        %1605 = vmatmul.f32.gmra.mxu0 %v1499
        %v1606 = vpop.f32.mrf.mxu0
        %v1607 = vadd.f32 %v1530, %v1606
        %1608 = vmatmul.f32.gmra.mxu0 %v1500
        %v1609 = vpop.f32.mrf.mxu0
        %v1610 = vadd.f32 %v1530, %v1609
        %1611 = vmatmul.f32.gmra.mxu0 %v1501
        %v1612 = vpop.f32.mrf.mxu0
        %v1613 = vadd.f32 %v1530, %v1612
        %1614 = vmatmul.f32.gmra.mxu0 %v1502
        %v1615 = vpop.f32.mrf.mxu0
        %v1616 = vadd.f32 %v1530, %v1615
        %1617 = vmatmul.f32.gmra.mxu0 %v1503
        %v1618 = vpop.f32.mrf.mxu0
        %v1619 = vadd.f32 %v1530, %v1618
        %1620 = vmatmul.f32.gmra.mxu0 %v1504
        %v1621 = vpop.f32.mrf.mxu0
        %v1622 = vadd.f32 %v1530, %v1621
        %1623 = vmatmul.f32.gmra.mxu0 %v1505
        %v1624 = vpop.f32.mrf.mxu0
        %v1625 = vadd.f32 %v1530, %v1624
        %1626 = vmatmul.f32.gmra.mxu0 %v1506
        %v1627 = vpop.f32.mrf.mxu0
        %v1628 = vadd.f32 %v1530, %v1627
        %1629 = vmatmul.f32.gmra.mxu0 %v1507
        %v1630 = vpop.f32.mrf.mxu0
        %v1631 = vadd.f32 %v1530, %v1630
        %1632 = vmatmul.f32.gmra.mxu0 %v1508
        %v1633 = vpop.f32.mrf.mxu0
        %v1634 = vadd.f32 %v1530, %v1633
        %1635 = vmatmul.f32.gmra.mxu0 %v1509
        %v1636 = vpop.f32.mrf.mxu0
        %v1637 = vadd.f32 %v1530, %v1636
        %1638 = vmatmul.f32.gmra.mxu0 %v1510
        %v1639 = vpop.f32.mrf.mxu0
        %v1640 = vadd.f32 %v1530, %v1639
        %1641 = vmatmul.f32.gmra.mxu0 %v1511
        %v1642 = vpop.f32.mrf.mxu0
        %v1643 = vadd.f32 %v1530, %v1642
        %1644 = vdwg.mxu0
        %v1645 = vld [vmem:[%s8] sm:$0x1]
        %v1646 = vld [vmem:[%s9] sm:$0x1]
        %1647 = vadd.xlane.f32.xlu0 %v1550
        %v1648 = vpop.xlane.xlu0 %1647
        %1649 = vadd.xlane.f32.xlu0 %v1553
        %v1650 = vpop.xlane.xlu0 %1649
        %1651 = vadd.xlane.f32.xlu0 %v1556
        %v1652 = vpop.xlane.xlu0 %1651
        %1653 = vadd.xlane.f32.xlu0 %v1559
        %v1654 = vpop.xlane.xlu0 %1653
        %1655 = vadd.xlane.f32.xlu0 %v1562
        %v1656 = vpop.xlane.xlu0 %1655
        %1657 = vadd.xlane.f32.xlu0 %v1565
        %v1658 = vpop.xlane.xlu0 %1657
        %1659 = vadd.xlane.f32.xlu0 %v1568
        %v1660 = vpop.xlane.xlu0 %1659
        %1661 = vadd.xlane.f32.xlu0 %v1571
        %v1662 = vpop.xlane.xlu0 %1661
        %1663 = vadd.xlane.f32.xlu0 %v1574
        %v1664 = vpop.xlane.xlu0 %1663
        %1665 = vadd.xlane.f32.xlu0 %v1577
        %v1666 = vpop.xlane.xlu0 %1665
        %1667 = vadd.xlane.f32.xlu0 %v1580
        %v1668 = vpop.xlane.xlu0 %1667
        %1669 = vadd.xlane.f32.xlu0 %v1583
        %v1670 = vpop.xlane.xlu0 %1669
        %1671 = vadd.xlane.f32.xlu0 %v1586
        %v1672 = vpop.xlane.xlu0 %1671
        %1673 = vadd.xlane.f32.xlu0 %v1589
        %v1674 = vpop.xlane.xlu0 %1673
        %1675 = vadd.xlane.f32.xlu0 %v1592
        %v1676 = vpop.xlane.xlu0 %1675
        %1677 = vadd.xlane.f32.xlu0 %v1595
        %v1678 = vpop.xlane.xlu0 %1677
        %1679 = vadd.xlane.f32.xlu0 %v1598
        %v1680 = vpop.xlane.xlu0 %1679
        %1681 = vadd.xlane.f32.xlu0 %v1601
        %v1682 = vpop.xlane.xlu0 %1681
        %1683 = vadd.xlane.f32.xlu0 %v1604
        %v1684 = vpop.xlane.xlu0 %1683
        %1685 = vadd.xlane.f32.xlu0 %v1607
        %v1686 = vpop.xlane.xlu0 %1685
        %1687 = vadd.xlane.f32.xlu0 %v1610
        %v1688 = vpop.xlane.xlu0 %1687
        %1689 = vadd.xlane.f32.xlu0 %v1613
        %v1690 = vpop.xlane.xlu0 %1689
        %1691 = vadd.xlane.f32.xlu0 %v1616
        %v1692 = vpop.xlane.xlu0 %1691
        %1693 = vadd.xlane.f32.xlu0 %v1619
        %v1694 = vpop.xlane.xlu0 %1693
        %1695 = vadd.xlane.f32.xlu0 %v1622
        %v1696 = vpop.xlane.xlu0 %1695
        %1697 = vadd.xlane.f32.xlu0 %v1625
        %v1698 = vpop.xlane.xlu0 %1697
        %1699 = vadd.xlane.f32.xlu0 %v1628
        %v1700 = vpop.xlane.xlu0 %1699
        %1701 = vadd.xlane.f32.xlu0 %v1631
        %v1702 = vpop.xlane.xlu0 %1701
        %1703 = vadd.xlane.f32.xlu0 %v1634
        %v1704 = vpop.xlane.xlu0 %1703
        %1705 = vadd.xlane.f32.xlu0 %v1637
        %v1706 = vpop.xlane.xlu0 %1705
        %1707 = vadd.xlane.f32.xlu0 %v1640
        %v1708 = vpop.xlane.xlu0 %1707
        %1709 = vadd.xlane.f32.xlu0 %v1643
        %v1710 = vpop.xlane.xlu0 %1709
        %v1711 = vmul.f32 %v1648, %v833
        %v1712 = vmul.f32 %v1650, %v833
        %v1713 = vmul.f32 %v1652, %v833
        %v1714 = vmul.f32 %v1654, %v833
        %v1715 = vmul.f32 %v1656, %v833
        %v1716 = vmul.f32 %v1658, %v833
        %v1717 = vmul.f32 %v1660, %v833
        %v1718 = vmul.f32 %v1662, %v833
        %v1719 = vmul.f32 %v1664, %v833
        %v1720 = vmul.f32 %v1666, %v833
        %v1721 = vmul.f32 %v1668, %v833
        %v1722 = vmul.f32 %v1670, %v833
        %v1723 = vmul.f32 %v1672, %v833
        %v1724 = vmul.f32 %v1674, %v833
        %v1725 = vmul.f32 %v1676, %v833
        %v1726 = vmul.f32 %v1678, %v833
        %v1727 = vmul.f32 %v1680, %v833
        %v1728 = vmul.f32 %v1682, %v833
        %v1729 = vmul.f32 %v1684, %v833
        %v1730 = vmul.f32 %v1686, %v833
        %v1731 = vmul.f32 %v1688, %v833
        %v1732 = vmul.f32 %v1690, %v833
        %v1733 = vmul.f32 %v1692, %v833
        %v1734 = vmul.f32 %v1694, %v833
        %v1735 = vmul.f32 %v1696, %v833
        %v1736 = vmul.f32 %v1698, %v833
        %v1737 = vmul.f32 %v1700, %v833
        %v1738 = vmul.f32 %v1702, %v833
        %v1739 = vmul.f32 %v1704, %v833
        %v1740 = vmul.f32 %v1706, %v833
        %v1741 = vmul.f32 %v1708, %v833
        %v1742 = vmul.f32 %v1710, %v833
        %v1743 = vsub.f32 %v1550, %v1711
        %v1744 = vsub.f32 %v1553, %v1712
        %v1745 = vsub.f32 %v1556, %v1713
        %v1746 = vsub.f32 %v1559, %v1714
        %v1747 = vsub.f32 %v1562, %v1715
        %v1748 = vsub.f32 %v1565, %v1716
        %v1749 = vsub.f32 %v1568, %v1717
        %v1750 = vsub.f32 %v1571, %v1718
        %v1751 = vsub.f32 %v1574, %v1719
        %v1752 = vsub.f32 %v1577, %v1720
        %v1753 = vsub.f32 %v1580, %v1721
        %v1754 = vsub.f32 %v1583, %v1722
        %v1755 = vsub.f32 %v1586, %v1723
        %v1756 = vsub.f32 %v1589, %v1724
        %v1757 = vsub.f32 %v1592, %v1725
        %v1758 = vsub.f32 %v1595, %v1726
        %v1759 = vsub.f32 %v1598, %v1727
        %v1760 = vsub.f32 %v1601, %v1728
        %v1761 = vsub.f32 %v1604, %v1729
        %v1762 = vsub.f32 %v1607, %v1730
        %v1763 = vsub.f32 %v1610, %v1731
        %v1764 = vsub.f32 %v1613, %v1732
        %v1765 = vsub.f32 %v1616, %v1733
        %v1766 = vsub.f32 %v1619, %v1734
        %v1767 = vsub.f32 %v1622, %v1735
        %v1768 = vsub.f32 %v1625, %v1736
        %v1769 = vsub.f32 %v1628, %v1737
        %v1770 = vsub.f32 %v1631, %v1738
        %v1771 = vsub.f32 %v1634, %v1739
        %v1772 = vsub.f32 %v1637, %v1740
        %v1773 = vsub.f32 %v1640, %v1741
        %v1774 = vsub.f32 %v1643, %v1742
        %v1775 = vmul.f32 %v1743, %v1743
        %v1776 = vmul.f32 %v1744, %v1744
        %v1777 = vmul.f32 %v1745, %v1745
        %v1778 = vmul.f32 %v1746, %v1746
        %v1779 = vmul.f32 %v1747, %v1747
        %v1780 = vmul.f32 %v1748, %v1748
        %v1781 = vmul.f32 %v1749, %v1749
        %v1782 = vmul.f32 %v1750, %v1750
        %v1783 = vmul.f32 %v1751, %v1751
        %v1784 = vmul.f32 %v1752, %v1752
        %v1785 = vmul.f32 %v1753, %v1753
        %v1786 = vmul.f32 %v1754, %v1754
        %v1787 = vmul.f32 %v1755, %v1755
        %v1788 = vmul.f32 %v1756, %v1756
        %v1789 = vmul.f32 %v1757, %v1757
        %v1790 = vmul.f32 %v1758, %v1758
        %v1791 = vmul.f32 %v1759, %v1759
        %v1792 = vmul.f32 %v1760, %v1760
        %v1793 = vmul.f32 %v1761, %v1761
        %v1794 = vmul.f32 %v1762, %v1762
        %v1795 = vmul.f32 %v1763, %v1763
        %v1796 = vmul.f32 %v1764, %v1764
        %v1797 = vmul.f32 %v1765, %v1765
        %v1798 = vmul.f32 %v1766, %v1766
        %v1799 = vmul.f32 %v1767, %v1767
        %v1800 = vmul.f32 %v1768, %v1768
        %v1801 = vmul.f32 %v1769, %v1769
        %v1802 = vmul.f32 %v1770, %v1770
        %v1803 = vmul.f32 %v1771, %v1771
        %v1804 = vmul.f32 %v1772, %v1772
        %v1805 = vmul.f32 %v1773, %v1773
        %v1806 = vmul.f32 %v1774, %v1774
        %1807 = vadd.xlane.f32.xlu0 %v1775
        %v1808 = vpop.xlane.xlu0 %1807
        %1809 = vadd.xlane.f32.xlu0 %v1776
        %v1810 = vpop.xlane.xlu0 %1809
        %1811 = vadd.xlane.f32.xlu0 %v1777
        %v1812 = vpop.xlane.xlu0 %1811
        %1813 = vadd.xlane.f32.xlu0 %v1778
        %v1814 = vpop.xlane.xlu0 %1813
        %1815 = vadd.xlane.f32.xlu0 %v1779
        %v1816 = vpop.xlane.xlu0 %1815
        %1817 = vadd.xlane.f32.xlu0 %v1780
        %v1818 = vpop.xlane.xlu0 %1817
        %1819 = vadd.xlane.f32.xlu0 %v1781
        %v1820 = vpop.xlane.xlu0 %1819
        %1821 = vadd.xlane.f32.xlu0 %v1782
        %v1822 = vpop.xlane.xlu0 %1821
        %1823 = vadd.xlane.f32.xlu0 %v1783
        %v1824 = vpop.xlane.xlu0 %1823
        %1825 = vadd.xlane.f32.xlu0 %v1784
        %v1826 = vpop.xlane.xlu0 %1825
        %1827 = vadd.xlane.f32.xlu0 %v1785
        %v1828 = vpop.xlane.xlu0 %1827
        %1829 = vadd.xlane.f32.xlu0 %v1786
        %v1830 = vpop.xlane.xlu0 %1829
        %1831 = vadd.xlane.f32.xlu0 %v1787
        %v1832 = vpop.xlane.xlu0 %1831
        %1833 = vadd.xlane.f32.xlu0 %v1788
        %v1834 = vpop.xlane.xlu0 %1833
        %1835 = vadd.xlane.f32.xlu0 %v1789
        %v1836 = vpop.xlane.xlu0 %1835
        %1837 = vadd.xlane.f32.xlu0 %v1790
        %v1838 = vpop.xlane.xlu0 %1837
        %1839 = vadd.xlane.f32.xlu0 %v1791
        %v1840 = vpop.xlane.xlu0 %1839
        %1841 = vadd.xlane.f32.xlu0 %v1792
        %v1842 = vpop.xlane.xlu0 %1841
        %1843 = vadd.xlane.f32.xlu0 %v1793
        %v1844 = vpop.xlane.xlu0 %1843
        %1845 = vadd.xlane.f32.xlu0 %v1794
        %v1846 = vpop.xlane.xlu0 %1845
        %1847 = vadd.xlane.f32.xlu0 %v1795
        %v1848 = vpop.xlane.xlu0 %1847
        %1849 = vadd.xlane.f32.xlu0 %v1796
        %v1850 = vpop.xlane.xlu0 %1849
        %1851 = vadd.xlane.f32.xlu0 %v1797
        %v1852 = vpop.xlane.xlu0 %1851
        %1853 = vadd.xlane.f32.xlu0 %v1798
        %v1854 = vpop.xlane.xlu0 %1853
        %1855 = vadd.xlane.f32.xlu0 %v1799
        %v1856 = vpop.xlane.xlu0 %1855
        %1857 = vadd.xlane.f32.xlu0 %v1800
        %v1858 = vpop.xlane.xlu0 %1857
        %1859 = vadd.xlane.f32.xlu0 %v1801
        %v1860 = vpop.xlane.xlu0 %1859
        %1861 = vadd.xlane.f32.xlu0 %v1802
        %v1862 = vpop.xlane.xlu0 %1861
        %1863 = vadd.xlane.f32.xlu0 %v1803
        %v1864 = vpop.xlane.xlu0 %1863
        %1865 = vadd.xlane.f32.xlu0 %v1804
        %v1866 = vpop.xlane.xlu0 %1865
        %1867 = vadd.xlane.f32.xlu0 %v1805
        %v1868 = vpop.xlane.xlu0 %1867
        %1869 = vadd.xlane.f32.xlu0 %v1806
        %v1870 = vpop.xlane.xlu0 %1869
        %v1871 = vmul.f32 %v1808, %v833
        %v1872 = vmul.f32 %v1810, %v833
        %v1873 = vmul.f32 %v1812, %v833
        %v1874 = vmul.f32 %v1814, %v833
        %v1875 = vmul.f32 %v1816, %v833
        %v1876 = vmul.f32 %v1818, %v833
        %v1877 = vmul.f32 %v1820, %v833
        %v1878 = vmul.f32 %v1822, %v833
        %v1879 = vmul.f32 %v1824, %v833
        %v1880 = vmul.f32 %v1826, %v833
        %v1881 = vmul.f32 %v1828, %v833
        %v1882 = vmul.f32 %v1830, %v833
        %v1883 = vmul.f32 %v1832, %v833
        %v1884 = vmul.f32 %v1834, %v833
        %v1885 = vmul.f32 %v1836, %v833
        %v1886 = vmul.f32 %v1838, %v833
        %v1887 = vmul.f32 %v1840, %v833
        %v1888 = vmul.f32 %v1842, %v833
        %v1889 = vmul.f32 %v1844, %v833
        %v1890 = vmul.f32 %v1846, %v833
        %v1891 = vmul.f32 %v1848, %v833
        %v1892 = vmul.f32 %v1850, %v833
        %v1893 = vmul.f32 %v1852, %v833
        %v1894 = vmul.f32 %v1854, %v833
        %v1895 = vmul.f32 %v1856, %v833
        %v1896 = vmul.f32 %v1858, %v833
        %v1897 = vmul.f32 %v1860, %v833
        %v1898 = vmul.f32 %v1862, %v833
        %v1899 = vmul.f32 %v1864, %v833
        %v1900 = vmul.f32 %v1866, %v833
        %v1901 = vmul.f32 %v1868, %v833
        %v1902 = vmul.f32 %v1870, %v833
        %v1903 = vadd.f32 %v1871, 1e-05
        %v1904 = vadd.f32 %v1872, 1e-05
        %v1905 = vadd.f32 %v1873, 1e-05
        %v1906 = vadd.f32 %v1874, 1e-05
        %v1907 = vadd.f32 %v1875, 1e-05
        %v1908 = vadd.f32 %v1876, 1e-05
        %v1909 = vadd.f32 %v1877, 1e-05
        %v1910 = vadd.f32 %v1878, 1e-05
        %v1911 = vadd.f32 %v1879, 1e-05
        %v1912 = vadd.f32 %v1880, 1e-05
        %v1913 = vadd.f32 %v1881, 1e-05
        %v1914 = vadd.f32 %v1882, 1e-05
        %v1915 = vadd.f32 %v1883, 1e-05
        %v1916 = vadd.f32 %v1884, 1e-05
        %v1917 = vadd.f32 %v1885, 1e-05
        %v1918 = vadd.f32 %v1886, 1e-05
        %v1919 = vadd.f32 %v1887, 1e-05
        %v1920 = vadd.f32 %v1888, 1e-05
        %v1921 = vadd.f32 %v1889, 1e-05
        %v1922 = vadd.f32 %v1890, 1e-05
        %v1923 = vadd.f32 %v1891, 1e-05
        %v1924 = vadd.f32 %v1892, 1e-05
        %v1925 = vadd.f32 %v1893, 1e-05
        %v1926 = vadd.f32 %v1894, 1e-05
        %v1927 = vadd.f32 %v1895, 1e-05
        %v1928 = vadd.f32 %v1896, 1e-05
        %v1929 = vadd.f32 %v1897, 1e-05
        %v1930 = vadd.f32 %v1898, 1e-05
        %v1931 = vadd.f32 %v1899, 1e-05
        %v1932 = vadd.f32 %v1900, 1e-05
        %v1933 = vadd.f32 %v1901, 1e-05
        %v1934 = vadd.f32 %v1902, 1e-05
        %v1935 = vrsqrt.pop %v1903
        %v1936 = vmul.f32 %v1935, %v1903
        %v1937 = vmul.f32 %v1936, %v1935
        %v1938 = vmul.f32 0.5, %v1937
        %v1939 = vsub.f32 1.5, %v1938
        %v1940 = vmul.f32 %v1935, %v1939
        %vm1941 = vweird.f32 %v1903
        %vm1942 = vweird.f32 %v1935
        %vm1943 = vmor %vm1941, %vm1942
        %v1944 = vsel %vm1943, %v1935, %v1940
        %v1945 = vrsqrt.pop %v1904
        %v1946 = vmul.f32 %v1945, %v1904
        %v1947 = vmul.f32 %v1946, %v1945
        %v1948 = vmul.f32 0.5, %v1947
        %v1949 = vsub.f32 1.5, %v1948
        %v1950 = vmul.f32 %v1945, %v1949
        %vm1951 = vweird.f32 %v1904
        %vm1952 = vweird.f32 %v1945
        %vm1953 = vmor %vm1951, %vm1952
        %v1954 = vsel %vm1953, %v1945, %v1950
        %v1955 = vrsqrt.pop %v1905
        %v1956 = vmul.f32 %v1955, %v1905
        %v1957 = vmul.f32 %v1956, %v1955
        %v1958 = vmul.f32 0.5, %v1957
        %v1959 = vsub.f32 1.5, %v1958
        %v1960 = vmul.f32 %v1955, %v1959
        %vm1961 = vweird.f32 %v1905
        %vm1962 = vweird.f32 %v1955
        %vm1963 = vmor %vm1961, %vm1962
        %v1964 = vsel %vm1963, %v1955, %v1960
        %v1965 = vrsqrt.pop %v1906
        %v1966 = vmul.f32 %v1965, %v1906
        %v1967 = vmul.f32 %v1966, %v1965
        %v1968 = vmul.f32 0.5, %v1967
        %v1969 = vsub.f32 1.5, %v1968
        %v1970 = vmul.f32 %v1965, %v1969
        %vm1971 = vweird.f32 %v1906
        %vm1972 = vweird.f32 %v1965
        %vm1973 = vmor %vm1971, %vm1972
        %v1974 = vsel %vm1973, %v1965, %v1970
        %v1975 = vrsqrt.pop %v1907
        %v1976 = vmul.f32 %v1975, %v1907
        %v1977 = vmul.f32 %v1976, %v1975
        %v1978 = vmul.f32 0.5, %v1977
        %v1979 = vsub.f32 1.5, %v1978
        %v1980 = vmul.f32 %v1975, %v1979
        %vm1981 = vweird.f32 %v1907
        %vm1982 = vweird.f32 %v1975
        %vm1983 = vmor %vm1981, %vm1982
        %v1984 = vsel %vm1983, %v1975, %v1980
        %v1985 = vrsqrt.pop %v1908
        %v1986 = vmul.f32 %v1985, %v1908
        %v1987 = vmul.f32 %v1986, %v1985
        %v1988 = vmul.f32 0.5, %v1987
        %v1989 = vsub.f32 1.5, %v1988
        %v1990 = vmul.f32 %v1985, %v1989
        %vm1991 = vweird.f32 %v1908
        %vm1992 = vweird.f32 %v1985
        %vm1993 = vmor %vm1991, %vm1992
        %v1994 = vsel %vm1993, %v1985, %v1990
        %v1995 = vrsqrt.pop %v1909
        %v1996 = vmul.f32 %v1995, %v1909
        %v1997 = vmul.f32 %v1996, %v1995
        %v1998 = vmul.f32 0.5, %v1997
        %v1999 = vsub.f32 1.5, %v1998
        %v2000 = vmul.f32 %v1995, %v1999
        %vm2001 = vweird.f32 %v1909
        %vm2002 = vweird.f32 %v1995
        %vm2003 = vmor %vm2001, %vm2002
        %v2004 = vsel %vm2003, %v1995, %v2000
        %v2005 = vrsqrt.pop %v1910
        %v2006 = vmul.f32 %v2005, %v1910
        %v2007 = vmul.f32 %v2006, %v2005
        %v2008 = vmul.f32 0.5, %v2007
        %v2009 = vsub.f32 1.5, %v2008
        %v2010 = vmul.f32 %v2005, %v2009
        %vm2011 = vweird.f32 %v1910
        %vm2012 = vweird.f32 %v2005
        %vm2013 = vmor %vm2011, %vm2012
        %v2014 = vsel %vm2013, %v2005, %v2010
        %v2015 = vrsqrt.pop %v1911
        %v2016 = vmul.f32 %v2015, %v1911
        %v2017 = vmul.f32 %v2016, %v2015
        %v2018 = vmul.f32 0.5, %v2017
        %v2019 = vsub.f32 1.5, %v2018
        %v2020 = vmul.f32 %v2015, %v2019
        %vm2021 = vweird.f32 %v1911
        %vm2022 = vweird.f32 %v2015
        %vm2023 = vmor %vm2021, %vm2022
        %v2024 = vsel %vm2023, %v2015, %v2020
        %v2025 = vrsqrt.pop %v1912
        %v2026 = vmul.f32 %v2025, %v1912
        %v2027 = vmul.f32 %v2026, %v2025
        %v2028 = vmul.f32 0.5, %v2027
        %v2029 = vsub.f32 1.5, %v2028
        %v2030 = vmul.f32 %v2025, %v2029
        %vm2031 = vweird.f32 %v1912
        %vm2032 = vweird.f32 %v2025
        %vm2033 = vmor %vm2031, %vm2032
        %v2034 = vsel %vm2033, %v2025, %v2030
        %v2035 = vrsqrt.pop %v1913
        %v2036 = vmul.f32 %v2035, %v1913
        %v2037 = vmul.f32 %v2036, %v2035
        %v2038 = vmul.f32 0.5, %v2037
        %v2039 = vsub.f32 1.5, %v2038
        %v2040 = vmul.f32 %v2035, %v2039
        %vm2041 = vweird.f32 %v1913
        %vm2042 = vweird.f32 %v2035
        %vm2043 = vmor %vm2041, %vm2042
        %v2044 = vsel %vm2043, %v2035, %v2040
        %v2045 = vrsqrt.pop %v1914
        %v2046 = vmul.f32 %v2045, %v1914
        %v2047 = vmul.f32 %v2046, %v2045
        %v2048 = vmul.f32 0.5, %v2047
        %v2049 = vsub.f32 1.5, %v2048
        %v2050 = vmul.f32 %v2045, %v2049
        %vm2051 = vweird.f32 %v1914
        %vm2052 = vweird.f32 %v2045
        %vm2053 = vmor %vm2051, %vm2052
        %v2054 = vsel %vm2053, %v2045, %v2050
        %v2055 = vrsqrt.pop %v1915
        %v2056 = vmul.f32 %v2055, %v1915
        %v2057 = vmul.f32 %v2056, %v2055
        %v2058 = vmul.f32 0.5, %v2057
        %v2059 = vsub.f32 1.5, %v2058
        %v2060 = vmul.f32 %v2055, %v2059
        %vm2061 = vweird.f32 %v1915
        %vm2062 = vweird.f32 %v2055
        %vm2063 = vmor %vm2061, %vm2062
        %v2064 = vsel %vm2063, %v2055, %v2060
        %v2065 = vrsqrt.pop %v1916
        %v2066 = vmul.f32 %v2065, %v1916
        %v2067 = vmul.f32 %v2066, %v2065
        %v2068 = vmul.f32 0.5, %v2067
        %v2069 = vsub.f32 1.5, %v2068
        %v2070 = vmul.f32 %v2065, %v2069
        %vm2071 = vweird.f32 %v1916
        %vm2072 = vweird.f32 %v2065
        %vm2073 = vmor %vm2071, %vm2072
        %v2074 = vsel %vm2073, %v2065, %v2070
        %v2075 = vrsqrt.pop %v1917
        %v2076 = vmul.f32 %v2075, %v1917
        %v2077 = vmul.f32 %v2076, %v2075
        %v2078 = vmul.f32 0.5, %v2077
        %v2079 = vsub.f32 1.5, %v2078
        %v2080 = vmul.f32 %v2075, %v2079
        %vm2081 = vweird.f32 %v1917
        %vm2082 = vweird.f32 %v2075
        %vm2083 = vmor %vm2081, %vm2082
        %v2084 = vsel %vm2083, %v2075, %v2080
        %v2085 = vrsqrt.pop %v1918
        %v2086 = vmul.f32 %v2085, %v1918
        %v2087 = vmul.f32 %v2086, %v2085
        %v2088 = vmul.f32 0.5, %v2087
        %v2089 = vsub.f32 1.5, %v2088
        %v2090 = vmul.f32 %v2085, %v2089
        %vm2091 = vweird.f32 %v1918
        %vm2092 = vweird.f32 %v2085
        %vm2093 = vmor %vm2091, %vm2092
        %v2094 = vsel %vm2093, %v2085, %v2090
        %v2095 = vrsqrt.pop %v1919
        %v2096 = vmul.f32 %v2095, %v1919
        %v2097 = vmul.f32 %v2096, %v2095
        %v2098 = vmul.f32 0.5, %v2097
        %v2099 = vsub.f32 1.5, %v2098
        %v2100 = vmul.f32 %v2095, %v2099
        %vm2101 = vweird.f32 %v1919
        %vm2102 = vweird.f32 %v2095
        %vm2103 = vmor %vm2101, %vm2102
        %v2104 = vsel %vm2103, %v2095, %v2100
        %v2105 = vrsqrt.pop %v1920
        %v2106 = vmul.f32 %v2105, %v1920
        %v2107 = vmul.f32 %v2106, %v2105
        %v2108 = vmul.f32 0.5, %v2107
        %v2109 = vsub.f32 1.5, %v2108
        %v2110 = vmul.f32 %v2105, %v2109
        %vm2111 = vweird.f32 %v1920
        %vm2112 = vweird.f32 %v2105
        %vm2113 = vmor %vm2111, %vm2112
        %v2114 = vsel %vm2113, %v2105, %v2110
        %v2115 = vrsqrt.pop %v1921
        %v2116 = vmul.f32 %v2115, %v1921
        %v2117 = vmul.f32 %v2116, %v2115
        %v2118 = vmul.f32 0.5, %v2117
        %v2119 = vsub.f32 1.5, %v2118
        %v2120 = vmul.f32 %v2115, %v2119
        %vm2121 = vweird.f32 %v1921
        %vm2122 = vweird.f32 %v2115
        %vm2123 = vmor %vm2121, %vm2122
        %v2124 = vsel %vm2123, %v2115, %v2120
        %v2125 = vrsqrt.pop %v1922
        %v2126 = vmul.f32 %v2125, %v1922
        %v2127 = vmul.f32 %v2126, %v2125
        %v2128 = vmul.f32 0.5, %v2127
        %v2129 = vsub.f32 1.5, %v2128
        %v2130 = vmul.f32 %v2125, %v2129
        %vm2131 = vweird.f32 %v1922
        %vm2132 = vweird.f32 %v2125
        %vm2133 = vmor %vm2131, %vm2132
        %v2134 = vsel %vm2133, %v2125, %v2130
        %v2135 = vrsqrt.pop %v1923
        %v2136 = vmul.f32 %v2135, %v1923
        %v2137 = vmul.f32 %v2136, %v2135
        %v2138 = vmul.f32 0.5, %v2137
        %v2139 = vsub.f32 1.5, %v2138
        %v2140 = vmul.f32 %v2135, %v2139
        %vm2141 = vweird.f32 %v1923
        %vm2142 = vweird.f32 %v2135
        %vm2143 = vmor %vm2141, %vm2142
        %v2144 = vsel %vm2143, %v2135, %v2140
        %v2145 = vrsqrt.pop %v1924
        %v2146 = vmul.f32 %v2145, %v1924
        %v2147 = vmul.f32 %v2146, %v2145
        %v2148 = vmul.f32 0.5, %v2147
        %v2149 = vsub.f32 1.5, %v2148
        %v2150 = vmul.f32 %v2145, %v2149
        %vm2151 = vweird.f32 %v1924
        %vm2152 = vweird.f32 %v2145
        %vm2153 = vmor %vm2151, %vm2152
        %v2154 = vsel %vm2153, %v2145, %v2150
        %v2155 = vrsqrt.pop %v1925
        %v2156 = vmul.f32 %v2155, %v1925
        %v2157 = vmul.f32 %v2156, %v2155
        %v2158 = vmul.f32 0.5, %v2157
        %v2159 = vsub.f32 1.5, %v2158
        %v2160 = vmul.f32 %v2155, %v2159
        %vm2161 = vweird.f32 %v1925
        %vm2162 = vweird.f32 %v2155
        %vm2163 = vmor %vm2161, %vm2162
        %v2164 = vsel %vm2163, %v2155, %v2160
        %v2165 = vrsqrt.pop %v1926
        %v2166 = vmul.f32 %v2165, %v1926
        %v2167 = vmul.f32 %v2166, %v2165
        %v2168 = vmul.f32 0.5, %v2167
        %v2169 = vsub.f32 1.5, %v2168
        %v2170 = vmul.f32 %v2165, %v2169
        %vm2171 = vweird.f32 %v1926
        %vm2172 = vweird.f32 %v2165
        %vm2173 = vmor %vm2171, %vm2172
        %v2174 = vsel %vm2173, %v2165, %v2170
        %v2175 = vrsqrt.pop %v1927
        %v2176 = vmul.f32 %v2175, %v1927
        %v2177 = vmul.f32 %v2176, %v2175
        %v2178 = vmul.f32 0.5, %v2177
        %v2179 = vsub.f32 1.5, %v2178
        %v2180 = vmul.f32 %v2175, %v2179
        %vm2181 = vweird.f32 %v1927
        %vm2182 = vweird.f32 %v2175
        %vm2183 = vmor %vm2181, %vm2182
        %v2184 = vsel %vm2183, %v2175, %v2180
        %v2185 = vrsqrt.pop %v1928
        %v2186 = vmul.f32 %v2185, %v1928
        %v2187 = vmul.f32 %v2186, %v2185
        %v2188 = vmul.f32 0.5, %v2187
        %v2189 = vsub.f32 1.5, %v2188
        %v2190 = vmul.f32 %v2185, %v2189
        %vm2191 = vweird.f32 %v1928
        %vm2192 = vweird.f32 %v2185
        %vm2193 = vmor %vm2191, %vm2192
        %v2194 = vsel %vm2193, %v2185, %v2190
        %v2195 = vrsqrt.pop %v1929
        %v2196 = vmul.f32 %v2195, %v1929
        %v2197 = vmul.f32 %v2196, %v2195
        %v2198 = vmul.f32 0.5, %v2197
        %v2199 = vsub.f32 1.5, %v2198
        %v2200 = vmul.f32 %v2195, %v2199
        %vm2201 = vweird.f32 %v1929
        %vm2202 = vweird.f32 %v2195
        %vm2203 = vmor %vm2201, %vm2202
        %v2204 = vsel %vm2203, %v2195, %v2200
        %v2205 = vrsqrt.pop %v1930
        %v2206 = vmul.f32 %v2205, %v1930
        %v2207 = vmul.f32 %v2206, %v2205
        %v2208 = vmul.f32 0.5, %v2207
        %v2209 = vsub.f32 1.5, %v2208
        %v2210 = vmul.f32 %v2205, %v2209
        %vm2211 = vweird.f32 %v1930
        %vm2212 = vweird.f32 %v2205
        %vm2213 = vmor %vm2211, %vm2212
        %v2214 = vsel %vm2213, %v2205, %v2210
        %v2215 = vrsqrt.pop %v1931
        %v2216 = vmul.f32 %v2215, %v1931
        %v2217 = vmul.f32 %v2216, %v2215
        %v2218 = vmul.f32 0.5, %v2217
        %v2219 = vsub.f32 1.5, %v2218
        %v2220 = vmul.f32 %v2215, %v2219
        %vm2221 = vweird.f32 %v1931
        %vm2222 = vweird.f32 %v2215
        %vm2223 = vmor %vm2221, %vm2222
        %v2224 = vsel %vm2223, %v2215, %v2220
        %v2225 = vrsqrt.pop %v1932
        %v2226 = vmul.f32 %v2225, %v1932
        %v2227 = vmul.f32 %v2226, %v2225
        %v2228 = vmul.f32 0.5, %v2227
        %v2229 = vsub.f32 1.5, %v2228
        %v2230 = vmul.f32 %v2225, %v2229
        %vm2231 = vweird.f32 %v1932
        %vm2232 = vweird.f32 %v2225
        %vm2233 = vmor %vm2231, %vm2232
        %v2234 = vsel %vm2233, %v2225, %v2230
        %v2235 = vrsqrt.pop %v1933
        %v2236 = vmul.f32 %v2235, %v1933
        %v2237 = vmul.f32 %v2236, %v2235
        %v2238 = vmul.f32 0.5, %v2237
        %v2239 = vsub.f32 1.5, %v2238
        %v2240 = vmul.f32 %v2235, %v2239
        %vm2241 = vweird.f32 %v1933
        %vm2242 = vweird.f32 %v2235
        %vm2243 = vmor %vm2241, %vm2242
        %v2244 = vsel %vm2243, %v2235, %v2240
        %v2245 = vrsqrt.pop %v1934
        %v2246 = vmul.f32 %v2245, %v1934
        %v2247 = vmul.f32 %v2246, %v2245
        %v2248 = vmul.f32 0.5, %v2247
        %v2249 = vsub.f32 1.5, %v2248
        %v2250 = vmul.f32 %v2245, %v2249
        %vm2251 = vweird.f32 %v1934
        %vm2252 = vweird.f32 %v2245
        %vm2253 = vmor %vm2251, %vm2252
        %v2254 = vsel %vm2253, %v2245, %v2250
        %v2255 = vmul.f32 %v1743, %v1944
        %v2256 = vmul.f32 %v1744, %v1954
        %v2257 = vmul.f32 %v1745, %v1964
        %v2258 = vmul.f32 %v1746, %v1974
        %v2259 = vmul.f32 %v1747, %v1984
        %v2260 = vmul.f32 %v1748, %v1994
        %v2261 = vmul.f32 %v1749, %v2004
        %v2262 = vmul.f32 %v1750, %v2014
        %v2263 = vmul.f32 %v1751, %v2024
        %v2264 = vmul.f32 %v1752, %v2034
        %v2265 = vmul.f32 %v1753, %v2044
        %v2266 = vmul.f32 %v1754, %v2054
        %v2267 = vmul.f32 %v1755, %v2064
        %v2268 = vmul.f32 %v1756, %v2074
        %v2269 = vmul.f32 %v1757, %v2084
        %v2270 = vmul.f32 %v1758, %v2094
        %v2271 = vmul.f32 %v1759, %v2104
        %v2272 = vmul.f32 %v1760, %v2114
        %v2273 = vmul.f32 %v1761, %v2124
        %v2274 = vmul.f32 %v1762, %v2134
        %v2275 = vmul.f32 %v1763, %v2144
        %v2276 = vmul.f32 %v1764, %v2154
        %v2277 = vmul.f32 %v1765, %v2164
        %v2278 = vmul.f32 %v1766, %v2174
        %v2279 = vmul.f32 %v1767, %v2184
        %v2280 = vmul.f32 %v1768, %v2194
        %v2281 = vmul.f32 %v1769, %v2204
        %v2282 = vmul.f32 %v1770, %v2214
        %v2283 = vmul.f32 %v1771, %v2224
        %v2284 = vmul.f32 %v1772, %v2234
        %v2285 = vmul.f32 %v1773, %v2244
        %v2286 = vmul.f32 %v1774, %v2254
        %v2288 = vperm.slane %v1645, 0
        %v2290 = vmul.f32 %v2255, %v2288
        %v2291 = vmul.f32 %v2256, %v2288
        %v2292 = vmul.f32 %v2257, %v2288
        %v2293 = vmul.f32 %v2258, %v2288
        %v2294 = vmul.f32 %v2259, %v2288
        %v2295 = vmul.f32 %v2260, %v2288
        %v2296 = vmul.f32 %v2261, %v2288
        %v2297 = vmul.f32 %v2262, %v2288
        %v2298 = vmul.f32 %v2263, %v2288
        %v2299 = vmul.f32 %v2264, %v2288
        %v2300 = vmul.f32 %v2265, %v2288
        %v2301 = vmul.f32 %v2266, %v2288
        %v2302 = vmul.f32 %v2267, %v2288
        %v2303 = vmul.f32 %v2268, %v2288
        %v2304 = vmul.f32 %v2269, %v2288
        %v2305 = vmul.f32 %v2270, %v2288
        %v2306 = vmul.f32 %v2271, %v2288
        %v2307 = vmul.f32 %v2272, %v2288
        %v2308 = vmul.f32 %v2273, %v2288
        %v2309 = vmul.f32 %v2274, %v2288
        %v2310 = vmul.f32 %v2275, %v2288
        %v2311 = vmul.f32 %v2276, %v2288
        %v2312 = vmul.f32 %v2277, %v2288
        %v2313 = vmul.f32 %v2278, %v2288
        %v2314 = vmul.f32 %v2279, %v2288
        %v2315 = vmul.f32 %v2280, %v2288
        %v2316 = vmul.f32 %v2281, %v2288
        %v2317 = vmul.f32 %v2282, %v2288
        %v2318 = vmul.f32 %v2283, %v2288
        %v2319 = vmul.f32 %v2284, %v2288
        %v2320 = vmul.f32 %v2285, %v2288
        %v2321 = vmul.f32 %v2286, %v2288
        %v2323 = vperm.slane %v1646, 0
        %v2325 = vadd.f32 %v2290, %v2323
        %v2326 = vadd.f32 %v2291, %v2323
        %v2327 = vadd.f32 %v2292, %v2323
        %v2328 = vadd.f32 %v2293, %v2323
        %v2329 = vadd.f32 %v2294, %v2323
        %v2330 = vadd.f32 %v2295, %v2323
        %v2331 = vadd.f32 %v2296, %v2323
        %v2332 = vadd.f32 %v2297, %v2323
        %v2333 = vadd.f32 %v2298, %v2323
        %v2334 = vadd.f32 %v2299, %v2323
        %v2335 = vadd.f32 %v2300, %v2323
        %v2336 = vadd.f32 %v2301, %v2323
        %v2337 = vadd.f32 %v2302, %v2323
        %v2338 = vadd.f32 %v2303, %v2323
        %v2339 = vadd.f32 %v2304, %v2323
        %v2340 = vadd.f32 %v2305, %v2323
        %v2341 = vadd.f32 %v2306, %v2323
        %v2342 = vadd.f32 %v2307, %v2323
        %v2343 = vadd.f32 %v2308, %v2323
        %v2344 = vadd.f32 %v2309, %v2323
        %v2345 = vadd.f32 %v2310, %v2323
        %v2346 = vadd.f32 %v2311, %v2323
        %v2347 = vadd.f32 %v2312, %v2323
        %v2348 = vadd.f32 %v2313, %v2323
        %v2349 = vadd.f32 %v2314, %v2323
        %v2350 = vadd.f32 %v2315, %v2323
        %v2351 = vadd.f32 %v2316, %v2323
        %v2352 = vadd.f32 %v2317, %v2323
        %v2353 = vadd.f32 %v2318, %v2323
        %v2354 = vadd.f32 %v2319, %v2323
        %v2355 = vadd.f32 %v2320, %v2323
        %v2356 = vadd.f32 %v2321, %v2323
        %v2357 = vtanh.pop %v2325
        %v2358 = vtanh.pop %v2326
        %v2359 = vtanh.pop %v2327
        %v2360 = vtanh.pop %v2328
        %v2361 = vtanh.pop %v2329
        %v2362 = vtanh.pop %v2330
        %v2363 = vtanh.pop %v2331
        %v2364 = vtanh.pop %v2332
        %v2365 = vtanh.pop %v2333
        %v2366 = vtanh.pop %v2334
        %v2367 = vtanh.pop %v2335
        %v2368 = vtanh.pop %v2336
        %v2369 = vtanh.pop %v2337
        %v2370 = vtanh.pop %v2338
        %v2371 = vtanh.pop %v2339
        %v2372 = vtanh.pop %v2340
        %v2373 = vtanh.pop %v2341
        %v2374 = vtanh.pop %v2342
        %v2375 = vtanh.pop %v2343
        %v2376 = vtanh.pop %v2344
        %v2377 = vtanh.pop %v2345
        %v2378 = vtanh.pop %v2346
        %v2379 = vtanh.pop %v2347
        %v2380 = vtanh.pop %v2348
        %v2381 = vtanh.pop %v2349
        %v2382 = vtanh.pop %v2350
        %v2383 = vtanh.pop %v2351
        %v2384 = vtanh.pop %v2352
        %v2385 = vtanh.pop %v2353
        %v2386 = vtanh.pop %v2354
        %v2387 = vtanh.pop %v2355
        %v2388 = vtanh.pop %v2356
        %v2389 = vld [vmem:[%s10] sm:$0x1]
        %v2391 = vperm.slane %v2389, 0
        %v2393 = vmul.f32 %v2357, %v2391
        %v2394 = vmul.f32 %v2358, %v2391
        %v2395 = vmul.f32 %v2359, %v2391
        %v2396 = vmul.f32 %v2360, %v2391
        %v2397 = vmul.f32 %v2361, %v2391
        %v2398 = vmul.f32 %v2362, %v2391
        %v2399 = vmul.f32 %v2363, %v2391
        %v2400 = vmul.f32 %v2364, %v2391
        %v2401 = vmul.f32 %v2365, %v2391
        %v2402 = vmul.f32 %v2366, %v2391
        %v2403 = vmul.f32 %v2367, %v2391
        %v2404 = vmul.f32 %v2368, %v2391
        %v2405 = vmul.f32 %v2369, %v2391
        %v2406 = vmul.f32 %v2370, %v2391
        %v2407 = vmul.f32 %v2371, %v2391
        %v2408 = vmul.f32 %v2372, %v2391
        %v2409 = vmul.f32 %v2373, %v2391
        %v2410 = vmul.f32 %v2374, %v2391
        %v2411 = vmul.f32 %v2375, %v2391
        %v2412 = vmul.f32 %v2376, %v2391
        %v2413 = vmul.f32 %v2377, %v2391
        %v2414 = vmul.f32 %v2378, %v2391
        %v2415 = vmul.f32 %v2379, %v2391
        %v2416 = vmul.f32 %v2380, %v2391
        %v2417 = vmul.f32 %v2381, %v2391
        %v2418 = vmul.f32 %v2382, %v2391
        %v2419 = vmul.f32 %v2383, %v2391
        %v2420 = vmul.f32 %v2384, %v2391
        %v2421 = vmul.f32 %v2385, %v2391
        %v2422 = vmul.f32 %v2386, %v2391
        %v2423 = vmul.f32 %v2387, %v2391
        %v2424 = vmul.f32 %v2388, %v2391
        %2425 = vadd.xlane.f32.xlu0 %v2393
        %v2426 = vpop.xlane.xlu0 %2425
        %2427 = vadd.xlane.f32.xlu0 %v2394
        %v2428 = vpop.xlane.xlu0 %2427
        %2429 = vadd.xlane.f32.xlu0 %v2395
        %v2430 = vpop.xlane.xlu0 %2429
        %2431 = vadd.xlane.f32.xlu0 %v2396
        %v2432 = vpop.xlane.xlu0 %2431
        %2433 = vadd.xlane.f32.xlu0 %v2397
        %v2434 = vpop.xlane.xlu0 %2433
        %2435 = vadd.xlane.f32.xlu0 %v2398
        %v2436 = vpop.xlane.xlu0 %2435
        %2437 = vadd.xlane.f32.xlu0 %v2399
        %v2438 = vpop.xlane.xlu0 %2437
        %2439 = vadd.xlane.f32.xlu0 %v2400
        %v2440 = vpop.xlane.xlu0 %2439
        %2441 = vadd.xlane.f32.xlu0 %v2401
        %v2442 = vpop.xlane.xlu0 %2441
        %2443 = vadd.xlane.f32.xlu0 %v2402
        %v2444 = vpop.xlane.xlu0 %2443
        %2445 = vadd.xlane.f32.xlu0 %v2403
        %v2446 = vpop.xlane.xlu0 %2445
        %2447 = vadd.xlane.f32.xlu0 %v2404
        %v2448 = vpop.xlane.xlu0 %2447
        %2449 = vadd.xlane.f32.xlu0 %v2405
        %v2450 = vpop.xlane.xlu0 %2449
        %2451 = vadd.xlane.f32.xlu0 %v2406
        %v2452 = vpop.xlane.xlu0 %2451
        %2453 = vadd.xlane.f32.xlu0 %v2407
        %v2454 = vpop.xlane.xlu0 %2453
        %2455 = vadd.xlane.f32.xlu0 %v2408
        %v2456 = vpop.xlane.xlu0 %2455
        %2457 = vadd.xlane.f32.xlu0 %v2409
        %v2458 = vpop.xlane.xlu0 %2457
        %2459 = vadd.xlane.f32.xlu0 %v2410
        %v2460 = vpop.xlane.xlu0 %2459
        %2461 = vadd.xlane.f32.xlu0 %v2411
        %v2462 = vpop.xlane.xlu0 %2461
        %2463 = vadd.xlane.f32.xlu0 %v2412
        %v2464 = vpop.xlane.xlu0 %2463
        %2465 = vadd.xlane.f32.xlu0 %v2413
        %v2466 = vpop.xlane.xlu0 %2465
        %2467 = vadd.xlane.f32.xlu0 %v2414
        %v2468 = vpop.xlane.xlu0 %2467
        %2469 = vadd.xlane.f32.xlu0 %v2415
        %v2470 = vpop.xlane.xlu0 %2469
        %2471 = vadd.xlane.f32.xlu0 %v2416
        %v2472 = vpop.xlane.xlu0 %2471
        %2473 = vadd.xlane.f32.xlu0 %v2417
        %v2474 = vpop.xlane.xlu0 %2473
        %2475 = vadd.xlane.f32.xlu0 %v2418
        %v2476 = vpop.xlane.xlu0 %2475
        %2477 = vadd.xlane.f32.xlu0 %v2419
        %v2478 = vpop.xlane.xlu0 %2477
        %2479 = vadd.xlane.f32.xlu0 %v2420
        %v2480 = vpop.xlane.xlu0 %2479
        %2481 = vadd.xlane.f32.xlu0 %v2421
        %v2482 = vpop.xlane.xlu0 %2481
        %2483 = vadd.xlane.f32.xlu0 %v2422
        %v2484 = vpop.xlane.xlu0 %2483
        %2485 = vadd.xlane.f32.xlu0 %v2423
        %v2486 = vpop.xlane.xlu0 %2485
        %2487 = vadd.xlane.f32.xlu0 %v2424
        %v2488 = vpop.xlane.xlu0 %2487
        %s2489 = sld [smem:[#allocation2]]
        %v2490 = vstv %s2489
        %v2491 = vadd.f32 %v2426, %v2490
        %v2492 = vadd.f32 %v2428, %v2490
        %v2493 = vadd.f32 %v2430, %v2490
        %v2494 = vadd.f32 %v2432, %v2490
        %v2495 = vadd.f32 %v2434, %v2490
        %v2496 = vadd.f32 %v2436, %v2490
        %v2497 = vadd.f32 %v2438, %v2490
        %v2498 = vadd.f32 %v2440, %v2490
        %v2499 = vadd.f32 %v2442, %v2490
        %v2500 = vadd.f32 %v2444, %v2490
        %v2501 = vadd.f32 %v2446, %v2490
        %v2502 = vadd.f32 %v2448, %v2490
        %v2503 = vadd.f32 %v2450, %v2490
        %v2504 = vadd.f32 %v2452, %v2490
        %v2505 = vadd.f32 %v2454, %v2490
        %v2506 = vadd.f32 %v2456, %v2490
        %v2507 = vadd.f32 %v2458, %v2490
        %v2508 = vadd.f32 %v2460, %v2490
        %v2509 = vadd.f32 %v2462, %v2490
        %v2510 = vadd.f32 %v2464, %v2490
        %v2511 = vadd.f32 %v2466, %v2490
        %v2512 = vadd.f32 %v2468, %v2490
        %v2513 = vadd.f32 %v2470, %v2490
        %v2514 = vadd.f32 %v2472, %v2490
        %v2515 = vadd.f32 %v2474, %v2490
        %v2516 = vadd.f32 %v2476, %v2490
        %v2517 = vadd.f32 %v2478, %v2490
        %v2518 = vadd.f32 %v2480, %v2490
        %v2519 = vadd.f32 %v2482, %v2490
        %v2520 = vadd.f32 %v2484, %v2490
        %v2521 = vadd.f32 %v2486, %v2490
        %v2522 = vadd.f32 %v2488, %v2490
        %v2523 = vld [vmem:[%s11] sm:$0x1]
        %v2525 = vperm.slane %v2523, 0
        %v2527 = vmul.f32 %v2357, %v2525
        %v2528 = vmul.f32 %v2358, %v2525
        %v2529 = vmul.f32 %v2359, %v2525
        %v2530 = vmul.f32 %v2360, %v2525
        %v2531 = vmul.f32 %v2361, %v2525
        %v2532 = vmul.f32 %v2362, %v2525
        %v2533 = vmul.f32 %v2363, %v2525
        %v2534 = vmul.f32 %v2364, %v2525
        %v2535 = vmul.f32 %v2365, %v2525
        %v2536 = vmul.f32 %v2366, %v2525
        %v2537 = vmul.f32 %v2367, %v2525
        %v2538 = vmul.f32 %v2368, %v2525
        %v2539 = vmul.f32 %v2369, %v2525
        %v2540 = vmul.f32 %v2370, %v2525
        %v2541 = vmul.f32 %v2371, %v2525
        %v2542 = vmul.f32 %v2372, %v2525
        %v2543 = vmul.f32 %v2373, %v2525
        %v2544 = vmul.f32 %v2374, %v2525
        %v2545 = vmul.f32 %v2375, %v2525
        %v2546 = vmul.f32 %v2376, %v2525
        %v2547 = vmul.f32 %v2377, %v2525
        %v2548 = vmul.f32 %v2378, %v2525
        %v2549 = vmul.f32 %v2379, %v2525
        %v2550 = vmul.f32 %v2380, %v2525
        %v2551 = vmul.f32 %v2381, %v2525
        %v2552 = vmul.f32 %v2382, %v2525
        %v2553 = vmul.f32 %v2383, %v2525
        %v2554 = vmul.f32 %v2384, %v2525
        %v2555 = vmul.f32 %v2385, %v2525
        %v2556 = vmul.f32 %v2386, %v2525
        %v2557 = vmul.f32 %v2387, %v2525
        %v2558 = vmul.f32 %v2388, %v2525
        %2559 = vadd.xlane.f32.xlu0 %v2527
        %v2560 = vpop.xlane.xlu0 %2559
        %2561 = vadd.xlane.f32.xlu0 %v2528
        %v2562 = vpop.xlane.xlu0 %2561
        %2563 = vadd.xlane.f32.xlu0 %v2529
        %v2564 = vpop.xlane.xlu0 %2563
        %2565 = vadd.xlane.f32.xlu0 %v2530
        %v2566 = vpop.xlane.xlu0 %2565
        %2567 = vadd.xlane.f32.xlu0 %v2531
        %v2568 = vpop.xlane.xlu0 %2567
        %2569 = vadd.xlane.f32.xlu0 %v2532
        %v2570 = vpop.xlane.xlu0 %2569
        %2571 = vadd.xlane.f32.xlu0 %v2533
        %v2572 = vpop.xlane.xlu0 %2571
        %2573 = vadd.xlane.f32.xlu0 %v2534
        %v2574 = vpop.xlane.xlu0 %2573
        %2575 = vadd.xlane.f32.xlu0 %v2535
        %v2576 = vpop.xlane.xlu0 %2575
        %2577 = vadd.xlane.f32.xlu0 %v2536
        %v2578 = vpop.xlane.xlu0 %2577
        %2579 = vadd.xlane.f32.xlu0 %v2537
        %v2580 = vpop.xlane.xlu0 %2579
        %2581 = vadd.xlane.f32.xlu0 %v2538
        %v2582 = vpop.xlane.xlu0 %2581
        %2583 = vadd.xlane.f32.xlu0 %v2539
        %v2584 = vpop.xlane.xlu0 %2583
        %2585 = vadd.xlane.f32.xlu0 %v2540
        %v2586 = vpop.xlane.xlu0 %2585
        %2587 = vadd.xlane.f32.xlu0 %v2541
        %v2588 = vpop.xlane.xlu0 %2587
        %2589 = vadd.xlane.f32.xlu0 %v2542
        %v2590 = vpop.xlane.xlu0 %2589
        %2591 = vadd.xlane.f32.xlu0 %v2543
        %v2592 = vpop.xlane.xlu0 %2591
        %2593 = vadd.xlane.f32.xlu0 %v2544
        %v2594 = vpop.xlane.xlu0 %2593
        %2595 = vadd.xlane.f32.xlu0 %v2545
        %v2596 = vpop.xlane.xlu0 %2595
        %2597 = vadd.xlane.f32.xlu0 %v2546
        %v2598 = vpop.xlane.xlu0 %2597
        %2599 = vadd.xlane.f32.xlu0 %v2547
        %v2600 = vpop.xlane.xlu0 %2599
        %2601 = vadd.xlane.f32.xlu0 %v2548
        %v2602 = vpop.xlane.xlu0 %2601
        %2603 = vadd.xlane.f32.xlu0 %v2549
        %v2604 = vpop.xlane.xlu0 %2603
        %2605 = vadd.xlane.f32.xlu0 %v2550
        %v2606 = vpop.xlane.xlu0 %2605
        %2607 = vadd.xlane.f32.xlu0 %v2551
        %v2608 = vpop.xlane.xlu0 %2607
        %2609 = vadd.xlane.f32.xlu0 %v2552
        %v2610 = vpop.xlane.xlu0 %2609
        %2611 = vadd.xlane.f32.xlu0 %v2553
        %v2612 = vpop.xlane.xlu0 %2611
        %2613 = vadd.xlane.f32.xlu0 %v2554
        %v2614 = vpop.xlane.xlu0 %2613
        %2615 = vadd.xlane.f32.xlu0 %v2555
        %v2616 = vpop.xlane.xlu0 %2615
        %2617 = vadd.xlane.f32.xlu0 %v2556
        %v2618 = vpop.xlane.xlu0 %2617
        %2619 = vadd.xlane.f32.xlu0 %v2557
        %v2620 = vpop.xlane.xlu0 %2619
        %2621 = vadd.xlane.f32.xlu0 %v2558
        %v2622 = vpop.xlane.xlu0 %2621
        %s2623 = sld [smem:[#allocation2 + $0x1]]
        %v2624 = vstv %s2623
        %v2625 = vadd.f32 %v2560, %v2624
        %v2626 = vadd.f32 %v2562, %v2624
        %v2627 = vadd.f32 %v2564, %v2624
        %v2628 = vadd.f32 %v2566, %v2624
        %v2629 = vadd.f32 %v2568, %v2624
        %v2630 = vadd.f32 %v2570, %v2624
        %v2631 = vadd.f32 %v2572, %v2624
        %v2632 = vadd.f32 %v2574, %v2624
        %v2633 = vadd.f32 %v2576, %v2624
        %v2634 = vadd.f32 %v2578, %v2624
        %v2635 = vadd.f32 %v2580, %v2624
        %v2636 = vadd.f32 %v2582, %v2624
        %v2637 = vadd.f32 %v2584, %v2624
        %v2638 = vadd.f32 %v2586, %v2624
        %v2639 = vadd.f32 %v2588, %v2624
        %v2640 = vadd.f32 %v2590, %v2624
        %v2641 = vadd.f32 %v2592, %v2624
        %v2642 = vadd.f32 %v2594, %v2624
        %v2643 = vadd.f32 %v2596, %v2624
        %v2644 = vadd.f32 %v2598, %v2624
        %v2645 = vadd.f32 %v2600, %v2624
        %v2646 = vadd.f32 %v2602, %v2624
        %v2647 = vadd.f32 %v2604, %v2624
        %v2648 = vadd.f32 %v2606, %v2624
        %v2649 = vadd.f32 %v2608, %v2624
        %v2650 = vadd.f32 %v2610, %v2624
        %v2651 = vadd.f32 %v2612, %v2624
        %v2652 = vadd.f32 %v2614, %v2624
        %v2653 = vadd.f32 %v2616, %v2624
        %v2654 = vadd.f32 %v2618, %v2624
        %v2655 = vadd.f32 %v2620, %v2624
        %v2656 = vadd.f32 %v2622, %v2624
        %v2657 = vmin.f32 %v2491, 20.0
        %v2658 = vmin.f32 %v2492, 20.0
        %v2659 = vmin.f32 %v2493, 20.0
        %v2660 = vmin.f32 %v2494, 20.0
        %v2661 = vmin.f32 %v2495, 20.0
        %v2662 = vmin.f32 %v2496, 20.0
        %v2663 = vmin.f32 %v2497, 20.0
        %v2664 = vmin.f32 %v2498, 20.0
        %v2665 = vmin.f32 %v2499, 20.0
        %v2666 = vmin.f32 %v2500, 20.0
        %v2667 = vmin.f32 %v2501, 20.0
        %v2668 = vmin.f32 %v2502, 20.0
        %v2669 = vmin.f32 %v2503, 20.0
        %v2670 = vmin.f32 %v2504, 20.0
        %v2671 = vmin.f32 %v2505, 20.0
        %v2672 = vmin.f32 %v2506, 20.0
        %v2673 = vmin.f32 %v2507, 20.0
        %v2674 = vmin.f32 %v2508, 20.0
        %v2675 = vmin.f32 %v2509, 20.0
        %v2676 = vmin.f32 %v2510, 20.0
        %v2677 = vmin.f32 %v2511, 20.0
        %v2678 = vmin.f32 %v2512, 20.0
        %v2679 = vmin.f32 %v2513, 20.0
        %v2680 = vmin.f32 %v2514, 20.0
        %v2681 = vmin.f32 %v2515, 20.0
        %v2682 = vmin.f32 %v2516, 20.0
        %v2683 = vmin.f32 %v2517, 20.0
        %v2684 = vmin.f32 %v2518, 20.0
        %v2685 = vmin.f32 %v2519, 20.0
        %v2686 = vmin.f32 %v2520, 20.0
        %v2687 = vmin.f32 %v2521, 20.0
        %v2688 = vmin.f32 %v2522, 20.0
        %vm2689 = vcmp.gt.f32.partialorder %v2491, 20.0
        %vm2690 = vcmp.gt.f32.partialorder %v2492, 20.0
        %vm2691 = vcmp.gt.f32.partialorder %v2493, 20.0
        %vm2692 = vcmp.gt.f32.partialorder %v2494, 20.0
        %vm2693 = vcmp.gt.f32.partialorder %v2495, 20.0
        %vm2694 = vcmp.gt.f32.partialorder %v2496, 20.0
        %vm2695 = vcmp.gt.f32.partialorder %v2497, 20.0
        %vm2696 = vcmp.gt.f32.partialorder %v2498, 20.0
        %vm2697 = vcmp.gt.f32.partialorder %v2499, 20.0
        %vm2698 = vcmp.gt.f32.partialorder %v2500, 20.0
        %vm2699 = vcmp.gt.f32.partialorder %v2501, 20.0
        %vm2700 = vcmp.gt.f32.partialorder %v2502, 20.0
        %vm2701 = vcmp.gt.f32.partialorder %v2503, 20.0
        %vm2702 = vcmp.gt.f32.partialorder %v2504, 20.0
        %vm2703 = vcmp.gt.f32.partialorder %v2505, 20.0
        %vm2704 = vcmp.gt.f32.partialorder %v2506, 20.0
        %vm2705 = vcmp.gt.f32.partialorder %v2507, 20.0
        %vm2706 = vcmp.gt.f32.partialorder %v2508, 20.0
        %vm2707 = vcmp.gt.f32.partialorder %v2509, 20.0
        %vm2708 = vcmp.gt.f32.partialorder %v2510, 20.0
        %vm2709 = vcmp.gt.f32.partialorder %v2511, 20.0
        %vm2710 = vcmp.gt.f32.partialorder %v2512, 20.0
        %vm2711 = vcmp.gt.f32.partialorder %v2513, 20.0
        %vm2712 = vcmp.gt.f32.partialorder %v2514, 20.0
        %vm2713 = vcmp.gt.f32.partialorder %v2515, 20.0
        %vm2714 = vcmp.gt.f32.partialorder %v2516, 20.0
        %vm2715 = vcmp.gt.f32.partialorder %v2517, 20.0
        %vm2716 = vcmp.gt.f32.partialorder %v2518, 20.0
        %vm2717 = vcmp.gt.f32.partialorder %v2519, 20.0
        %vm2718 = vcmp.gt.f32.partialorder %v2520, 20.0
        %vm2719 = vcmp.gt.f32.partialorder %v2521, 20.0
        %vm2720 = vcmp.gt.f32.partialorder %v2522, 20.0
        %v2721 = vmul.f32 %v2657, 1.442695
        %v2722 = vpow.pop %v2721
        %v2723 = vmul.f32 %v2658, 1.442695
        %v2724 = vpow.pop %v2723
        %v2725 = vmul.f32 %v2659, 1.442695
        %v2726 = vpow.pop %v2725
        %v2727 = vmul.f32 %v2660, 1.442695
        %v2728 = vpow.pop %v2727
        %v2729 = vmul.f32 %v2661, 1.442695
        %v2730 = vpow.pop %v2729
        %v2731 = vmul.f32 %v2662, 1.442695
        %v2732 = vpow.pop %v2731
        %v2733 = vmul.f32 %v2663, 1.442695
        %v2734 = vpow.pop %v2733
        %v2735 = vmul.f32 %v2664, 1.442695
        %v2736 = vpow.pop %v2735
        %v2737 = vmul.f32 %v2665, 1.442695
        %v2738 = vpow.pop %v2737
        %v2739 = vmul.f32 %v2666, 1.442695
        %v2740 = vpow.pop %v2739
        %v2741 = vmul.f32 %v2667, 1.442695
        %v2742 = vpow.pop %v2741
        %v2743 = vmul.f32 %v2668, 1.442695
        %v2744 = vpow.pop %v2743
        %v2745 = vmul.f32 %v2669, 1.442695
        %v2746 = vpow.pop %v2745
        %v2747 = vmul.f32 %v2670, 1.442695
        %v2748 = vpow.pop %v2747
        %v2749 = vmul.f32 %v2671, 1.442695
        %v2750 = vpow.pop %v2749
        %v2751 = vmul.f32 %v2672, 1.442695
        %v2752 = vpow.pop %v2751
        %v2753 = vmul.f32 %v2673, 1.442695
        %v2754 = vpow.pop %v2753
        %v2755 = vmul.f32 %v2674, 1.442695
        %v2756 = vpow.pop %v2755
        %v2757 = vmul.f32 %v2675, 1.442695
        %v2758 = vpow.pop %v2757
        %v2759 = vmul.f32 %v2676, 1.442695
        %v2760 = vpow.pop %v2759
        %v2761 = vmul.f32 %v2677, 1.442695
        %v2762 = vpow.pop %v2761
        %v2763 = vmul.f32 %v2678, 1.442695
        %v2764 = vpow.pop %v2763
        %v2765 = vmul.f32 %v2679, 1.442695
        %v2766 = vpow.pop %v2765
        %v2767 = vmul.f32 %v2680, 1.442695
        %v2768 = vpow.pop %v2767
        %v2769 = vmul.f32 %v2681, 1.442695
        %v2770 = vpow.pop %v2769
        %v2771 = vmul.f32 %v2682, 1.442695
        %v2772 = vpow.pop %v2771
        %v2773 = vmul.f32 %v2683, 1.442695
        %v2774 = vpow.pop %v2773
        %v2775 = vmul.f32 %v2684, 1.442695
        %v2776 = vpow.pop %v2775
        %v2777 = vmul.f32 %v2685, 1.442695
        %v2778 = vpow.pop %v2777
        %v2779 = vmul.f32 %v2686, 1.442695
        %v2780 = vpow.pop %v2779
        %v2781 = vmul.f32 %v2687, 1.442695
        %v2782 = vpow.pop %v2781
        %v2783 = vmul.f32 %v2688, 1.442695
        %v2784 = vpow.pop %v2783
        %v2785 = vadd.f32 %v2722, 1.0
        %v2786 = vlog2.pop %v2785
        %v2787 = vmul.f32 %v2786, 0.6931472
        %v2788 = vmul.f32 -0.5, %v2722
        %v2789 = vadd.f32 %v2788, 1.0
        %v2790 = vmul.f32 %v2789, %v2722
        %v2791 = vand.u32 2147483647, %v2722
        %vm2792 = vcmp.lt.f32.partialorder %v2791, 0.0004427343
        %v2793 = vsel %vm2792, %v2790, %v2787
        %v2794 = vadd.f32 %v2724, 1.0
        %v2795 = vlog2.pop %v2794
        %v2796 = vmul.f32 %v2795, 0.6931472
        %v2797 = vmul.f32 -0.5, %v2724
        %v2798 = vadd.f32 %v2797, 1.0
        %v2799 = vmul.f32 %v2798, %v2724
        %v2800 = vand.u32 2147483647, %v2724
        %vm2801 = vcmp.lt.f32.partialorder %v2800, 0.0004427343
        %v2802 = vsel %vm2801, %v2799, %v2796
        %v2803 = vadd.f32 %v2726, 1.0
        %v2804 = vlog2.pop %v2803
        %v2805 = vmul.f32 %v2804, 0.6931472
        %v2806 = vmul.f32 -0.5, %v2726
        %v2807 = vadd.f32 %v2806, 1.0
        %v2808 = vmul.f32 %v2807, %v2726
        %v2809 = vand.u32 2147483647, %v2726
        %vm2810 = vcmp.lt.f32.partialorder %v2809, 0.0004427343
        %v2811 = vsel %vm2810, %v2808, %v2805
        %v2812 = vadd.f32 %v2728, 1.0
        %v2813 = vlog2.pop %v2812
        %v2814 = vmul.f32 %v2813, 0.6931472
        %v2815 = vmul.f32 -0.5, %v2728
        %v2816 = vadd.f32 %v2815, 1.0
        %v2817 = vmul.f32 %v2816, %v2728
        %v2818 = vand.u32 2147483647, %v2728
        %vm2819 = vcmp.lt.f32.partialorder %v2818, 0.0004427343
        %v2820 = vsel %vm2819, %v2817, %v2814
        %v2821 = vadd.f32 %v2730, 1.0
        %v2822 = vlog2.pop %v2821
        %v2823 = vmul.f32 %v2822, 0.6931472
        %v2824 = vmul.f32 -0.5, %v2730
        %v2825 = vadd.f32 %v2824, 1.0
        %v2826 = vmul.f32 %v2825, %v2730
        %v2827 = vand.u32 2147483647, %v2730
        %vm2828 = vcmp.lt.f32.partialorder %v2827, 0.0004427343
        %v2829 = vsel %vm2828, %v2826, %v2823
        %v2830 = vadd.f32 %v2732, 1.0
        %v2831 = vlog2.pop %v2830
        %v2832 = vmul.f32 %v2831, 0.6931472
        %v2833 = vmul.f32 -0.5, %v2732
        %v2834 = vadd.f32 %v2833, 1.0
        %v2835 = vmul.f32 %v2834, %v2732
        %v2836 = vand.u32 2147483647, %v2732
        %vm2837 = vcmp.lt.f32.partialorder %v2836, 0.0004427343
        %v2838 = vsel %vm2837, %v2835, %v2832
        %v2839 = vadd.f32 %v2734, 1.0
        %v2840 = vlog2.pop %v2839
        %v2841 = vmul.f32 %v2840, 0.6931472
        %v2842 = vmul.f32 -0.5, %v2734
        %v2843 = vadd.f32 %v2842, 1.0
        %v2844 = vmul.f32 %v2843, %v2734
        %v2845 = vand.u32 2147483647, %v2734
        %vm2846 = vcmp.lt.f32.partialorder %v2845, 0.0004427343
        %v2847 = vsel %vm2846, %v2844, %v2841
        %v2848 = vadd.f32 %v2736, 1.0
        %v2849 = vlog2.pop %v2848
        %v2850 = vmul.f32 %v2849, 0.6931472
        %v2851 = vmul.f32 -0.5, %v2736
        %v2852 = vadd.f32 %v2851, 1.0
        %v2853 = vmul.f32 %v2852, %v2736
        %v2854 = vand.u32 2147483647, %v2736
        %vm2855 = vcmp.lt.f32.partialorder %v2854, 0.0004427343
        %v2856 = vsel %vm2855, %v2853, %v2850
        %v2857 = vadd.f32 %v2738, 1.0
        %v2858 = vlog2.pop %v2857
        %v2859 = vmul.f32 %v2858, 0.6931472
        %v2860 = vmul.f32 -0.5, %v2738
        %v2861 = vadd.f32 %v2860, 1.0
        %v2862 = vmul.f32 %v2861, %v2738
        %v2863 = vand.u32 2147483647, %v2738
        %vm2864 = vcmp.lt.f32.partialorder %v2863, 0.0004427343
        %v2865 = vsel %vm2864, %v2862, %v2859
        %v2866 = vadd.f32 %v2740, 1.0
        %v2867 = vlog2.pop %v2866
        %v2868 = vmul.f32 %v2867, 0.6931472
        %v2869 = vmul.f32 -0.5, %v2740
        %v2870 = vadd.f32 %v2869, 1.0
        %v2871 = vmul.f32 %v2870, %v2740
        %v2872 = vand.u32 2147483647, %v2740
        %vm2873 = vcmp.lt.f32.partialorder %v2872, 0.0004427343
        %v2874 = vsel %vm2873, %v2871, %v2868
        %v2875 = vadd.f32 %v2742, 1.0
        %v2876 = vlog2.pop %v2875
        %v2877 = vmul.f32 %v2876, 0.6931472
        %v2878 = vmul.f32 -0.5, %v2742
        %v2879 = vadd.f32 %v2878, 1.0
        %v2880 = vmul.f32 %v2879, %v2742
        %v2881 = vand.u32 2147483647, %v2742
        %vm2882 = vcmp.lt.f32.partialorder %v2881, 0.0004427343
        %v2883 = vsel %vm2882, %v2880, %v2877
        %v2884 = vadd.f32 %v2744, 1.0
        %v2885 = vlog2.pop %v2884
        %v2886 = vmul.f32 %v2885, 0.6931472
        %v2887 = vmul.f32 -0.5, %v2744
        %v2888 = vadd.f32 %v2887, 1.0
        %v2889 = vmul.f32 %v2888, %v2744
        %v2890 = vand.u32 2147483647, %v2744
        %vm2891 = vcmp.lt.f32.partialorder %v2890, 0.0004427343
        %v2892 = vsel %vm2891, %v2889, %v2886
        %v2893 = vadd.f32 %v2746, 1.0
        %v2894 = vlog2.pop %v2893
        %v2895 = vmul.f32 %v2894, 0.6931472
        %v2896 = vmul.f32 -0.5, %v2746
        %v2897 = vadd.f32 %v2896, 1.0
        %v2898 = vmul.f32 %v2897, %v2746
        %v2899 = vand.u32 2147483647, %v2746
        %vm2900 = vcmp.lt.f32.partialorder %v2899, 0.0004427343
        %v2901 = vsel %vm2900, %v2898, %v2895
        %v2902 = vadd.f32 %v2748, 1.0
        %v2903 = vlog2.pop %v2902
        %v2904 = vmul.f32 %v2903, 0.6931472
        %v2905 = vmul.f32 -0.5, %v2748
        %v2906 = vadd.f32 %v2905, 1.0
        %v2907 = vmul.f32 %v2906, %v2748
        %v2908 = vand.u32 2147483647, %v2748
        %vm2909 = vcmp.lt.f32.partialorder %v2908, 0.0004427343
        %v2910 = vsel %vm2909, %v2907, %v2904
        %v2911 = vadd.f32 %v2750, 1.0
        %v2912 = vlog2.pop %v2911
        %v2913 = vmul.f32 %v2912, 0.6931472
        %v2914 = vmul.f32 -0.5, %v2750
        %v2915 = vadd.f32 %v2914, 1.0
        %v2916 = vmul.f32 %v2915, %v2750
        %v2917 = vand.u32 2147483647, %v2750
        %vm2918 = vcmp.lt.f32.partialorder %v2917, 0.0004427343
        %v2919 = vsel %vm2918, %v2916, %v2913
        %v2920 = vadd.f32 %v2752, 1.0
        %v2921 = vlog2.pop %v2920
        %v2922 = vmul.f32 %v2921, 0.6931472
        %v2923 = vmul.f32 -0.5, %v2752
        %v2924 = vadd.f32 %v2923, 1.0
        %v2925 = vmul.f32 %v2924, %v2752
        %v2926 = vand.u32 2147483647, %v2752
        %vm2927 = vcmp.lt.f32.partialorder %v2926, 0.0004427343
        %v2928 = vsel %vm2927, %v2925, %v2922
        %v2929 = vadd.f32 %v2754, 1.0
        %v2930 = vlog2.pop %v2929
        %v2931 = vmul.f32 %v2930, 0.6931472
        %v2932 = vmul.f32 -0.5, %v2754
        %v2933 = vadd.f32 %v2932, 1.0
        %v2934 = vmul.f32 %v2933, %v2754
        %v2935 = vand.u32 2147483647, %v2754
        %vm2936 = vcmp.lt.f32.partialorder %v2935, 0.0004427343
        %v2937 = vsel %vm2936, %v2934, %v2931
        %v2938 = vadd.f32 %v2756, 1.0
        %v2939 = vlog2.pop %v2938
        %v2940 = vmul.f32 %v2939, 0.6931472
        %v2941 = vmul.f32 -0.5, %v2756
        %v2942 = vadd.f32 %v2941, 1.0
        %v2943 = vmul.f32 %v2942, %v2756
        %v2944 = vand.u32 2147483647, %v2756
        %vm2945 = vcmp.lt.f32.partialorder %v2944, 0.0004427343
        %v2946 = vsel %vm2945, %v2943, %v2940
        %v2947 = vadd.f32 %v2758, 1.0
        %v2948 = vlog2.pop %v2947
        %v2949 = vmul.f32 %v2948, 0.6931472
        %v2950 = vmul.f32 -0.5, %v2758
        %v2951 = vadd.f32 %v2950, 1.0
        %v2952 = vmul.f32 %v2951, %v2758
        %v2953 = vand.u32 2147483647, %v2758
        %vm2954 = vcmp.lt.f32.partialorder %v2953, 0.0004427343
        %v2955 = vsel %vm2954, %v2952, %v2949
        %v2956 = vadd.f32 %v2760, 1.0
        %v2957 = vlog2.pop %v2956
        %v2958 = vmul.f32 %v2957, 0.6931472
        %v2959 = vmul.f32 -0.5, %v2760
        %v2960 = vadd.f32 %v2959, 1.0
        %v2961 = vmul.f32 %v2960, %v2760
        %v2962 = vand.u32 2147483647, %v2760
        %vm2963 = vcmp.lt.f32.partialorder %v2962, 0.0004427343
        %v2964 = vsel %vm2963, %v2961, %v2958
        %v2965 = vadd.f32 %v2762, 1.0
        %v2966 = vlog2.pop %v2965
        %v2967 = vmul.f32 %v2966, 0.6931472
        %v2968 = vmul.f32 -0.5, %v2762
        %v2969 = vadd.f32 %v2968, 1.0
        %v2970 = vmul.f32 %v2969, %v2762
        %v2971 = vand.u32 2147483647, %v2762
        %vm2972 = vcmp.lt.f32.partialorder %v2971, 0.0004427343
        %v2973 = vsel %vm2972, %v2970, %v2967
        %v2974 = vadd.f32 %v2764, 1.0
        %v2975 = vlog2.pop %v2974
        %v2976 = vmul.f32 %v2975, 0.6931472
        %v2977 = vmul.f32 -0.5, %v2764
        %v2978 = vadd.f32 %v2977, 1.0
        %v2979 = vmul.f32 %v2978, %v2764
        %v2980 = vand.u32 2147483647, %v2764
        %vm2981 = vcmp.lt.f32.partialorder %v2980, 0.0004427343
        %v2982 = vsel %vm2981, %v2979, %v2976
        %v2983 = vadd.f32 %v2766, 1.0
        %v2984 = vlog2.pop %v2983
        %v2985 = vmul.f32 %v2984, 0.6931472
        %v2986 = vmul.f32 -0.5, %v2766
        %v2987 = vadd.f32 %v2986, 1.0
        %v2988 = vmul.f32 %v2987, %v2766
        %v2989 = vand.u32 2147483647, %v2766
        %vm2990 = vcmp.lt.f32.partialorder %v2989, 0.0004427343
        %v2991 = vsel %vm2990, %v2988, %v2985
        %v2992 = vadd.f32 %v2768, 1.0
        %v2993 = vlog2.pop %v2992
        %v2994 = vmul.f32 %v2993, 0.6931472
        %v2995 = vmul.f32 -0.5, %v2768
        %v2996 = vadd.f32 %v2995, 1.0
        %v2997 = vmul.f32 %v2996, %v2768
        %v2998 = vand.u32 2147483647, %v2768
        %vm2999 = vcmp.lt.f32.partialorder %v2998, 0.0004427343
        %v3000 = vsel %vm2999, %v2997, %v2994
        %v3001 = vadd.f32 %v2770, 1.0
        %v3002 = vlog2.pop %v3001
        %v3003 = vmul.f32 %v3002, 0.6931472
        %v3004 = vmul.f32 -0.5, %v2770
        %v3005 = vadd.f32 %v3004, 1.0
        %v3006 = vmul.f32 %v3005, %v2770
        %v3007 = vand.u32 2147483647, %v2770
        %vm3008 = vcmp.lt.f32.partialorder %v3007, 0.0004427343
        %v3009 = vsel %vm3008, %v3006, %v3003
        %v3010 = vadd.f32 %v2772, 1.0
        %v3011 = vlog2.pop %v3010
        %v3012 = vmul.f32 %v3011, 0.6931472
        %v3013 = vmul.f32 -0.5, %v2772
        %v3014 = vadd.f32 %v3013, 1.0
        %v3015 = vmul.f32 %v3014, %v2772
        %v3016 = vand.u32 2147483647, %v2772
        %vm3017 = vcmp.lt.f32.partialorder %v3016, 0.0004427343
        %v3018 = vsel %vm3017, %v3015, %v3012
        %v3019 = vadd.f32 %v2774, 1.0
        %v3020 = vlog2.pop %v3019
        %v3021 = vmul.f32 %v3020, 0.6931472
        %v3022 = vmul.f32 -0.5, %v2774
        %v3023 = vadd.f32 %v3022, 1.0
        %v3024 = vmul.f32 %v3023, %v2774
        %v3025 = vand.u32 2147483647, %v2774
        %vm3026 = vcmp.lt.f32.partialorder %v3025, 0.0004427343
        %v3027 = vsel %vm3026, %v3024, %v3021
        %v3028 = vadd.f32 %v2776, 1.0
        %v3029 = vlog2.pop %v3028
        %v3030 = vmul.f32 %v3029, 0.6931472
        %v3031 = vmul.f32 -0.5, %v2776
        %v3032 = vadd.f32 %v3031, 1.0
        %v3033 = vmul.f32 %v3032, %v2776
        %v3034 = vand.u32 2147483647, %v2776
        %vm3035 = vcmp.lt.f32.partialorder %v3034, 0.0004427343
        %v3036 = vsel %vm3035, %v3033, %v3030
        %v3037 = vadd.f32 %v2778, 1.0
        %v3038 = vlog2.pop %v3037
        %v3039 = vmul.f32 %v3038, 0.6931472
        %v3040 = vmul.f32 -0.5, %v2778
        %v3041 = vadd.f32 %v3040, 1.0
        %v3042 = vmul.f32 %v3041, %v2778
        %v3043 = vand.u32 2147483647, %v2778
        %vm3044 = vcmp.lt.f32.partialorder %v3043, 0.0004427343
        %v3045 = vsel %vm3044, %v3042, %v3039
        %v3046 = vadd.f32 %v2780, 1.0
        %v3047 = vlog2.pop %v3046
        %v3048 = vmul.f32 %v3047, 0.6931472
        %v3049 = vmul.f32 -0.5, %v2780
        %v3050 = vadd.f32 %v3049, 1.0
        %v3051 = vmul.f32 %v3050, %v2780
        %v3052 = vand.u32 2147483647, %v2780
        %vm3053 = vcmp.lt.f32.partialorder %v3052, 0.0004427343
        %v3054 = vsel %vm3053, %v3051, %v3048
        %v3055 = vadd.f32 %v2782, 1.0
        %v3056 = vlog2.pop %v3055
        %v3057 = vmul.f32 %v3056, 0.6931472
        %v3058 = vmul.f32 -0.5, %v2782
        %v3059 = vadd.f32 %v3058, 1.0
        %v3060 = vmul.f32 %v3059, %v2782
        %v3061 = vand.u32 2147483647, %v2782
        %vm3062 = vcmp.lt.f32.partialorder %v3061, 0.0004427343
        %v3063 = vsel %vm3062, %v3060, %v3057
        %v3064 = vadd.f32 %v2784, 1.0
        %v3065 = vlog2.pop %v3064
        %v3066 = vmul.f32 %v3065, 0.6931472
        %v3067 = vmul.f32 -0.5, %v2784
        %v3068 = vadd.f32 %v3067, 1.0
        %v3069 = vmul.f32 %v3068, %v2784
        %v3070 = vand.u32 2147483647, %v2784
        %vm3071 = vcmp.lt.f32.partialorder %v3070, 0.0004427343
        %v3072 = vsel %vm3071, %v3069, %v3066
        %v3073 = vsel %vm2689, %v2491, %v2793
        %v3074 = vsel %vm2690, %v2492, %v2802
        %v3075 = vsel %vm2691, %v2493, %v2811
        %v3076 = vsel %vm2692, %v2494, %v2820
        %v3077 = vsel %vm2693, %v2495, %v2829
        %v3078 = vsel %vm2694, %v2496, %v2838
        %v3079 = vsel %vm2695, %v2497, %v2847
        %v3080 = vsel %vm2696, %v2498, %v2856
        %v3081 = vsel %vm2697, %v2499, %v2865
        %v3082 = vsel %vm2698, %v2500, %v2874
        %v3083 = vsel %vm2699, %v2501, %v2883
        %v3084 = vsel %vm2700, %v2502, %v2892
        %v3085 = vsel %vm2701, %v2503, %v2901
        %v3086 = vsel %vm2702, %v2504, %v2910
        %v3087 = vsel %vm2703, %v2505, %v2919
        %v3088 = vsel %vm2704, %v2506, %v2928
        %v3089 = vsel %vm2705, %v2507, %v2937
        %v3090 = vsel %vm2706, %v2508, %v2946
        %v3091 = vsel %vm2707, %v2509, %v2955
        %v3092 = vsel %vm2708, %v2510, %v2964
        %v3093 = vsel %vm2709, %v2511, %v2973
        %v3094 = vsel %vm2710, %v2512, %v2982
        %v3095 = vsel %vm2711, %v2513, %v2991
        %v3096 = vsel %vm2712, %v2514, %v3000
        %v3097 = vsel %vm2713, %v2515, %v3009
        %v3098 = vsel %vm2714, %v2516, %v3018
        %v3099 = vsel %vm2715, %v2517, %v3027
        %v3100 = vsel %vm2716, %v2518, %v3036
        %v3101 = vsel %vm2717, %v2519, %v3045
        %v3102 = vsel %vm2718, %v2520, %v3054
        %v3103 = vsel %vm2719, %v2521, %v3063
        %v3104 = vsel %vm2720, %v2522, %v3072
        %v3105 = vmin.f32 %v2625, 20.0
        %v3106 = vmin.f32 %v2626, 20.0
        %v3107 = vmin.f32 %v2627, 20.0
        %v3108 = vmin.f32 %v2628, 20.0
        %v3109 = vmin.f32 %v2629, 20.0
        %v3110 = vmin.f32 %v2630, 20.0
        %v3111 = vmin.f32 %v2631, 20.0
        %v3112 = vmin.f32 %v2632, 20.0
        %v3113 = vmin.f32 %v2633, 20.0
        %v3114 = vmin.f32 %v2634, 20.0
        %v3115 = vmin.f32 %v2635, 20.0
        %v3116 = vmin.f32 %v2636, 20.0
        %v3117 = vmin.f32 %v2637, 20.0
        %v3118 = vmin.f32 %v2638, 20.0
        %v3119 = vmin.f32 %v2639, 20.0
        %v3120 = vmin.f32 %v2640, 20.0
        %v3121 = vmin.f32 %v2641, 20.0
        %v3122 = vmin.f32 %v2642, 20.0
        %v3123 = vmin.f32 %v2643, 20.0
        %v3124 = vmin.f32 %v2644, 20.0
        %v3125 = vmin.f32 %v2645, 20.0
        %v3126 = vmin.f32 %v2646, 20.0
        %v3127 = vmin.f32 %v2647, 20.0
        %v3128 = vmin.f32 %v2648, 20.0
        %v3129 = vmin.f32 %v2649, 20.0
        %v3130 = vmin.f32 %v2650, 20.0
        %v3131 = vmin.f32 %v2651, 20.0
        %v3132 = vmin.f32 %v2652, 20.0
        %v3133 = vmin.f32 %v2653, 20.0
        %v3134 = vmin.f32 %v2654, 20.0
        %v3135 = vmin.f32 %v2655, 20.0
        %v3136 = vmin.f32 %v2656, 20.0
        %vm3137 = vcmp.gt.f32.partialorder %v2625, 20.0
        %vm3138 = vcmp.gt.f32.partialorder %v2626, 20.0
        %vm3139 = vcmp.gt.f32.partialorder %v2627, 20.0
        %vm3140 = vcmp.gt.f32.partialorder %v2628, 20.0
        %vm3141 = vcmp.gt.f32.partialorder %v2629, 20.0
        %vm3142 = vcmp.gt.f32.partialorder %v2630, 20.0
        %vm3143 = vcmp.gt.f32.partialorder %v2631, 20.0
        %vm3144 = vcmp.gt.f32.partialorder %v2632, 20.0
        %vm3145 = vcmp.gt.f32.partialorder %v2633, 20.0
        %vm3146 = vcmp.gt.f32.partialorder %v2634, 20.0
        %vm3147 = vcmp.gt.f32.partialorder %v2635, 20.0
        %vm3148 = vcmp.gt.f32.partialorder %v2636, 20.0
        %vm3149 = vcmp.gt.f32.partialorder %v2637, 20.0
        %vm3150 = vcmp.gt.f32.partialorder %v2638, 20.0
        %vm3151 = vcmp.gt.f32.partialorder %v2639, 20.0
        %vm3152 = vcmp.gt.f32.partialorder %v2640, 20.0
        %vm3153 = vcmp.gt.f32.partialorder %v2641, 20.0
        %vm3154 = vcmp.gt.f32.partialorder %v2642, 20.0
        %vm3155 = vcmp.gt.f32.partialorder %v2643, 20.0
        %vm3156 = vcmp.gt.f32.partialorder %v2644, 20.0
        %vm3157 = vcmp.gt.f32.partialorder %v2645, 20.0
        %vm3158 = vcmp.gt.f32.partialorder %v2646, 20.0
        %vm3159 = vcmp.gt.f32.partialorder %v2647, 20.0
        %vm3160 = vcmp.gt.f32.partialorder %v2648, 20.0
        %vm3161 = vcmp.gt.f32.partialorder %v2649, 20.0
        %vm3162 = vcmp.gt.f32.partialorder %v2650, 20.0
        %vm3163 = vcmp.gt.f32.partialorder %v2651, 20.0
        %vm3164 = vcmp.gt.f32.partialorder %v2652, 20.0
        %vm3165 = vcmp.gt.f32.partialorder %v2653, 20.0
        %vm3166 = vcmp.gt.f32.partialorder %v2654, 20.0
        %vm3167 = vcmp.gt.f32.partialorder %v2655, 20.0
        %vm3168 = vcmp.gt.f32.partialorder %v2656, 20.0
        %v3169 = vmul.f32 %v3105, 1.442695
        %v3170 = vpow.pop %v3169
        %v3171 = vmul.f32 %v3106, 1.442695
        %v3172 = vpow.pop %v3171
        %v3173 = vmul.f32 %v3107, 1.442695
        %v3174 = vpow.pop %v3173
        %v3175 = vmul.f32 %v3108, 1.442695
        %v3176 = vpow.pop %v3175
        %v3177 = vmul.f32 %v3109, 1.442695
        %v3178 = vpow.pop %v3177
        %v3179 = vmul.f32 %v3110, 1.442695
        %v3180 = vpow.pop %v3179
        %v3181 = vmul.f32 %v3111, 1.442695
        %v3182 = vpow.pop %v3181
        %v3183 = vmul.f32 %v3112, 1.442695
        %v3184 = vpow.pop %v3183
        %v3185 = vmul.f32 %v3113, 1.442695
        %v3186 = vpow.pop %v3185
        %v3187 = vmul.f32 %v3114, 1.442695
        %v3188 = vpow.pop %v3187
        %v3189 = vmul.f32 %v3115, 1.442695
        %v3190 = vpow.pop %v3189
        %v3191 = vmul.f32 %v3116, 1.442695
        %v3192 = vpow.pop %v3191
        %v3193 = vmul.f32 %v3117, 1.442695
        %v3194 = vpow.pop %v3193
        %v3195 = vmul.f32 %v3118, 1.442695
        %v3196 = vpow.pop %v3195
        %v3197 = vmul.f32 %v3119, 1.442695
        %v3198 = vpow.pop %v3197
        %v3199 = vmul.f32 %v3120, 1.442695
        %v3200 = vpow.pop %v3199
        %v3201 = vmul.f32 %v3121, 1.442695
        %v3202 = vpow.pop %v3201
        %v3203 = vmul.f32 %v3122, 1.442695
        %v3204 = vpow.pop %v3203
        %v3205 = vmul.f32 %v3123, 1.442695
        %v3206 = vpow.pop %v3205
        %v3207 = vmul.f32 %v3124, 1.442695
        %v3208 = vpow.pop %v3207
        %v3209 = vmul.f32 %v3125, 1.442695
        %v3210 = vpow.pop %v3209
        %v3211 = vmul.f32 %v3126, 1.442695
        %v3212 = vpow.pop %v3211
        %v3213 = vmul.f32 %v3127, 1.442695
        %v3214 = vpow.pop %v3213
        %v3215 = vmul.f32 %v3128, 1.442695
        %v3216 = vpow.pop %v3215
        %v3217 = vmul.f32 %v3129, 1.442695
        %v3218 = vpow.pop %v3217
        %v3219 = vmul.f32 %v3130, 1.442695
        %v3220 = vpow.pop %v3219
        %v3221 = vmul.f32 %v3131, 1.442695
        %v3222 = vpow.pop %v3221
        %v3223 = vmul.f32 %v3132, 1.442695
        %v3224 = vpow.pop %v3223
        %v3225 = vmul.f32 %v3133, 1.442695
        %v3226 = vpow.pop %v3225
        %v3227 = vmul.f32 %v3134, 1.442695
        %v3228 = vpow.pop %v3227
        %v3229 = vmul.f32 %v3135, 1.442695
        %v3230 = vpow.pop %v3229
        %v3231 = vmul.f32 %v3136, 1.442695
        %v3232 = vpow.pop %v3231
        %v3233 = vadd.f32 %v3170, 1.0
        %v3234 = vlog2.pop %v3233
        %v3235 = vmul.f32 %v3234, 0.6931472
        %v3236 = vmul.f32 -0.5, %v3170
        %v3237 = vadd.f32 %v3236, 1.0
        %v3238 = vmul.f32 %v3237, %v3170
        %v3239 = vand.u32 2147483647, %v3170
        %vm3240 = vcmp.lt.f32.partialorder %v3239, 0.0004427343
        %v3241 = vsel %vm3240, %v3238, %v3235
        %v3242 = vadd.f32 %v3172, 1.0
        %v3243 = vlog2.pop %v3242
        %v3244 = vmul.f32 %v3243, 0.6931472
        %v3245 = vmul.f32 -0.5, %v3172
        %v3246 = vadd.f32 %v3245, 1.0
        %v3247 = vmul.f32 %v3246, %v3172
        %v3248 = vand.u32 2147483647, %v3172
        %vm3249 = vcmp.lt.f32.partialorder %v3248, 0.0004427343
        %v3250 = vsel %vm3249, %v3247, %v3244
        %v3251 = vadd.f32 %v3174, 1.0
        %v3252 = vlog2.pop %v3251
        %v3253 = vmul.f32 %v3252, 0.6931472
        %v3254 = vmul.f32 -0.5, %v3174
        %v3255 = vadd.f32 %v3254, 1.0
        %v3256 = vmul.f32 %v3255, %v3174
        %v3257 = vand.u32 2147483647, %v3174
        %vm3258 = vcmp.lt.f32.partialorder %v3257, 0.0004427343
        %v3259 = vsel %vm3258, %v3256, %v3253
        %v3260 = vadd.f32 %v3176, 1.0
        %v3261 = vlog2.pop %v3260
        %v3262 = vmul.f32 %v3261, 0.6931472
        %v3263 = vmul.f32 -0.5, %v3176
        %v3264 = vadd.f32 %v3263, 1.0
        %v3265 = vmul.f32 %v3264, %v3176
        %v3266 = vand.u32 2147483647, %v3176
        %vm3267 = vcmp.lt.f32.partialorder %v3266, 0.0004427343
        %v3268 = vsel %vm3267, %v3265, %v3262
        %v3269 = vadd.f32 %v3178, 1.0
        %v3270 = vlog2.pop %v3269
        %v3271 = vmul.f32 %v3270, 0.6931472
        %v3272 = vmul.f32 -0.5, %v3178
        %v3273 = vadd.f32 %v3272, 1.0
        %v3274 = vmul.f32 %v3273, %v3178
        %v3275 = vand.u32 2147483647, %v3178
        %vm3276 = vcmp.lt.f32.partialorder %v3275, 0.0004427343
        %v3277 = vsel %vm3276, %v3274, %v3271
        %v3278 = vadd.f32 %v3180, 1.0
        %v3279 = vlog2.pop %v3278
        %v3280 = vmul.f32 %v3279, 0.6931472
        %v3281 = vmul.f32 -0.5, %v3180
        %v3282 = vadd.f32 %v3281, 1.0
        %v3283 = vmul.f32 %v3282, %v3180
        %v3284 = vand.u32 2147483647, %v3180
        %vm3285 = vcmp.lt.f32.partialorder %v3284, 0.0004427343
        %v3286 = vsel %vm3285, %v3283, %v3280
        %v3287 = vadd.f32 %v3182, 1.0
        %v3288 = vlog2.pop %v3287
        %v3289 = vmul.f32 %v3288, 0.6931472
        %v3290 = vmul.f32 -0.5, %v3182
        %v3291 = vadd.f32 %v3290, 1.0
        %v3292 = vmul.f32 %v3291, %v3182
        %v3293 = vand.u32 2147483647, %v3182
        %vm3294 = vcmp.lt.f32.partialorder %v3293, 0.0004427343
        %v3295 = vsel %vm3294, %v3292, %v3289
        %v3296 = vadd.f32 %v3184, 1.0
        %v3297 = vlog2.pop %v3296
        %v3298 = vmul.f32 %v3297, 0.6931472
        %v3299 = vmul.f32 -0.5, %v3184
        %v3300 = vadd.f32 %v3299, 1.0
        %v3301 = vmul.f32 %v3300, %v3184
        %v3302 = vand.u32 2147483647, %v3184
        %vm3303 = vcmp.lt.f32.partialorder %v3302, 0.0004427343
        %v3304 = vsel %vm3303, %v3301, %v3298
        %v3305 = vadd.f32 %v3186, 1.0
        %v3306 = vlog2.pop %v3305
        %v3307 = vmul.f32 %v3306, 0.6931472
        %v3308 = vmul.f32 -0.5, %v3186
        %v3309 = vadd.f32 %v3308, 1.0
        %v3310 = vmul.f32 %v3309, %v3186
        %v3311 = vand.u32 2147483647, %v3186
        %vm3312 = vcmp.lt.f32.partialorder %v3311, 0.0004427343
        %v3313 = vsel %vm3312, %v3310, %v3307
        %v3314 = vadd.f32 %v3188, 1.0
        %v3315 = vlog2.pop %v3314
        %v3316 = vmul.f32 %v3315, 0.6931472
        %v3317 = vmul.f32 -0.5, %v3188
        %v3318 = vadd.f32 %v3317, 1.0
        %v3319 = vmul.f32 %v3318, %v3188
        %v3320 = vand.u32 2147483647, %v3188
        %vm3321 = vcmp.lt.f32.partialorder %v3320, 0.0004427343
        %v3322 = vsel %vm3321, %v3319, %v3316
        %v3323 = vadd.f32 %v3190, 1.0
        %v3324 = vlog2.pop %v3323
        %v3325 = vmul.f32 %v3324, 0.6931472
        %v3326 = vmul.f32 -0.5, %v3190
        %v3327 = vadd.f32 %v3326, 1.0
        %v3328 = vmul.f32 %v3327, %v3190
        %v3329 = vand.u32 2147483647, %v3190
        %vm3330 = vcmp.lt.f32.partialorder %v3329, 0.0004427343
        %v3331 = vsel %vm3330, %v3328, %v3325
        %v3332 = vadd.f32 %v3192, 1.0
        %v3333 = vlog2.pop %v3332
        %v3334 = vmul.f32 %v3333, 0.6931472
        %v3335 = vmul.f32 -0.5, %v3192
        %v3336 = vadd.f32 %v3335, 1.0
        %v3337 = vmul.f32 %v3336, %v3192
        %v3338 = vand.u32 2147483647, %v3192
        %vm3339 = vcmp.lt.f32.partialorder %v3338, 0.0004427343
        %v3340 = vsel %vm3339, %v3337, %v3334
        %v3341 = vadd.f32 %v3194, 1.0
        %v3342 = vlog2.pop %v3341
        %v3343 = vmul.f32 %v3342, 0.6931472
        %v3344 = vmul.f32 -0.5, %v3194
        %v3345 = vadd.f32 %v3344, 1.0
        %v3346 = vmul.f32 %v3345, %v3194
        %v3347 = vand.u32 2147483647, %v3194
        %vm3348 = vcmp.lt.f32.partialorder %v3347, 0.0004427343
        %v3349 = vsel %vm3348, %v3346, %v3343
        %v3350 = vadd.f32 %v3196, 1.0
        %v3351 = vlog2.pop %v3350
        %v3352 = vmul.f32 %v3351, 0.6931472
        %v3353 = vmul.f32 -0.5, %v3196
        %v3354 = vadd.f32 %v3353, 1.0
        %v3355 = vmul.f32 %v3354, %v3196
        %v3356 = vand.u32 2147483647, %v3196
        %vm3357 = vcmp.lt.f32.partialorder %v3356, 0.0004427343
        %v3358 = vsel %vm3357, %v3355, %v3352
        %v3359 = vadd.f32 %v3198, 1.0
        %v3360 = vlog2.pop %v3359
        %v3361 = vmul.f32 %v3360, 0.6931472
        %v3362 = vmul.f32 -0.5, %v3198
        %v3363 = vadd.f32 %v3362, 1.0
        %v3364 = vmul.f32 %v3363, %v3198
        %v3365 = vand.u32 2147483647, %v3198
        %vm3366 = vcmp.lt.f32.partialorder %v3365, 0.0004427343
        %v3367 = vsel %vm3366, %v3364, %v3361
        %v3368 = vadd.f32 %v3200, 1.0
        %v3369 = vlog2.pop %v3368
        %v3370 = vmul.f32 %v3369, 0.6931472
        %v3371 = vmul.f32 -0.5, %v3200
        %v3372 = vadd.f32 %v3371, 1.0
        %v3373 = vmul.f32 %v3372, %v3200
        %v3374 = vand.u32 2147483647, %v3200
        %vm3375 = vcmp.lt.f32.partialorder %v3374, 0.0004427343
        %v3376 = vsel %vm3375, %v3373, %v3370
        %v3377 = vadd.f32 %v3202, 1.0
        %v3378 = vlog2.pop %v3377
        %v3379 = vmul.f32 %v3378, 0.6931472
        %v3380 = vmul.f32 -0.5, %v3202
        %v3381 = vadd.f32 %v3380, 1.0
        %v3382 = vmul.f32 %v3381, %v3202
        %v3383 = vand.u32 2147483647, %v3202
        %vm3384 = vcmp.lt.f32.partialorder %v3383, 0.0004427343
        %v3385 = vsel %vm3384, %v3382, %v3379
        %v3386 = vadd.f32 %v3204, 1.0
        %v3387 = vlog2.pop %v3386
        %v3388 = vmul.f32 %v3387, 0.6931472
        %v3389 = vmul.f32 -0.5, %v3204
        %v3390 = vadd.f32 %v3389, 1.0
        %v3391 = vmul.f32 %v3390, %v3204
        %v3392 = vand.u32 2147483647, %v3204
        %vm3393 = vcmp.lt.f32.partialorder %v3392, 0.0004427343
        %v3394 = vsel %vm3393, %v3391, %v3388
        %v3395 = vadd.f32 %v3206, 1.0
        %v3396 = vlog2.pop %v3395
        %v3397 = vmul.f32 %v3396, 0.6931472
        %v3398 = vmul.f32 -0.5, %v3206
        %v3399 = vadd.f32 %v3398, 1.0
        %v3400 = vmul.f32 %v3399, %v3206
        %v3401 = vand.u32 2147483647, %v3206
        %vm3402 = vcmp.lt.f32.partialorder %v3401, 0.0004427343
        %v3403 = vsel %vm3402, %v3400, %v3397
        %v3404 = vadd.f32 %v3208, 1.0
        %v3405 = vlog2.pop %v3404
        %v3406 = vmul.f32 %v3405, 0.6931472
        %v3407 = vmul.f32 -0.5, %v3208
        %v3408 = vadd.f32 %v3407, 1.0
        %v3409 = vmul.f32 %v3408, %v3208
        %v3410 = vand.u32 2147483647, %v3208
        %vm3411 = vcmp.lt.f32.partialorder %v3410, 0.0004427343
        %v3412 = vsel %vm3411, %v3409, %v3406
        %v3413 = vadd.f32 %v3210, 1.0
        %v3414 = vlog2.pop %v3413
        %v3415 = vmul.f32 %v3414, 0.6931472
        %v3416 = vmul.f32 -0.5, %v3210
        %v3417 = vadd.f32 %v3416, 1.0
        %v3418 = vmul.f32 %v3417, %v3210
        %v3419 = vand.u32 2147483647, %v3210
        %vm3420 = vcmp.lt.f32.partialorder %v3419, 0.0004427343
        %v3421 = vsel %vm3420, %v3418, %v3415
        %v3422 = vadd.f32 %v3212, 1.0
        %v3423 = vlog2.pop %v3422
        %v3424 = vmul.f32 %v3423, 0.6931472
        %v3425 = vmul.f32 -0.5, %v3212
        %v3426 = vadd.f32 %v3425, 1.0
        %v3427 = vmul.f32 %v3426, %v3212
        %v3428 = vand.u32 2147483647, %v3212
        %vm3429 = vcmp.lt.f32.partialorder %v3428, 0.0004427343
        %v3430 = vsel %vm3429, %v3427, %v3424
        %v3431 = vadd.f32 %v3214, 1.0
        %v3432 = vlog2.pop %v3431
        %v3433 = vmul.f32 %v3432, 0.6931472
        %v3434 = vmul.f32 -0.5, %v3214
        %v3435 = vadd.f32 %v3434, 1.0
        %v3436 = vmul.f32 %v3435, %v3214
        %v3437 = vand.u32 2147483647, %v3214
        %vm3438 = vcmp.lt.f32.partialorder %v3437, 0.0004427343
        %v3439 = vsel %vm3438, %v3436, %v3433
        %v3440 = vadd.f32 %v3216, 1.0
        %v3441 = vlog2.pop %v3440
        %v3442 = vmul.f32 %v3441, 0.6931472
        %v3443 = vmul.f32 -0.5, %v3216
        %v3444 = vadd.f32 %v3443, 1.0
        %v3445 = vmul.f32 %v3444, %v3216
        %v3446 = vand.u32 2147483647, %v3216
        %vm3447 = vcmp.lt.f32.partialorder %v3446, 0.0004427343
        %v3448 = vsel %vm3447, %v3445, %v3442
        %v3449 = vadd.f32 %v3218, 1.0
        %v3450 = vlog2.pop %v3449
        %v3451 = vmul.f32 %v3450, 0.6931472
        %v3452 = vmul.f32 -0.5, %v3218
        %v3453 = vadd.f32 %v3452, 1.0
        %v3454 = vmul.f32 %v3453, %v3218
        %v3455 = vand.u32 2147483647, %v3218
        %vm3456 = vcmp.lt.f32.partialorder %v3455, 0.0004427343
        %v3457 = vsel %vm3456, %v3454, %v3451
        %v3458 = vadd.f32 %v3220, 1.0
        %v3459 = vlog2.pop %v3458
        %v3460 = vmul.f32 %v3459, 0.6931472
        %v3461 = vmul.f32 -0.5, %v3220
        %v3462 = vadd.f32 %v3461, 1.0
        %v3463 = vmul.f32 %v3462, %v3220
        %v3464 = vand.u32 2147483647, %v3220
        %vm3465 = vcmp.lt.f32.partialorder %v3464, 0.0004427343
        %v3466 = vsel %vm3465, %v3463, %v3460
        %v3467 = vadd.f32 %v3222, 1.0
        %v3468 = vlog2.pop %v3467
        %v3469 = vmul.f32 %v3468, 0.6931472
        %v3470 = vmul.f32 -0.5, %v3222
        %v3471 = vadd.f32 %v3470, 1.0
        %v3472 = vmul.f32 %v3471, %v3222
        %v3473 = vand.u32 2147483647, %v3222
        %vm3474 = vcmp.lt.f32.partialorder %v3473, 0.0004427343
        %v3475 = vsel %vm3474, %v3472, %v3469
        %v3476 = vadd.f32 %v3224, 1.0
        %v3477 = vlog2.pop %v3476
        %v3478 = vmul.f32 %v3477, 0.6931472
        %v3479 = vmul.f32 -0.5, %v3224
        %v3480 = vadd.f32 %v3479, 1.0
        %v3481 = vmul.f32 %v3480, %v3224
        %v3482 = vand.u32 2147483647, %v3224
        %vm3483 = vcmp.lt.f32.partialorder %v3482, 0.0004427343
        %v3484 = vsel %vm3483, %v3481, %v3478
        %v3485 = vadd.f32 %v3226, 1.0
        %v3486 = vlog2.pop %v3485
        %v3487 = vmul.f32 %v3486, 0.6931472
        %v3488 = vmul.f32 -0.5, %v3226
        %v3489 = vadd.f32 %v3488, 1.0
        %v3490 = vmul.f32 %v3489, %v3226
        %v3491 = vand.u32 2147483647, %v3226
        %vm3492 = vcmp.lt.f32.partialorder %v3491, 0.0004427343
        %v3493 = vsel %vm3492, %v3490, %v3487
        %v3494 = vadd.f32 %v3228, 1.0
        %v3495 = vlog2.pop %v3494
        %v3496 = vmul.f32 %v3495, 0.6931472
        %v3497 = vmul.f32 -0.5, %v3228
        %v3498 = vadd.f32 %v3497, 1.0
        %v3499 = vmul.f32 %v3498, %v3228
        %v3500 = vand.u32 2147483647, %v3228
        %vm3501 = vcmp.lt.f32.partialorder %v3500, 0.0004427343
        %v3502 = vsel %vm3501, %v3499, %v3496
        %v3503 = vadd.f32 %v3230, 1.0
        %v3504 = vlog2.pop %v3503
        %v3505 = vmul.f32 %v3504, 0.6931472
        %v3506 = vmul.f32 -0.5, %v3230
        %v3507 = vadd.f32 %v3506, 1.0
        %v3508 = vmul.f32 %v3507, %v3230
        %v3509 = vand.u32 2147483647, %v3230
        %vm3510 = vcmp.lt.f32.partialorder %v3509, 0.0004427343
        %v3511 = vsel %vm3510, %v3508, %v3505
        %v3512 = vadd.f32 %v3232, 1.0
        %v3513 = vlog2.pop %v3512
        %v3514 = vmul.f32 %v3513, 0.6931472
        %v3515 = vmul.f32 -0.5, %v3232
        %v3516 = vadd.f32 %v3515, 1.0
        %v3517 = vmul.f32 %v3516, %v3232
        %v3518 = vand.u32 2147483647, %v3232
        %vm3519 = vcmp.lt.f32.partialorder %v3518, 0.0004427343
        %v3520 = vsel %vm3519, %v3517, %v3514
        %v3521 = vsel %vm3137, %v2625, %v3241
        %v3522 = vsel %vm3138, %v2626, %v3250
        %v3523 = vsel %vm3139, %v2627, %v3259
        %v3524 = vsel %vm3140, %v2628, %v3268
        %v3525 = vsel %vm3141, %v2629, %v3277
        %v3526 = vsel %vm3142, %v2630, %v3286
        %v3527 = vsel %vm3143, %v2631, %v3295
        %v3528 = vsel %vm3144, %v2632, %v3304
        %v3529 = vsel %vm3145, %v2633, %v3313
        %v3530 = vsel %vm3146, %v2634, %v3322
        %v3531 = vsel %vm3147, %v2635, %v3331
        %v3532 = vsel %vm3148, %v2636, %v3340
        %v3533 = vsel %vm3149, %v2637, %v3349
        %v3534 = vsel %vm3150, %v2638, %v3358
        %v3535 = vsel %vm3151, %v2639, %v3367
        %v3536 = vsel %vm3152, %v2640, %v3376
        %v3537 = vsel %vm3153, %v2641, %v3385
        %v3538 = vsel %vm3154, %v2642, %v3394
        %v3539 = vsel %vm3155, %v2643, %v3403
        %v3540 = vsel %vm3156, %v2644, %v3412
        %v3541 = vsel %vm3157, %v2645, %v3421
        %v3542 = vsel %vm3158, %v2646, %v3430
        %v3543 = vsel %vm3159, %v2647, %v3439
        %v3544 = vsel %vm3160, %v2648, %v3448
        %v3545 = vsel %vm3161, %v2649, %v3457
        %v3546 = vsel %vm3162, %v2650, %v3466
        %v3547 = vsel %vm3163, %v2651, %v3475
        %v3548 = vsel %vm3164, %v2652, %v3484
        %v3549 = vsel %vm3165, %v2653, %v3493
        %v3550 = vsel %vm3166, %v2654, %v3502
        %v3551 = vsel %vm3167, %v2655, %v3511
        %v3552 = vsel %vm3168, %v2656, %v3520
        %v3553 = vmax.f32 %v3521, 0.0001
        %v3554 = vmax.f32 %v3522, 0.0001
        %v3555 = vmax.f32 %v3523, 0.0001
        %v3556 = vmax.f32 %v3524, 0.0001
        %v3557 = vmax.f32 %v3525, 0.0001
        %v3558 = vmax.f32 %v3526, 0.0001
        %v3559 = vmax.f32 %v3527, 0.0001
        %v3560 = vmax.f32 %v3528, 0.0001
        %v3561 = vmax.f32 %v3529, 0.0001
        %v3562 = vmax.f32 %v3530, 0.0001
        %v3563 = vmax.f32 %v3531, 0.0001
        %v3564 = vmax.f32 %v3532, 0.0001
        %v3565 = vmax.f32 %v3533, 0.0001
        %v3566 = vmax.f32 %v3534, 0.0001
        %v3567 = vmax.f32 %v3535, 0.0001
        %v3568 = vmax.f32 %v3536, 0.0001
        %v3569 = vmax.f32 %v3537, 0.0001
        %v3570 = vmax.f32 %v3538, 0.0001
        %v3571 = vmax.f32 %v3539, 0.0001
        %v3572 = vmax.f32 %v3540, 0.0001
        %v3573 = vmax.f32 %v3541, 0.0001
        %v3574 = vmax.f32 %v3542, 0.0001
        %v3575 = vmax.f32 %v3543, 0.0001
        %v3576 = vmax.f32 %v3544, 0.0001
        %v3577 = vmax.f32 %v3545, 0.0001
        %v3578 = vmax.f32 %v3546, 0.0001
        %v3579 = vmax.f32 %v3547, 0.0001
        %v3580 = vmax.f32 %v3548, 0.0001
        %v3581 = vmax.f32 %v3549, 0.0001
        %v3582 = vmax.f32 %v3550, 0.0001
        %v3583 = vmax.f32 %v3551, 0.0001
        %v3584 = vmax.f32 %v3552, 0.0001
        %v3585 = vrcp.pop %v3553
        %v3586 = vmul.f32 %v3553, %v3585
        %v3587 = vsub.f32 1.0, %v3586
        %v3588 = vmul.f32 %v3585, %v3587
        %v3589 = vadd.f32 %v3585, %v3588
        %vm3590 = vweird.f32 %v3553
        %vm3591 = vweird.f32 %v3585
        %vm3592 = vmor %vm3590, %vm3591
        %v3593 = vsel %vm3592, %v3585, %v3589
        %v3594 = vand.u32 2147483647, %v3553
        %vm3595 = vcmp.eq.f32.partialorder %v3594, 8.507059e+37
        %v3596 = vand.u32 %v3553, 2147483648
        %v3597 = vor.u32 1.1754944e-38, %v3596
        %v3598 = vsel %vm3595, %v3597, %v3593
        %v3599 = vrcp.pop %v3554
        %v3600 = vmul.f32 %v3554, %v3599
        %v3601 = vsub.f32 1.0, %v3600
        %v3602 = vmul.f32 %v3599, %v3601
        %v3603 = vadd.f32 %v3599, %v3602
        %vm3604 = vweird.f32 %v3554
        %vm3605 = vweird.f32 %v3599
        %vm3606 = vmor %vm3604, %vm3605
        %v3607 = vsel %vm3606, %v3599, %v3603
        %v3608 = vand.u32 2147483647, %v3554
        %vm3609 = vcmp.eq.f32.partialorder %v3608, 8.507059e+37
        %v3610 = vand.u32 %v3554, 2147483648
        %v3611 = vor.u32 1.1754944e-38, %v3610
        %v3612 = vsel %vm3609, %v3611, %v3607
        %v3613 = vrcp.pop %v3555
        %v3614 = vmul.f32 %v3555, %v3613
        %v3615 = vsub.f32 1.0, %v3614
        %v3616 = vmul.f32 %v3613, %v3615
        %v3617 = vadd.f32 %v3613, %v3616
        %vm3618 = vweird.f32 %v3555
        %vm3619 = vweird.f32 %v3613
        %vm3620 = vmor %vm3618, %vm3619
        %v3621 = vsel %vm3620, %v3613, %v3617
        %v3622 = vand.u32 2147483647, %v3555
        %vm3623 = vcmp.eq.f32.partialorder %v3622, 8.507059e+37
        %v3624 = vand.u32 %v3555, 2147483648
        %v3625 = vor.u32 1.1754944e-38, %v3624
        %v3626 = vsel %vm3623, %v3625, %v3621
        %v3627 = vrcp.pop %v3556
        %v3628 = vmul.f32 %v3556, %v3627
        %v3629 = vsub.f32 1.0, %v3628
        %v3630 = vmul.f32 %v3627, %v3629
        %v3631 = vadd.f32 %v3627, %v3630
        %vm3632 = vweird.f32 %v3556
        %vm3633 = vweird.f32 %v3627
        %vm3634 = vmor %vm3632, %vm3633
        %v3635 = vsel %vm3634, %v3627, %v3631
        %v3636 = vand.u32 2147483647, %v3556
        %vm3637 = vcmp.eq.f32.partialorder %v3636, 8.507059e+37
        %v3638 = vand.u32 %v3556, 2147483648
        %v3639 = vor.u32 1.1754944e-38, %v3638
        %v3640 = vsel %vm3637, %v3639, %v3635
        %v3641 = vrcp.pop %v3557
        %v3642 = vmul.f32 %v3557, %v3641
        %v3643 = vsub.f32 1.0, %v3642
        %v3644 = vmul.f32 %v3641, %v3643
        %v3645 = vadd.f32 %v3641, %v3644
        %vm3646 = vweird.f32 %v3557
        %vm3647 = vweird.f32 %v3641
        %vm3648 = vmor %vm3646, %vm3647
        %v3649 = vsel %vm3648, %v3641, %v3645
        %v3650 = vand.u32 2147483647, %v3557
        %vm3651 = vcmp.eq.f32.partialorder %v3650, 8.507059e+37
        %v3652 = vand.u32 %v3557, 2147483648
        %v3653 = vor.u32 1.1754944e-38, %v3652
        %v3654 = vsel %vm3651, %v3653, %v3649
        %v3655 = vrcp.pop %v3558
        %v3656 = vmul.f32 %v3558, %v3655
        %v3657 = vsub.f32 1.0, %v3656
        %v3658 = vmul.f32 %v3655, %v3657
        %v3659 = vadd.f32 %v3655, %v3658
        %vm3660 = vweird.f32 %v3558
        %vm3661 = vweird.f32 %v3655
        %vm3662 = vmor %vm3660, %vm3661
        %v3663 = vsel %vm3662, %v3655, %v3659
        %v3664 = vand.u32 2147483647, %v3558
        %vm3665 = vcmp.eq.f32.partialorder %v3664, 8.507059e+37
        %v3666 = vand.u32 %v3558, 2147483648
        %v3667 = vor.u32 1.1754944e-38, %v3666
        %v3668 = vsel %vm3665, %v3667, %v3663
        %v3669 = vrcp.pop %v3559
        %v3670 = vmul.f32 %v3559, %v3669
        %v3671 = vsub.f32 1.0, %v3670
        %v3672 = vmul.f32 %v3669, %v3671
        %v3673 = vadd.f32 %v3669, %v3672
        %vm3674 = vweird.f32 %v3559
        %vm3675 = vweird.f32 %v3669
        %vm3676 = vmor %vm3674, %vm3675
        %v3677 = vsel %vm3676, %v3669, %v3673
        %v3678 = vand.u32 2147483647, %v3559
        %vm3679 = vcmp.eq.f32.partialorder %v3678, 8.507059e+37
        %v3680 = vand.u32 %v3559, 2147483648
        %v3681 = vor.u32 1.1754944e-38, %v3680
        %v3682 = vsel %vm3679, %v3681, %v3677
        %v3683 = vrcp.pop %v3560
        %v3684 = vmul.f32 %v3560, %v3683
        %v3685 = vsub.f32 1.0, %v3684
        %v3686 = vmul.f32 %v3683, %v3685
        %v3687 = vadd.f32 %v3683, %v3686
        %vm3688 = vweird.f32 %v3560
        %vm3689 = vweird.f32 %v3683
        %vm3690 = vmor %vm3688, %vm3689
        %v3691 = vsel %vm3690, %v3683, %v3687
        %v3692 = vand.u32 2147483647, %v3560
        %vm3693 = vcmp.eq.f32.partialorder %v3692, 8.507059e+37
        %v3694 = vand.u32 %v3560, 2147483648
        %v3695 = vor.u32 1.1754944e-38, %v3694
        %v3696 = vsel %vm3693, %v3695, %v3691
        %v3697 = vrcp.pop %v3561
        %v3698 = vmul.f32 %v3561, %v3697
        %v3699 = vsub.f32 1.0, %v3698
        %v3700 = vmul.f32 %v3697, %v3699
        %v3701 = vadd.f32 %v3697, %v3700
        %vm3702 = vweird.f32 %v3561
        %vm3703 = vweird.f32 %v3697
        %vm3704 = vmor %vm3702, %vm3703
        %v3705 = vsel %vm3704, %v3697, %v3701
        %v3706 = vand.u32 2147483647, %v3561
        %vm3707 = vcmp.eq.f32.partialorder %v3706, 8.507059e+37
        %v3708 = vand.u32 %v3561, 2147483648
        %v3709 = vor.u32 1.1754944e-38, %v3708
        %v3710 = vsel %vm3707, %v3709, %v3705
        %v3711 = vrcp.pop %v3562
        %v3712 = vmul.f32 %v3562, %v3711
        %v3713 = vsub.f32 1.0, %v3712
        %v3714 = vmul.f32 %v3711, %v3713
        %v3715 = vadd.f32 %v3711, %v3714
        %vm3716 = vweird.f32 %v3562
        %vm3717 = vweird.f32 %v3711
        %vm3718 = vmor %vm3716, %vm3717
        %v3719 = vsel %vm3718, %v3711, %v3715
        %v3720 = vand.u32 2147483647, %v3562
        %vm3721 = vcmp.eq.f32.partialorder %v3720, 8.507059e+37
        %v3722 = vand.u32 %v3562, 2147483648
        %v3723 = vor.u32 1.1754944e-38, %v3722
        %v3724 = vsel %vm3721, %v3723, %v3719
        %v3725 = vrcp.pop %v3563
        %v3726 = vmul.f32 %v3563, %v3725
        %v3727 = vsub.f32 1.0, %v3726
        %v3728 = vmul.f32 %v3725, %v3727
        %v3729 = vadd.f32 %v3725, %v3728
        %vm3730 = vweird.f32 %v3563
        %vm3731 = vweird.f32 %v3725
        %vm3732 = vmor %vm3730, %vm3731
        %v3733 = vsel %vm3732, %v3725, %v3729
        %v3734 = vand.u32 2147483647, %v3563
        %vm3735 = vcmp.eq.f32.partialorder %v3734, 8.507059e+37
        %v3736 = vand.u32 %v3563, 2147483648
        %v3737 = vor.u32 1.1754944e-38, %v3736
        %v3738 = vsel %vm3735, %v3737, %v3733
        %v3739 = vrcp.pop %v3564
        %v3740 = vmul.f32 %v3564, %v3739
        %v3741 = vsub.f32 1.0, %v3740
        %v3742 = vmul.f32 %v3739, %v3741
        %v3743 = vadd.f32 %v3739, %v3742
        %vm3744 = vweird.f32 %v3564
        %vm3745 = vweird.f32 %v3739
        %vm3746 = vmor %vm3744, %vm3745
        %v3747 = vsel %vm3746, %v3739, %v3743
        %v3748 = vand.u32 2147483647, %v3564
        %vm3749 = vcmp.eq.f32.partialorder %v3748, 8.507059e+37
        %v3750 = vand.u32 %v3564, 2147483648
        %v3751 = vor.u32 1.1754944e-38, %v3750
        %v3752 = vsel %vm3749, %v3751, %v3747
        %v3753 = vrcp.pop %v3565
        %v3754 = vmul.f32 %v3565, %v3753
        %v3755 = vsub.f32 1.0, %v3754
        %v3756 = vmul.f32 %v3753, %v3755
        %v3757 = vadd.f32 %v3753, %v3756
        %vm3758 = vweird.f32 %v3565
        %vm3759 = vweird.f32 %v3753
        %vm3760 = vmor %vm3758, %vm3759
        %v3761 = vsel %vm3760, %v3753, %v3757
        %v3762 = vand.u32 2147483647, %v3565
        %vm3763 = vcmp.eq.f32.partialorder %v3762, 8.507059e+37
        %v3764 = vand.u32 %v3565, 2147483648
        %v3765 = vor.u32 1.1754944e-38, %v3764
        %v3766 = vsel %vm3763, %v3765, %v3761
        %v3767 = vrcp.pop %v3566
        %v3768 = vmul.f32 %v3566, %v3767
        %v3769 = vsub.f32 1.0, %v3768
        %v3770 = vmul.f32 %v3767, %v3769
        %v3771 = vadd.f32 %v3767, %v3770
        %vm3772 = vweird.f32 %v3566
        %vm3773 = vweird.f32 %v3767
        %vm3774 = vmor %vm3772, %vm3773
        %v3775 = vsel %vm3774, %v3767, %v3771
        %v3776 = vand.u32 2147483647, %v3566
        %vm3777 = vcmp.eq.f32.partialorder %v3776, 8.507059e+37
        %v3778 = vand.u32 %v3566, 2147483648
        %v3779 = vor.u32 1.1754944e-38, %v3778
        %v3780 = vsel %vm3777, %v3779, %v3775
        %v3781 = vrcp.pop %v3567
        %v3782 = vmul.f32 %v3567, %v3781
        %v3783 = vsub.f32 1.0, %v3782
        %v3784 = vmul.f32 %v3781, %v3783
        %v3785 = vadd.f32 %v3781, %v3784
        %vm3786 = vweird.f32 %v3567
        %vm3787 = vweird.f32 %v3781
        %vm3788 = vmor %vm3786, %vm3787
        %v3789 = vsel %vm3788, %v3781, %v3785
        %v3790 = vand.u32 2147483647, %v3567
        %vm3791 = vcmp.eq.f32.partialorder %v3790, 8.507059e+37
        %v3792 = vand.u32 %v3567, 2147483648
        %v3793 = vor.u32 1.1754944e-38, %v3792
        %v3794 = vsel %vm3791, %v3793, %v3789
        %v3795 = vrcp.pop %v3568
        %v3796 = vmul.f32 %v3568, %v3795
        %v3797 = vsub.f32 1.0, %v3796
        %v3798 = vmul.f32 %v3795, %v3797
        %v3799 = vadd.f32 %v3795, %v3798
        %vm3800 = vweird.f32 %v3568
        %vm3801 = vweird.f32 %v3795
        %vm3802 = vmor %vm3800, %vm3801
        %v3803 = vsel %vm3802, %v3795, %v3799
        %v3804 = vand.u32 2147483647, %v3568
        %vm3805 = vcmp.eq.f32.partialorder %v3804, 8.507059e+37
        %v3806 = vand.u32 %v3568, 2147483648
        %v3807 = vor.u32 1.1754944e-38, %v3806
        %v3808 = vsel %vm3805, %v3807, %v3803
        %v3809 = vrcp.pop %v3569
        %v3810 = vmul.f32 %v3569, %v3809
        %v3811 = vsub.f32 1.0, %v3810
        %v3812 = vmul.f32 %v3809, %v3811
        %v3813 = vadd.f32 %v3809, %v3812
        %vm3814 = vweird.f32 %v3569
        %vm3815 = vweird.f32 %v3809
        %vm3816 = vmor %vm3814, %vm3815
        %v3817 = vsel %vm3816, %v3809, %v3813
        %v3818 = vand.u32 2147483647, %v3569
        %vm3819 = vcmp.eq.f32.partialorder %v3818, 8.507059e+37
        %v3820 = vand.u32 %v3569, 2147483648
        %v3821 = vor.u32 1.1754944e-38, %v3820
        %v3822 = vsel %vm3819, %v3821, %v3817
        %v3823 = vrcp.pop %v3570
        %v3824 = vmul.f32 %v3570, %v3823
        %v3825 = vsub.f32 1.0, %v3824
        %v3826 = vmul.f32 %v3823, %v3825
        %v3827 = vadd.f32 %v3823, %v3826
        %vm3828 = vweird.f32 %v3570
        %vm3829 = vweird.f32 %v3823
        %vm3830 = vmor %vm3828, %vm3829
        %v3831 = vsel %vm3830, %v3823, %v3827
        %v3832 = vand.u32 2147483647, %v3570
        %vm3833 = vcmp.eq.f32.partialorder %v3832, 8.507059e+37
        %v3834 = vand.u32 %v3570, 2147483648
        %v3835 = vor.u32 1.1754944e-38, %v3834
        %v3836 = vsel %vm3833, %v3835, %v3831
        %v3837 = vrcp.pop %v3571
        %v3838 = vmul.f32 %v3571, %v3837
        %v3839 = vsub.f32 1.0, %v3838
        %v3840 = vmul.f32 %v3837, %v3839
        %v3841 = vadd.f32 %v3837, %v3840
        %vm3842 = vweird.f32 %v3571
        %vm3843 = vweird.f32 %v3837
        %vm3844 = vmor %vm3842, %vm3843
        %v3845 = vsel %vm3844, %v3837, %v3841
        %v3846 = vand.u32 2147483647, %v3571
        %vm3847 = vcmp.eq.f32.partialorder %v3846, 8.507059e+37
        %v3848 = vand.u32 %v3571, 2147483648
        %v3849 = vor.u32 1.1754944e-38, %v3848
        %v3850 = vsel %vm3847, %v3849, %v3845
        %v3851 = vrcp.pop %v3572
        %v3852 = vmul.f32 %v3572, %v3851
        %v3853 = vsub.f32 1.0, %v3852
        %v3854 = vmul.f32 %v3851, %v3853
        %v3855 = vadd.f32 %v3851, %v3854
        %vm3856 = vweird.f32 %v3572
        %vm3857 = vweird.f32 %v3851
        %vm3858 = vmor %vm3856, %vm3857
        %v3859 = vsel %vm3858, %v3851, %v3855
        %v3860 = vand.u32 2147483647, %v3572
        %vm3861 = vcmp.eq.f32.partialorder %v3860, 8.507059e+37
        %v3862 = vand.u32 %v3572, 2147483648
        %v3863 = vor.u32 1.1754944e-38, %v3862
        %v3864 = vsel %vm3861, %v3863, %v3859
        %v3865 = vrcp.pop %v3573
        %v3866 = vmul.f32 %v3573, %v3865
        %v3867 = vsub.f32 1.0, %v3866
        %v3868 = vmul.f32 %v3865, %v3867
        %v3869 = vadd.f32 %v3865, %v3868
        %vm3870 = vweird.f32 %v3573
        %vm3871 = vweird.f32 %v3865
        %vm3872 = vmor %vm3870, %vm3871
        %v3873 = vsel %vm3872, %v3865, %v3869
        %v3874 = vand.u32 2147483647, %v3573
        %vm3875 = vcmp.eq.f32.partialorder %v3874, 8.507059e+37
        %v3876 = vand.u32 %v3573, 2147483648
        %v3877 = vor.u32 1.1754944e-38, %v3876
        %v3878 = vsel %vm3875, %v3877, %v3873
        %v3879 = vrcp.pop %v3574
        %v3880 = vmul.f32 %v3574, %v3879
        %v3881 = vsub.f32 1.0, %v3880
        %v3882 = vmul.f32 %v3879, %v3881
        %v3883 = vadd.f32 %v3879, %v3882
        %vm3884 = vweird.f32 %v3574
        %vm3885 = vweird.f32 %v3879
        %vm3886 = vmor %vm3884, %vm3885
        %v3887 = vsel %vm3886, %v3879, %v3883
        %v3888 = vand.u32 2147483647, %v3574
        %vm3889 = vcmp.eq.f32.partialorder %v3888, 8.507059e+37
        %v3890 = vand.u32 %v3574, 2147483648
        %v3891 = vor.u32 1.1754944e-38, %v3890
        %v3892 = vsel %vm3889, %v3891, %v3887
        %v3893 = vrcp.pop %v3575
        %v3894 = vmul.f32 %v3575, %v3893
        %v3895 = vsub.f32 1.0, %v3894
        %v3896 = vmul.f32 %v3893, %v3895
        %v3897 = vadd.f32 %v3893, %v3896
        %vm3898 = vweird.f32 %v3575
        %vm3899 = vweird.f32 %v3893
        %vm3900 = vmor %vm3898, %vm3899
        %v3901 = vsel %vm3900, %v3893, %v3897
        %v3902 = vand.u32 2147483647, %v3575
        %vm3903 = vcmp.eq.f32.partialorder %v3902, 8.507059e+37
        %v3904 = vand.u32 %v3575, 2147483648
        %v3905 = vor.u32 1.1754944e-38, %v3904
        %v3906 = vsel %vm3903, %v3905, %v3901
        %v3907 = vrcp.pop %v3576
        %v3908 = vmul.f32 %v3576, %v3907
        %v3909 = vsub.f32 1.0, %v3908
        %v3910 = vmul.f32 %v3907, %v3909
        %v3911 = vadd.f32 %v3907, %v3910
        %vm3912 = vweird.f32 %v3576
        %vm3913 = vweird.f32 %v3907
        %vm3914 = vmor %vm3912, %vm3913
        %v3915 = vsel %vm3914, %v3907, %v3911
        %v3916 = vand.u32 2147483647, %v3576
        %vm3917 = vcmp.eq.f32.partialorder %v3916, 8.507059e+37
        %v3918 = vand.u32 %v3576, 2147483648
        %v3919 = vor.u32 1.1754944e-38, %v3918
        %v3920 = vsel %vm3917, %v3919, %v3915
        %v3921 = vrcp.pop %v3577
        %v3922 = vmul.f32 %v3577, %v3921
        %v3923 = vsub.f32 1.0, %v3922
        %v3924 = vmul.f32 %v3921, %v3923
        %v3925 = vadd.f32 %v3921, %v3924
        %vm3926 = vweird.f32 %v3577
        %vm3927 = vweird.f32 %v3921
        %vm3928 = vmor %vm3926, %vm3927
        %v3929 = vsel %vm3928, %v3921, %v3925
        %v3930 = vand.u32 2147483647, %v3577
        %vm3931 = vcmp.eq.f32.partialorder %v3930, 8.507059e+37
        %v3932 = vand.u32 %v3577, 2147483648
        %v3933 = vor.u32 1.1754944e-38, %v3932
        %v3934 = vsel %vm3931, %v3933, %v3929
        %v3935 = vrcp.pop %v3578
        %v3936 = vmul.f32 %v3578, %v3935
        %v3937 = vsub.f32 1.0, %v3936
        %v3938 = vmul.f32 %v3935, %v3937
        %v3939 = vadd.f32 %v3935, %v3938
        %vm3940 = vweird.f32 %v3578
        %vm3941 = vweird.f32 %v3935
        %vm3942 = vmor %vm3940, %vm3941
        %v3943 = vsel %vm3942, %v3935, %v3939
        %v3944 = vand.u32 2147483647, %v3578
        %vm3945 = vcmp.eq.f32.partialorder %v3944, 8.507059e+37
        %v3946 = vand.u32 %v3578, 2147483648
        %v3947 = vor.u32 1.1754944e-38, %v3946
        %v3948 = vsel %vm3945, %v3947, %v3943
        %v3949 = vrcp.pop %v3579
        %v3950 = vmul.f32 %v3579, %v3949
        %v3951 = vsub.f32 1.0, %v3950
        %v3952 = vmul.f32 %v3949, %v3951
        %v3953 = vadd.f32 %v3949, %v3952
        %vm3954 = vweird.f32 %v3579
        %vm3955 = vweird.f32 %v3949
        %vm3956 = vmor %vm3954, %vm3955
        %v3957 = vsel %vm3956, %v3949, %v3953
        %v3958 = vand.u32 2147483647, %v3579
        %vm3959 = vcmp.eq.f32.partialorder %v3958, 8.507059e+37
        %v3960 = vand.u32 %v3579, 2147483648
        %v3961 = vor.u32 1.1754944e-38, %v3960
        %v3962 = vsel %vm3959, %v3961, %v3957
        %v3963 = vrcp.pop %v3580
        %v3964 = vmul.f32 %v3580, %v3963
        %v3965 = vsub.f32 1.0, %v3964
        %v3966 = vmul.f32 %v3963, %v3965
        %v3967 = vadd.f32 %v3963, %v3966
        %vm3968 = vweird.f32 %v3580
        %vm3969 = vweird.f32 %v3963
        %vm3970 = vmor %vm3968, %vm3969
        %v3971 = vsel %vm3970, %v3963, %v3967
        %v3972 = vand.u32 2147483647, %v3580
        %vm3973 = vcmp.eq.f32.partialorder %v3972, 8.507059e+37
        %v3974 = vand.u32 %v3580, 2147483648
        %v3975 = vor.u32 1.1754944e-38, %v3974
        %v3976 = vsel %vm3973, %v3975, %v3971
        %v3977 = vrcp.pop %v3581
        %v3978 = vmul.f32 %v3581, %v3977
        %v3979 = vsub.f32 1.0, %v3978
        %v3980 = vmul.f32 %v3977, %v3979
        %v3981 = vadd.f32 %v3977, %v3980
        %vm3982 = vweird.f32 %v3581
        %vm3983 = vweird.f32 %v3977
        %vm3984 = vmor %vm3982, %vm3983
        %v3985 = vsel %vm3984, %v3977, %v3981
        %v3986 = vand.u32 2147483647, %v3581
        %vm3987 = vcmp.eq.f32.partialorder %v3986, 8.507059e+37
        %v3988 = vand.u32 %v3581, 2147483648
        %v3989 = vor.u32 1.1754944e-38, %v3988
        %v3990 = vsel %vm3987, %v3989, %v3985
        %v3991 = vrcp.pop %v3582
        %v3992 = vmul.f32 %v3582, %v3991
        %v3993 = vsub.f32 1.0, %v3992
        %v3994 = vmul.f32 %v3991, %v3993
        %v3995 = vadd.f32 %v3991, %v3994
        %vm3996 = vweird.f32 %v3582
        %vm3997 = vweird.f32 %v3991
        %vm3998 = vmor %vm3996, %vm3997
        %v3999 = vsel %vm3998, %v3991, %v3995
        %v4000 = vand.u32 2147483647, %v3582
        %vm4001 = vcmp.eq.f32.partialorder %v4000, 8.507059e+37
        %v4002 = vand.u32 %v3582, 2147483648
        %v4003 = vor.u32 1.1754944e-38, %v4002
        %v4004 = vsel %vm4001, %v4003, %v3999
        %v4005 = vrcp.pop %v3583
        %v4006 = vmul.f32 %v3583, %v4005
        %v4007 = vsub.f32 1.0, %v4006
        %v4008 = vmul.f32 %v4005, %v4007
        %v4009 = vadd.f32 %v4005, %v4008
        %vm4010 = vweird.f32 %v3583
        %vm4011 = vweird.f32 %v4005
        %vm4012 = vmor %vm4010, %vm4011
        %v4013 = vsel %vm4012, %v4005, %v4009
        %v4014 = vand.u32 2147483647, %v3583
        %vm4015 = vcmp.eq.f32.partialorder %v4014, 8.507059e+37
        %v4016 = vand.u32 %v3583, 2147483648
        %v4017 = vor.u32 1.1754944e-38, %v4016
        %v4018 = vsel %vm4015, %v4017, %v4013
        %v4019 = vrcp.pop %v3584
        %v4020 = vmul.f32 %v3584, %v4019
        %v4021 = vsub.f32 1.0, %v4020
        %v4022 = vmul.f32 %v4019, %v4021
        %v4023 = vadd.f32 %v4019, %v4022
        %vm4024 = vweird.f32 %v3584
        %vm4025 = vweird.f32 %v4019
        %vm4026 = vmor %vm4024, %vm4025
        %v4027 = vsel %vm4026, %v4019, %v4023
        %v4028 = vand.u32 2147483647, %v3584
        %vm4029 = vcmp.eq.f32.partialorder %v4028, 8.507059e+37
        %v4030 = vand.u32 %v3584, 2147483648
        %v4031 = vor.u32 1.1754944e-38, %v4030
        %v4032 = vsel %vm4029, %v4031, %v4027
        %v4033 = vsub.f32 %v465, %v3073
        %v4034 = vsub.f32 %v466, %v3074
        %v4035 = vsub.f32 %v467, %v3075
        %v4036 = vsub.f32 %v468, %v3076
        %v4037 = vsub.f32 %v469, %v3077
        %v4038 = vsub.f32 %v470, %v3078
        %v4039 = vsub.f32 %v471, %v3079
        %v4040 = vsub.f32 %v472, %v3080
        %v4041 = vsub.f32 %v473, %v3081
        %v4042 = vsub.f32 %v474, %v3082
        %v4043 = vsub.f32 %v475, %v3083
        %v4044 = vsub.f32 %v476, %v3084
        %v4045 = vsub.f32 %v477, %v3085
        %v4046 = vsub.f32 %v478, %v3086
        %v4047 = vsub.f32 %v479, %v3087
        %v4048 = vsub.f32 %v480, %v3088
        %v4049 = vsub.f32 %v481, %v3089
        %v4050 = vsub.f32 %v482, %v3090
        %v4051 = vsub.f32 %v483, %v3091
        %v4052 = vsub.f32 %v484, %v3092
        %v4053 = vsub.f32 %v485, %v3093
        %v4054 = vsub.f32 %v486, %v3094
        %v4055 = vsub.f32 %v487, %v3095
        %v4056 = vsub.f32 %v488, %v3096
        %v4057 = vsub.f32 %v489, %v3097
        %v4058 = vsub.f32 %v490, %v3098
        %v4059 = vsub.f32 %v491, %v3099
        %v4060 = vsub.f32 %v492, %v3100
        %v4061 = vsub.f32 %v493, %v3101
        %v4062 = vsub.f32 %v494, %v3102
        %v4063 = vsub.f32 %v495, %v3103
        %v4064 = vsub.f32 %v496, %v3104
        %v4065 = vmul.f32 %v4033, %v3598
        %v4066 = vmul.f32 %v4034, %v3612
        %v4067 = vmul.f32 %v4035, %v3626
        %v4068 = vmul.f32 %v4036, %v3640
        %v4069 = vmul.f32 %v4037, %v3654
        %v4070 = vmul.f32 %v4038, %v3668
        %v4071 = vmul.f32 %v4039, %v3682
        %v4072 = vmul.f32 %v4040, %v3696
        %v4073 = vmul.f32 %v4041, %v3710
        %v4074 = vmul.f32 %v4042, %v3724
        %v4075 = vmul.f32 %v4043, %v3738
        %v4076 = vmul.f32 %v4044, %v3752
        %v4077 = vmul.f32 %v4045, %v3766
        %v4078 = vmul.f32 %v4046, %v3780
        %v4079 = vmul.f32 %v4047, %v3794
        %v4080 = vmul.f32 %v4048, %v3808
        %v4081 = vmul.f32 %v4049, %v3822
        %v4082 = vmul.f32 %v4050, %v3836
        %v4083 = vmul.f32 %v4051, %v3850
        %v4084 = vmul.f32 %v4052, %v3864
        %v4085 = vmul.f32 %v4053, %v3878
        %v4086 = vmul.f32 %v4054, %v3892
        %v4087 = vmul.f32 %v4055, %v3906
        %v4088 = vmul.f32 %v4056, %v3920
        %v4089 = vmul.f32 %v4057, %v3934
        %v4090 = vmul.f32 %v4058, %v3948
        %v4091 = vmul.f32 %v4059, %v3962
        %v4092 = vmul.f32 %v4060, %v3976
        %v4093 = vmul.f32 %v4061, %v3990
        %v4094 = vmul.f32 %v4062, %v4004
        %v4095 = vmul.f32 %v4063, %v4018
        %v4096 = vmul.f32 %v4064, %v4032
        %v4097 = vlog2.pop %v3553
        %v4098 = vmul.f32 %v4097, 0.6931472
        %v4099 = vlog2.pop %v3554
        %v4100 = vmul.f32 %v4099, 0.6931472
        %v4101 = vlog2.pop %v3555
        %v4102 = vmul.f32 %v4101, 0.6931472
        %v4103 = vlog2.pop %v3556
        %v4104 = vmul.f32 %v4103, 0.6931472
        %v4105 = vlog2.pop %v3557
        %v4106 = vmul.f32 %v4105, 0.6931472
        %v4107 = vlog2.pop %v3558
        %v4108 = vmul.f32 %v4107, 0.6931472
        %v4109 = vlog2.pop %v3559
        %v4110 = vmul.f32 %v4109, 0.6931472
        %v4111 = vlog2.pop %v3560
        %v4112 = vmul.f32 %v4111, 0.6931472
        %v4113 = vlog2.pop %v3561
        %v4114 = vmul.f32 %v4113, 0.6931472
        %v4115 = vlog2.pop %v3562
        %v4116 = vmul.f32 %v4115, 0.6931472
        %v4117 = vlog2.pop %v3563
        %v4118 = vmul.f32 %v4117, 0.6931472
        %v4119 = vlog2.pop %v3564
        %v4120 = vmul.f32 %v4119, 0.6931472
        %v4121 = vlog2.pop %v3565
        %v4122 = vmul.f32 %v4121, 0.6931472
        %v4123 = vlog2.pop %v3566
        %v4124 = vmul.f32 %v4123, 0.6931472
        %v4125 = vlog2.pop %v3567
        %v4126 = vmul.f32 %v4125, 0.6931472
        %v4127 = vlog2.pop %v3568
        %v4128 = vmul.f32 %v4127, 0.6931472
        %v4129 = vlog2.pop %v3569
        %v4130 = vmul.f32 %v4129, 0.6931472
        %v4131 = vlog2.pop %v3570
        %v4132 = vmul.f32 %v4131, 0.6931472
        %v4133 = vlog2.pop %v3571
        %v4134 = vmul.f32 %v4133, 0.6931472
        %v4135 = vlog2.pop %v3572
        %v4136 = vmul.f32 %v4135, 0.6931472
        %v4137 = vlog2.pop %v3573
        %v4138 = vmul.f32 %v4137, 0.6931472
        %v4139 = vlog2.pop %v3574
        %v4140 = vmul.f32 %v4139, 0.6931472
        %v4141 = vlog2.pop %v3575
        %v4142 = vmul.f32 %v4141, 0.6931472
        %v4143 = vlog2.pop %v3576
        %v4144 = vmul.f32 %v4143, 0.6931472
        %v4145 = vlog2.pop %v3577
        %v4146 = vmul.f32 %v4145, 0.6931472
        %v4147 = vlog2.pop %v3578
        %v4148 = vmul.f32 %v4147, 0.6931472
        %v4149 = vlog2.pop %v3579
        %v4150 = vmul.f32 %v4149, 0.6931472
        %v4151 = vlog2.pop %v3580
        %v4152 = vmul.f32 %v4151, 0.6931472
        %v4153 = vlog2.pop %v3581
        %v4154 = vmul.f32 %v4153, 0.6931472
        %v4155 = vlog2.pop %v3582
        %v4156 = vmul.f32 %v4155, 0.6931472
        %v4157 = vlog2.pop %v3583
        %v4158 = vmul.f32 %v4157, 0.6931472
        %v4159 = vlog2.pop %v3584
        %v4160 = vmul.f32 %v4159, 0.6931472
        %v4161 = vadd.f32 %v4098, 0.9189385
        %v4162 = vadd.f32 %v4100, 0.9189385
        %v4163 = vadd.f32 %v4102, 0.9189385
        %v4164 = vadd.f32 %v4104, 0.9189385
        %v4165 = vadd.f32 %v4106, 0.9189385
        %v4166 = vadd.f32 %v4108, 0.9189385
        %v4167 = vadd.f32 %v4110, 0.9189385
        %v4168 = vadd.f32 %v4112, 0.9189385
        %v4169 = vadd.f32 %v4114, 0.9189385
        %v4170 = vadd.f32 %v4116, 0.9189385
        %v4171 = vadd.f32 %v4118, 0.9189385
        %v4172 = vadd.f32 %v4120, 0.9189385
        %v4173 = vadd.f32 %v4122, 0.9189385
        %v4174 = vadd.f32 %v4124, 0.9189385
        %v4175 = vadd.f32 %v4126, 0.9189385
        %v4176 = vadd.f32 %v4128, 0.9189385
        %v4177 = vadd.f32 %v4130, 0.9189385
        %v4178 = vadd.f32 %v4132, 0.9189385
        %v4179 = vadd.f32 %v4134, 0.9189385
        %v4180 = vadd.f32 %v4136, 0.9189385
        %v4181 = vadd.f32 %v4138, 0.9189385
        %v4182 = vadd.f32 %v4140, 0.9189385
        %v4183 = vadd.f32 %v4142, 0.9189385
        %v4184 = vadd.f32 %v4144, 0.9189385
        %v4185 = vadd.f32 %v4146, 0.9189385
        %v4186 = vadd.f32 %v4148, 0.9189385
        %v4187 = vadd.f32 %v4150, 0.9189385
        %v4188 = vadd.f32 %v4152, 0.9189385
        %v4189 = vadd.f32 %v4154, 0.9189385
        %v4190 = vadd.f32 %v4156, 0.9189385
        %v4191 = vadd.f32 %v4158, 0.9189385
        %v4192 = vadd.f32 %v4160, 0.9189385
        %v4193 = vmul.f32 %v4065, 0.5
        %v4194 = vmul.f32 %v4066, 0.5
        %v4195 = vmul.f32 %v4067, 0.5
        %v4196 = vmul.f32 %v4068, 0.5
        %v4197 = vmul.f32 %v4069, 0.5
        %v4198 = vmul.f32 %v4070, 0.5
        %v4199 = vmul.f32 %v4071, 0.5
        %v4200 = vmul.f32 %v4072, 0.5
        %v4201 = vmul.f32 %v4073, 0.5
        %v4202 = vmul.f32 %v4074, 0.5
        %v4203 = vmul.f32 %v4075, 0.5
        %v4204 = vmul.f32 %v4076, 0.5
        %v4205 = vmul.f32 %v4077, 0.5
        %v4206 = vmul.f32 %v4078, 0.5
        %v4207 = vmul.f32 %v4079, 0.5
        %v4208 = vmul.f32 %v4080, 0.5
        %v4209 = vmul.f32 %v4081, 0.5
        %v4210 = vmul.f32 %v4082, 0.5
        %v4211 = vmul.f32 %v4083, 0.5
        %v4212 = vmul.f32 %v4084, 0.5
        %v4213 = vmul.f32 %v4085, 0.5
        %v4214 = vmul.f32 %v4086, 0.5
        %v4215 = vmul.f32 %v4087, 0.5
        %v4216 = vmul.f32 %v4088, 0.5
        %v4217 = vmul.f32 %v4089, 0.5
        %v4218 = vmul.f32 %v4090, 0.5
        %v4219 = vmul.f32 %v4091, 0.5
        %v4220 = vmul.f32 %v4092, 0.5
        %v4221 = vmul.f32 %v4093, 0.5
        %v4222 = vmul.f32 %v4094, 0.5
        %v4223 = vmul.f32 %v4095, 0.5
        %v4224 = vmul.f32 %v4096, 0.5
        %v4225 = vmul.f32 %v4193, %v4065
        %v4226 = vmul.f32 %v4194, %v4066
        %v4227 = vmul.f32 %v4195, %v4067
        %v4228 = vmul.f32 %v4196, %v4068
        %v4229 = vmul.f32 %v4197, %v4069
        %v4230 = vmul.f32 %v4198, %v4070
        %v4231 = vmul.f32 %v4199, %v4071
        %v4232 = vmul.f32 %v4200, %v4072
        %v4233 = vmul.f32 %v4201, %v4073
        %v4234 = vmul.f32 %v4202, %v4074
        %v4235 = vmul.f32 %v4203, %v4075
        %v4236 = vmul.f32 %v4204, %v4076
        %v4237 = vmul.f32 %v4205, %v4077
        %v4238 = vmul.f32 %v4206, %v4078
        %v4239 = vmul.f32 %v4207, %v4079
        %v4240 = vmul.f32 %v4208, %v4080
        %v4241 = vmul.f32 %v4209, %v4081
        %v4242 = vmul.f32 %v4210, %v4082
        %v4243 = vmul.f32 %v4211, %v4083
        %v4244 = vmul.f32 %v4212, %v4084
        %v4245 = vmul.f32 %v4213, %v4085
        %v4246 = vmul.f32 %v4214, %v4086
        %v4247 = vmul.f32 %v4215, %v4087
        %v4248 = vmul.f32 %v4216, %v4088
        %v4249 = vmul.f32 %v4217, %v4089
        %v4250 = vmul.f32 %v4218, %v4090
        %v4251 = vmul.f32 %v4219, %v4091
        %v4252 = vmul.f32 %v4220, %v4092
        %v4253 = vmul.f32 %v4221, %v4093
        %v4254 = vmul.f32 %v4222, %v4094
        %v4255 = vmul.f32 %v4223, %v4095
        %v4256 = vmul.f32 %v4224, %v4096
        %v4257 = vadd.f32 %v4161, %v4225
        %v4258 = vadd.f32 %v4162, %v4226
        %v4259 = vadd.f32 %v4163, %v4227
        %v4260 = vadd.f32 %v4164, %v4228
        %v4261 = vadd.f32 %v4165, %v4229
        %v4262 = vadd.f32 %v4166, %v4230
        %v4263 = vadd.f32 %v4167, %v4231
        %v4264 = vadd.f32 %v4168, %v4232
        %v4265 = vadd.f32 %v4169, %v4233
        %v4266 = vadd.f32 %v4170, %v4234
        %v4267 = vadd.f32 %v4171, %v4235
        %v4268 = vadd.f32 %v4172, %v4236
        %v4269 = vadd.f32 %v4173, %v4237
        %v4270 = vadd.f32 %v4174, %v4238
        %v4271 = vadd.f32 %v4175, %v4239
        %v4272 = vadd.f32 %v4176, %v4240
        %v4273 = vadd.f32 %v4177, %v4241
        %v4274 = vadd.f32 %v4178, %v4242
        %v4275 = vadd.f32 %v4179, %v4243
        %v4276 = vadd.f32 %v4180, %v4244
        %v4277 = vadd.f32 %v4181, %v4245
        %v4278 = vadd.f32 %v4182, %v4246
        %v4279 = vadd.f32 %v4183, %v4247
        %v4280 = vadd.f32 %v4184, %v4248
        %v4281 = vadd.f32 %v4185, %v4249
        %v4282 = vadd.f32 %v4186, %v4250
        %v4283 = vadd.f32 %v4187, %v4251
        %v4284 = vadd.f32 %v4188, %v4252
        %v4285 = vadd.f32 %v4189, %v4253
        %v4286 = vadd.f32 %v4190, %v4254
        %v4287 = vadd.f32 %v4191, %v4255
        %v4288 = vadd.f32 %v4192, %v4256
        %s4289 = smul.u32 %s26, 256
        %v4290 = vlaneseq
        %v4291 = vshrl.u32 %v4290, 7
        %v4292 = vadd.s32 %v4291, 8
        %v4293 = vadd.s32 %v4291, 16
        %v4294 = vadd.s32 %v4291, 24
        %v4295 = vadd.s32 %v4291, 32
        %v4296 = vadd.s32 %v4291, 40
        %v4297 = vadd.s32 %v4291, 48
        %v4298 = vadd.s32 %v4291, 56
        %v4299 = vadd.s32 %v4291, 64
        %v4300 = vadd.s32 %v4291, 72
        %v4301 = vadd.s32 %v4291, 80
        %v4302 = vadd.s32 %v4291, 88
        %v4303 = vadd.s32 %v4291, 96
        %v4304 = vadd.s32 %v4291, 104
        %v4305 = vadd.s32 %v4291, 112
        %v4306 = vadd.s32 %v4291, 120
        %v4307 = vadd.s32 %v4291, 128
        %v4308 = vadd.s32 %v4291, 136
        %v4309 = vadd.s32 %v4291, 144
        %v4310 = vadd.s32 %v4291, 152
        %v4311 = vadd.s32 %v4291, 160
        %v4312 = vadd.s32 %v4291, 168
        %v4313 = vadd.s32 %v4291, 176
        %v4314 = vadd.s32 %v4291, 184
        %v4315 = vadd.s32 %v4291, 192
        %v4316 = vadd.s32 %v4291, 200
        %v4317 = vadd.s32 %v4291, 208
        %v4318 = vadd.s32 %v4291, 216
        %v4319 = vadd.s32 %v4291, 224
        %v4320 = vadd.s32 %v4291, 232
        %v4321 = vadd.s32 %v4291, 240
        %v4322 = vadd.s32 %v4291, 248
        %v4323 = vstv %s4289
        %v4324 = vadd.s32 %v4323, %v4291
        %v4325 = vadd.s32 %v4323, %v4292
        %v4326 = vadd.s32 %v4323, %v4293
        %v4327 = vadd.s32 %v4323, %v4294
        %v4328 = vadd.s32 %v4323, %v4295
        %v4329 = vadd.s32 %v4323, %v4296
        %v4330 = vadd.s32 %v4323, %v4297
        %v4331 = vadd.s32 %v4323, %v4298
        %v4332 = vadd.s32 %v4323, %v4299
        %v4333 = vadd.s32 %v4323, %v4300
        %v4334 = vadd.s32 %v4323, %v4301
        %v4335 = vadd.s32 %v4323, %v4302
        %v4336 = vadd.s32 %v4323, %v4303
        %v4337 = vadd.s32 %v4323, %v4304
        %v4338 = vadd.s32 %v4323, %v4305
        %v4339 = vadd.s32 %v4323, %v4306
        %v4340 = vadd.s32 %v4323, %v4307
        %v4341 = vadd.s32 %v4323, %v4308
        %v4342 = vadd.s32 %v4323, %v4309
        %v4343 = vadd.s32 %v4323, %v4310
        %v4344 = vadd.s32 %v4323, %v4311
        %v4345 = vadd.s32 %v4323, %v4312
        %v4346 = vadd.s32 %v4323, %v4313
        %v4347 = vadd.s32 %v4323, %v4314
        %v4348 = vadd.s32 %v4323, %v4315
        %v4349 = vadd.s32 %v4323, %v4316
        %v4350 = vadd.s32 %v4323, %v4317
        %v4351 = vadd.s32 %v4323, %v4318
        %v4352 = vadd.s32 %v4323, %v4319
        %v4353 = vadd.s32 %v4323, %v4320
        %v4354 = vadd.s32 %v4323, %v4321
        %v4355 = vadd.s32 %v4323, %v4322
        %vm4356 = vcmp.lt.s32.totalorder %v4324, 1024
        %vm4357 = vcmp.lt.s32.totalorder %v4325, 1024
        %vm4358 = vcmp.lt.s32.totalorder %v4326, 1024
        %vm4359 = vcmp.lt.s32.totalorder %v4327, 1024
        %vm4360 = vcmp.lt.s32.totalorder %v4328, 1024
        %vm4361 = vcmp.lt.s32.totalorder %v4329, 1024
        %vm4362 = vcmp.lt.s32.totalorder %v4330, 1024
        %vm4363 = vcmp.lt.s32.totalorder %v4331, 1024
        %vm4364 = vcmp.lt.s32.totalorder %v4332, 1024
        %vm4365 = vcmp.lt.s32.totalorder %v4333, 1024
        %vm4366 = vcmp.lt.s32.totalorder %v4334, 1024
        %vm4367 = vcmp.lt.s32.totalorder %v4335, 1024
        %vm4368 = vcmp.lt.s32.totalorder %v4336, 1024
        %vm4369 = vcmp.lt.s32.totalorder %v4337, 1024
        %vm4370 = vcmp.lt.s32.totalorder %v4338, 1024
        %vm4371 = vcmp.lt.s32.totalorder %v4339, 1024
        %vm4372 = vcmp.lt.s32.totalorder %v4340, 1024
        %vm4373 = vcmp.lt.s32.totalorder %v4341, 1024
        %vm4374 = vcmp.lt.s32.totalorder %v4342, 1024
        %vm4375 = vcmp.lt.s32.totalorder %v4343, 1024
        %vm4376 = vcmp.lt.s32.totalorder %v4344, 1024
        %vm4377 = vcmp.lt.s32.totalorder %v4345, 1024
        %vm4378 = vcmp.lt.s32.totalorder %v4346, 1024
        %vm4379 = vcmp.lt.s32.totalorder %v4347, 1024
        %vm4380 = vcmp.lt.s32.totalorder %v4348, 1024
        %vm4381 = vcmp.lt.s32.totalorder %v4349, 1024
        %vm4382 = vcmp.lt.s32.totalorder %v4350, 1024
        %vm4383 = vcmp.lt.s32.totalorder %v4351, 1024
        %vm4384 = vcmp.lt.s32.totalorder %v4352, 1024
        %vm4385 = vcmp.lt.s32.totalorder %v4353, 1024
        %vm4386 = vcmp.lt.s32.totalorder %v4354, 1024
        %vm4387 = vcmp.lt.s32.totalorder %v4355, 1024
        %v4388 = vsel %vm4356, %v4257, 0.0
        %v4389 = vsel %vm4357, %v4258, 0.0
        %v4390 = vsel %vm4358, %v4259, 0.0
        %v4391 = vsel %vm4359, %v4260, 0.0
        %v4392 = vsel %vm4360, %v4261, 0.0
        %v4393 = vsel %vm4361, %v4262, 0.0
        %v4394 = vsel %vm4362, %v4263, 0.0
        %v4395 = vsel %vm4363, %v4264, 0.0
        %v4396 = vsel %vm4364, %v4265, 0.0
        %v4397 = vsel %vm4365, %v4266, 0.0
        %v4398 = vsel %vm4366, %v4267, 0.0
        %v4399 = vsel %vm4367, %v4268, 0.0
        %v4400 = vsel %vm4368, %v4269, 0.0
        %v4401 = vsel %vm4369, %v4270, 0.0
        %v4402 = vsel %vm4370, %v4271, 0.0
        %v4403 = vsel %vm4371, %v4272, 0.0
        %v4404 = vsel %vm4372, %v4273, 0.0
        %v4405 = vsel %vm4373, %v4274, 0.0
        %v4406 = vsel %vm4374, %v4275, 0.0
        %v4407 = vsel %vm4375, %v4276, 0.0
        %v4408 = vsel %vm4376, %v4277, 0.0
        %v4409 = vsel %vm4377, %v4278, 0.0
        %v4410 = vsel %vm4378, %v4279, 0.0
        %v4411 = vsel %vm4379, %v4280, 0.0
        %v4412 = vsel %vm4380, %v4281, 0.0
        %v4413 = vsel %vm4381, %v4282, 0.0
        %v4414 = vsel %vm4382, %v4283, 0.0
        %v4415 = vsel %vm4383, %v4284, 0.0
        %v4416 = vsel %vm4384, %v4285, 0.0
        %v4417 = vsel %vm4385, %v4286, 0.0
        %v4418 = vsel %vm4386, %v4287, 0.0
        %v4419 = vsel %vm4387, %v4288, 0.0
        %vm4420 = vcmask 7168
        %v4421 = vsel %vm4420, %v4388, 0.0
        %v4422 = vsel %vm4420, %v4389, 0.0
        %v4423 = vadd.f32 %v4421, %v4422
        %v4424 = vsel %vm4420, %v4390, 0.0
        %v4425 = vadd.f32 %v4423, %v4424
        %v4426 = vsel %vm4420, %v4391, 0.0
        %v4427 = vadd.f32 %v4425, %v4426
        %v4428 = vsel %vm4420, %v4392, 0.0
        %v4429 = vadd.f32 %v4427, %v4428
        %v4430 = vsel %vm4420, %v4393, 0.0
        %v4431 = vadd.f32 %v4429, %v4430
        %v4432 = vsel %vm4420, %v4394, 0.0
        %v4433 = vadd.f32 %v4431, %v4432
        %v4434 = vsel %vm4420, %v4395, 0.0
        %v4435 = vadd.f32 %v4433, %v4434
        %v4436 = vsel %vm4420, %v4396, 0.0
        %v4437 = vadd.f32 %v4435, %v4436
        %v4438 = vsel %vm4420, %v4397, 0.0
        %v4439 = vadd.f32 %v4437, %v4438
        %v4440 = vsel %vm4420, %v4398, 0.0
        %v4441 = vadd.f32 %v4439, %v4440
        %v4442 = vsel %vm4420, %v4399, 0.0
        %v4443 = vadd.f32 %v4441, %v4442
        %v4444 = vsel %vm4420, %v4400, 0.0
        %v4445 = vadd.f32 %v4443, %v4444
        %v4446 = vsel %vm4420, %v4401, 0.0
        %v4447 = vadd.f32 %v4445, %v4446
        %v4448 = vsel %vm4420, %v4402, 0.0
        %v4449 = vadd.f32 %v4447, %v4448
        %v4450 = vsel %vm4420, %v4403, 0.0
        %v4451 = vadd.f32 %v4449, %v4450
        %v4452 = vsel %vm4420, %v4404, 0.0
        %v4453 = vadd.f32 %v4451, %v4452
        %v4454 = vsel %vm4420, %v4405, 0.0
        %v4455 = vadd.f32 %v4453, %v4454
        %v4456 = vsel %vm4420, %v4406, 0.0
        %v4457 = vadd.f32 %v4455, %v4456
        %v4458 = vsel %vm4420, %v4407, 0.0
        %v4459 = vadd.f32 %v4457, %v4458
        %v4460 = vsel %vm4420, %v4408, 0.0
        %v4461 = vadd.f32 %v4459, %v4460
        %v4462 = vsel %vm4420, %v4409, 0.0
        %v4463 = vadd.f32 %v4461, %v4462
        %v4464 = vsel %vm4420, %v4410, 0.0
        %v4465 = vadd.f32 %v4463, %v4464
        %v4466 = vsel %vm4420, %v4411, 0.0
        %v4467 = vadd.f32 %v4465, %v4466
        %v4468 = vsel %vm4420, %v4412, 0.0
        %v4469 = vadd.f32 %v4467, %v4468
        %v4470 = vsel %vm4420, %v4413, 0.0
        %v4471 = vadd.f32 %v4469, %v4470
        %v4472 = vsel %vm4420, %v4414, 0.0
        %v4473 = vadd.f32 %v4471, %v4472
        %v4474 = vsel %vm4420, %v4415, 0.0
        %v4475 = vadd.f32 %v4473, %v4474
        %v4476 = vsel %vm4420, %v4416, 0.0
        %v4477 = vadd.f32 %v4475, %v4476
        %v4478 = vsel %vm4420, %v4417, 0.0
        %v4479 = vadd.f32 %v4477, %v4478
        %v4480 = vsel %vm4420, %v4418, 0.0
        %v4481 = vadd.f32 %v4479, %v4480
        %v4482 = vsel %vm4420, %v4419, 0.0
        %v4483 = vadd.f32 %v4481, %v4482
        %4484 = vadd.xlane.f32.xlu0 %v4483
        %v4485 = vpop.xlane.xlu0 %4484
        %v4486 = vrot.slane %v4485, 4
        %v4487 = vadd.f32 %v4485, %v4486
        %v4488 = vrot.slane %v4487, 2
        %v4489 = vadd.f32 %v4487, %v4488
        %v4490 = vrot.slane %v4489, 1
        %v4491 = vadd.f32 %v4489, %v4490
        %s4492 = vtos %v4491
        %p4493 = scmp.eq.s32.totalorder %s26, 0
        // Predicated region
        $region77: #{tpu_custom_call.1} parent=71 // pred_check
          %p4494 = pneg %p4493
        $region78: #{tpu_custom_call.1} parent=71 // pred_check_branch
          %4496 = sbr.rel (%p4494) target = $region80
        $region79: #{tpu_custom_call.1} parent=71 // pred_region
          %s4497 = scalar_lea.smem [#allocation5], 0
          %4498 = sst [smem:[%s4497]] 0.0
        $region80: #{tpu_custom_call.1} parent=71 // pred_fallthru
          _
        %s4499 = sld [smem:[#allocation5]]
        %s4500 = sadd.f32 %s4499, %s4492
        %s4501 = scalar_lea.smem [#allocation5], 0
        %4502 = sst [smem:[%s4501]] %s4500
        %p4503 = scmp.eq.s32.totalorder %s26, 3
        // Predicated region
        $region81: #{tpu_custom_call.1} parent=71 // pred_check
          %p4504 = pneg %p4503
        $region82: #{tpu_custom_call.1} parent=71 // pred_check_branch
          %4506 = sbr.rel (%p4504) target = $region84
        $region83: #{tpu_custom_call.1} parent=71 // pred_region
          %s4507 = sld [smem:[#allocation5]]
          %v4508 = vrcp.pop 1024.0
          %v4509 = vmul.f32 1024.0, %v4508
          %v4510 = vsub.f32 1.0, %v4509
          %v4511 = vmul.f32 %v4508, %v4510
          %v4512 = vadd.f32 %v4508, %v4511
          %vm4513 = vweird.f32 %v4508
          %v4514 = vsel %vm4513, %v4508, %v4512
          %s4515 = vtos %v4514
          %s4516 = smul.f32 %s4507, %s4515
          %4517 = sst [smem:[%s4501]] %s4516
        $region84: #{tpu_custom_call.1} parent=71 // pred_fallthru
          _
        // Predicated region
        $region85: #{tpu_custom_call.1} parent=71 // pred_check
          %p4518 = pneg %p322
        $region86: #{tpu_custom_call.1} parent=71 // pred_check_branch
          %4520 = sbr.rel (%p4518) target = $region88
        $region87: #{tpu_custom_call.1} parent=71 // pred_region
          %4522 = vsyncadd [#allocation3], 0
          %s4524 = sshll.u32 %s13, 4
          %s4525 = int_to_ptr.hbm [resolvable:$true] %s4524
          %4527 = dma.smem_to_hbm [#allocation5], 16, %s4525, [#allocation3]
        $region88: #{tpu_custom_call.1} parent=71 // pred_fallthru
          _
        // Predicated region
        $region89: #{tpu_custom_call.1} parent=71 // pred_check
          %p4528 = pneg %p322
        $region90: #{tpu_custom_call.1} parent=71 // pred_check_branch
          %4530 = sbr.rel (%p4528) target = $region92
        $region91: #{tpu_custom_call.1} parent=71 // pred_region
          %4532 = dma.done [#allocation3], 16
        $region92: #{tpu_custom_call.1} parent=71 // pred_fallthru
          _
        %4533 = sfence
      $region72: #{tpu_custom_call.1} parent=5 // pred_fallthru
        _
      %p4534 = scmp.le.s32.totalorder 2, %s21
      // Predicated region
      $region93: #{tpu_custom_call.1} parent=5 // pred_check
        %p4535 = pneg %p4534
      $region94: #{tpu_custom_call.1} parent=5 // pred_check_branch
        %4537 = sbr.rel (%p4535) target = $region96
      $region95: #{tpu_custom_call.1} parent=5 // pred_region
        %s4538 = ssub.s32 %s21, 2
      $region96: #{tpu_custom_call.1} parent=5 // pred_fallthru
        _
    $region6: #{tpu_custom_call.1} parent=1 // loop_footer
      %s25 = sadd.s32 1, %s21
    $region7: #{tpu_custom_call.1} parent=1 // loop_footer_branch
      %20 = sbr.rel target = $region3
    $region8: #{tpu_custom_call.1} parent=1 // loop_exit
      _
    %4539 = vsyncpa [#allocation3], 1
    %s4540 = scalar_lea.sflag [#allocation3], 1
    %4541 = vsyncpa %s4540, 1
    %4542 = vsyncpa [#allocation4], 1
    %s4543 = scalar_lea.sflag [#allocation4], 1
    %4544 = vsyncpa %s4543, 1

</llo_original>
